<compile_context>
chip_gen: v7x
topology: tpu7x:2x2x1
jax: 0.10.0
libtpu: 0.0.40
codegen_flags: <defaults>
</compile_context>

<pallas_src>
import functools
import math

import jax
import jax.numpy as jnp
from jax.experimental import pallas as pl
from jax.experimental.pallas import tpu as pltpu


# ----------------------------------------------------------------------------
# VMEM budgeting (generation-aware)
# ----------------------------------------------------------------------------
def _round_up(v, m):
    return ((v + m - 1) // m) * m


def _get_vmem_limit():
    try:
        cap = int(pltpu.get_tpu_info().vmem_capacity_bytes)
    except Exception:
        cap = 64 * 1024 * 1024          # conservative (v7x physical VMEM)
    return int(min(cap // 2, 64 * 1024 * 1024))


_VMEM_LIMIT = _get_vmem_limit()
_VMEM_BUDGET = (_VMEM_LIMIT * 3) // 4    # headroom for Mosaic internals


def _pick_lane_tile(per_lane_bytes, fixed_bytes, total_lanes_padded):
    """Largest multiple-of-128 lane tile fitting the VMEM budget; >=2 grid
    steps at real pixel counts so v7x's two TensorCores both get work."""
    avail = max(_VMEM_BUDGET - fixed_bytes, 0)
    max_lanes = max(128, (avail // max(per_lane_bytes, 1)) // 128 * 128)
    tile = min(total_lanes_padded, max_lanes)
    if total_lanes_padded >= 4096 and tile >= total_lanes_padded:
        tile = max(128, _round_up(total_lanes_padded // 2, 128))
    return tile


# ----------------------------------------------------------------------------
# Pallas kernels
# ----------------------------------------------------------------------------
def _mm_t_kernel(w_ref, a_ref, shift_ref, o_ref, *, relu):
    # outT = act(W @ A_T + shift); W:(R,K) bf16, A_T:(K,tm) bf16, shift:(R,1) f32
    acc = jnp.dot(w_ref[...], a_ref[...], preferred_element_type=jnp.float32)
    acc = acc + shift_ref[...]
    if relu:
        acc = jnp.maximum(acc, 0.0)
    o_ref[...] = acc.astype(o_ref.dtype)


def matmul_t_fused(w_mat, a_t, shift, relu=False, out_dtype=jnp.float32):
    """yT = act(w_mat @ a_t + shift[:, None]) in channel-major layout.

    Output last dim (pixel count) is lane-dense (padded to a multiple of the
    chosen 128-multiple tile); the pixel grid axis is "parallel".
    """
    R, K = w_mat.shape
    K2, M = a_t.shape
    assert K == K2
    w_bf = w_mat.astype(jnp.bfloat16)
    a_bf = a_t.astype(jnp.bfloat16)            # no-op if already bf16
    shift2 = shift.astype(jnp.float32).reshape(R, 1)

    out_bytes = jnp.dtype(out_dtype).itemsize
    Mp0 = _round_up(M, 128)
    # Double-buffered W, A-tile, shift AND output tile (review fix).
    per_lane = 2 * (K * 2 + R * out_bytes)
    fixed = 2 * (R * K * 2 + R * 4)
    tile_m = _pick_lane_tile(per_lane, fixed, Mp0)

    Mp = _round_up(M, tile_m)
    if Mp != M:
        a_bf = jnp.pad(a_bf, ((0, 0), (0, Mp - M)))
    grid = (Mp // tile_m,)

    out = pl.pallas_call(
        functools.partial(_mm_t_kernel, relu=relu),
        out_shape=jax.ShapeDtypeStruct((R, Mp), out_dtype),
        grid=grid,
        in_specs=[
            pl.BlockSpec((R, K), lambda i: (0, 0)),
            pl.BlockSpec((K, tile_m), lambda i: (0, i)),
            pl.BlockSpec((R, 1), lambda i: (0, 0)),
        ],
        out_specs=pl.BlockSpec((R, tile_m), lambda i: (0, i)),
        compiler_params=pltpu.CompilerParams(
            dimension_semantics=("parallel",),
            vmem_limit_bytes=_VMEM_LIMIT),
    )(w_bf, a_bf, shift2)
    return out[:, :M] if Mp != M else out


def _head_mask_kernel(w_ref, x_ref, b_ref, m_ref, *, logit_thre):
    # cls-head logits + max over anchors + logit-space threshold (fused so the
    # psm_single tensor and the sigmoid never exist).
    logits = jnp.dot(w_ref[...], x_ref[...],
                     preferred_element_type=jnp.float32) + b_ref[...]
    conf = jnp.max(logits, axis=0, keepdims=True)          # (1, tm)
    m_ref[...] = jnp.where(conf > logit_thre, 1.0, 0.0).astype(jnp.float32)


def head_conf_mask(x_t, w_cls, b_cls, thre):
    """Confidence mask for ALL CAVs from the fused cls-head + threshold kernel.
    x_t: (Cin, Ntot*H*W) bf16 channel-major.  Returns (Ntot*H*W,) f32 mask."""
    A, Cin = int(w_cls.shape[0]), int(w_cls.shape[1])
    M = x_t.shape[1]
    logit_thre = float(math.log(thre / (1.0 - thre)))      # strict '>' preserved

    Mp0 = _round_up(M, 128)
    per_lane = 2 * (Cin * 2 + 4)
    fixed = 2 * (A * Cin * 2 + A * 4)
    tile_m = _pick_lane_tile(per_lane, fixed, Mp0)
    Mp = _round_up(M, tile_m)

    x_bf = x_t.astype(jnp.bfloat16)
    if Mp != M:
        x_bf = jnp.pad(x_bf, ((0, 0), (0, Mp - M)))

    out = pl.pallas_call(
        functools.partial(_head_mask_kernel, logit_thre=logit_thre),
        out_shape=jax.ShapeDtypeStruct((1, Mp), jnp.float32),
        grid=(Mp // tile_m,),
        in_specs=[
            pl.BlockSpec((A, Cin), lambda i: (0, 0)),
            pl.BlockSpec((Cin, tile_m), lambda i: (0, i)),
            pl.BlockSpec((A, 1), lambda i: (0, 0)),
        ],
        out_specs=pl.BlockSpec((1, tile_m), lambda i: (0, i)),
        compiler_params=pltpu.CompilerParams(
            dimension_semantics=("parallel",),
            vmem_limit_bytes=_VMEM_LIMIT),
    )(w_cls.reshape(A, Cin).astype(jnp.bfloat16), x_bf,
      b_cls.astype(jnp.float32).reshape(A, 1))
    out = out[:, :M] if Mp != M else out
    return out.reshape(-1)


def _attn_fuse_kernel(x_ref, cmask_ref, valid_ref, o_ref, *, scale):
    # x_ref: (C, Lmax, tile_p) bf16.  Per-pixel scaled dot-product attention
    # over agents (ego = agent 0 query) with the communication-mask multiply
    # folded in.  Reductions run over the leading (C / L) axes -> pure VPU.
    x = x_ref[...].astype(jnp.float32) * cmask_ref[...][None, :, :]
    q = x[:, 0, :]                                          # (C, tp) ego query
    scores = jnp.sum(q[:, None, :] * x, axis=0) * scale     # (L, tp)
    valid = valid_ref[...] > 0.0
    scores = jnp.where(valid, scores, -1e30)
    m = jnp.max(scores, axis=0, keepdims=True)
    e = jnp.where(valid, jnp.exp(scores - m), 0.0)
    denom = jnp.sum(e, axis=0, keepdims=True)               # >=1 (ego valid)
    attn = e * pl.reciprocal(denom, approx=True)
    o_ref[...] = jnp.sum(attn[None, :, :] * x, axis=1).astype(o_ref.dtype)


def attn_fuse_all(xg, cm, vm, C):
    # xg: (C, Lmax, B*P) bf16, cm/vm: (Lmax, B*P) f32.  Tiled over pixels.
    L, BP = xg.shape[1], xg.shape[2]
    BP0 = _round_up(BP, 128)
    per_lane = 2 * (C * L * 2 + 2 * L * 4 + C * 2)
    tile_p = _pick_lane_tile(per_lane, 0, BP0)
    BPp = _round_up(BP, tile_p)
    if BPp != BP:
        xg = jnp.pad(xg, ((0, 0), (0, 0), (0, BPp - BP)))
        cm = jnp.pad(cm, ((0, 0), (0, BPp - BP)))
        vm = jnp.pad(vm, ((0, 0), (0, BPp - BP)), constant_values=1.0)

    out = pl.pallas_call(
        functools.partial(_attn_fuse_kernel, scale=1.0 / math.sqrt(C)),
        out_shape=jax.ShapeDtypeStruct((C, BPp), jnp.bfloat16),
        grid=(BPp // tile_p,),
        in_specs=[
            pl.BlockSpec((C, L, tile_p), lambda i: (0, 0, i)),
            pl.BlockSpec((L, tile_p), lambda i: (0, i)),
            pl.BlockSpec((L, tile_p), lambda i: (0, i)),
        ],
        out_specs=pl.BlockSpec((C, tile_p), lambda i: (0, i)),
        compiler_params=pltpu.CompilerParams(
            dimension_semantics=("parallel",),
            vmem_limit_bytes=_VMEM_LIMIT),
    )(xg.astype(jnp.bfloat16), cm.astype(jnp.float32), vm.astype(jnp.float32))
    return out[:, :BP] if BPp != BP else out


# ----------------------------------------------------------------------------
# Glue: BN folding, channel-major conv / deconv, VFE, scatter, backbone
# ----------------------------------------------------------------------------
def fold_bn(bn, eps=1e-3):
    gamma, beta, mean, var = bn
    scale = gamma / jnp.sqrt(var + eps)
    shift = beta - mean * scale
    return scale, shift


def conv2d_bn_relu(x, w, bn, stride=1, pad=1):
    # Conv2d(bias=False)+BatchNorm2d(eval)+ReLU on channel-major x (Cin,N,H,W).
    # TODO(synk): at real BEV sizes fold the k*k taps into the GEMM kernel as an
    # "arbitrary" reduction grid axis instead of building the im2col slab here.
    Cin, N, H, W = x.shape
    Cout, _, k, _ = w.shape
    xp = jnp.pad(x, ((0, 0), (0, 0), (pad, pad), (pad, pad)))
    Ho = (H + 2 * pad - k) // stride + 1
    Wo = (W + 2 * pad - k) // stride + 1
    patches = [xp[:, :, di:di + stride * (Ho - 1) + 1:stride,
                       dj:dj + stride * (Wo - 1) + 1:stride]
               for di in range(k) for dj in range(k)]
    colsT = jnp.stack(patches, axis=1).reshape(Cin * k * k, N * Ho * Wo)
    scale, shift = fold_bn(bn)
    w_mat = w.reshape(Cout, Cin * k * k) * scale[:, None]    # BN scale folded
    yT = matmul_t_fused(w_mat, colsT, shift, relu=True, out_dtype=jnp.bfloat16)
    return yT.reshape(Cout, N, Ho, Wo)                       # stays channel-major


def deconv_bn_relu(x, w, bn, stride):
    # ConvTranspose2d(kernel=stride, stride=stride, bias=False)+BN+ReLU, taps
    # fused into one GEMM.  x is channel-major (Cin, N, H, W).
    Cin, N, H, W = x.shape
    Cout, k = w.shape[1], w.shape[2]
    assert k == stride
    scale, shift = fold_bn(bn)
    colsT = x.reshape(Cin, N * H * W)                        # no transpose needed
    w_mat = w.transpose(2, 3, 1, 0).reshape(k * k * Cout, Cin)   # rows (a,b,cout)
    w_mat = w_mat * jnp.tile(scale, k * k)[:, None]
    shift_f = jnp.tile(shift, k * k)
    yT = matmul_t_fused(w_mat, colsT, shift_f, relu=True, out_dtype=jnp.bfloat16)
    if k == 1:
        return yT.reshape(Cout, N, H, W)
    # TODO(synk): kernelize or defer this (k,k) de-interleave at real BEV sizes.
    y = yT.reshape(k, k, Cout, N, H, W)
    return y.transpose(2, 3, 4, 0, 5, 1).reshape(Cout, N, H * k, W * k)


def conv1x1_heads(xt, w_cls, b_cls, w_reg, b_reg, N, H, W):
    # cls_head + reg_head fused into one GEMM on the channel-major fused feature.
    A, Cin = int(w_cls.shape[0]), int(w_cls.shape[1])
    w_mat = jnp.concatenate([w_cls.reshape(A, Cin),
                             w_reg.reshape(-1, Cin)], axis=0)
    shift = jnp.concatenate([b_cls, b_reg], axis=0)
    yT = matmul_t_fused(w_mat, xt, shift, relu=False, out_dtype=jnp.float32)
    psm = yT[:A].reshape(A, N, H, W).transpose(1, 0, 2, 3)   # NCHW only at the end
    rm = yT[A:].reshape(-1, N, H, W).transpose(1, 0, 2, 3)
    return psm, rm


def pillar_vfe(voxel_features, voxel_num_points, voxel_coords, params,
               voxel_size, pc_range):
    vf = voxel_features.astype(jnp.float32)                  # (M, Pmax, 4)
    M, Pmax, _ = vf.shape
    npts = voxel_num_points.astype(jnp.float32).reshape(M, 1, 1)
    points_mean = jnp.sum(vf[:, :, :3], axis=1, keepdims=True) / npts
    f_cluster = vf[:, :, :3] - points_mean

    vx, vy, vz = voxel_size
    x_off = vx / 2.0 + pc_range[0]
    y_off = vy / 2.0 + pc_range[1]
    z_off = vz / 2.0 + pc_range[2]
    cx = voxel_coords[:, 3].astype(jnp.float32)[:, None] * vx + x_off
    cy = voxel_coords[:, 2].astype(jnp.float32)[:, None] * vy + y_off
    cz = voxel_coords[:, 1].astype(jnp.float32)[:, None] * vz + z_off
    f_center = jnp.stack(
        [vf[:, :, 0] - cx, vf[:, :, 1] - cy, vf[:, :, 2] - cz], axis=-1)

    features = jnp.concatenate([vf, f_cluster, f_center], axis=-1)  # (M,Pmax,10)
    pid = jnp.arange(Pmax)[None, :]
    mask = (pid < voxel_num_points[:, None]).astype(jnp.float32)[:, :, None]
    features = features * mask          # masked BEFORE the PFN, as in OpenCOOD

    # PFNLayer: Linear(no bias) + BatchNorm1d(eval) + ReLU + max over points.
    scale, shift = fold_bn(params['pfn_bn'])
    w_mat = params['pfn_w'].T * scale[:, None]                # (Cout, 10)
    featT = features.transpose(2, 0, 1).reshape(features.shape[-1], M * Pmax)
    yT = matmul_t_fused(w_mat, featT, shift, relu=True, out_dtype=jnp.bfloat16)
    y = yT.reshape(-1, M, Pmax)
    return jnp.max(y, axis=2)                                 # (C_pillar, M)


def point_pillar_scatter(pillar_feats_t, voxel_coords, n_cavs, ny, nx):
    # Channel-major scatter: canvas (C, Ntot*ny*nx).
    C = pillar_feats_t.shape[0]
    canvas = jnp.zeros((C, n_cavs * ny * nx), pillar_feats_t.dtype)
    flat = (voxel_coords[:, 0] * (ny * nx) + voxel_coords[:, 1]
            + voxel_coords[:, 2] * nx + voxel_coords[:, 3])
    canvas = canvas.at[:, flat].set(pillar_feats_t)
    return canvas.reshape(C, n_cavs, ny, nx)


def base_bev_backbone(x, params):
    # TODO(synk): fuse each conv(s2)+conv(s1)(+deconv) stage into one kernel
    # keeping the intermediate in VMEM scratch to cut pallas_call count.
    ups = []
    h = conv2d_bn_relu(x, params['b0_w0'], params['b0_bn0'], stride=2, pad=1)
    h = conv2d_bn_relu(h, params['b0_w1'], params['b0_bn1'], stride=1, pad=1)
    ups.append(deconv_bn_relu(h, params['d0_w'], params['d0_bn'], stride=1))
    h = conv2d_bn_relu(h, params['b1_w0'], params['b1_bn0'], stride=2, pad=1)
    h = conv2d_bn_relu(h, params['b1_w1'], params['b1_bn1'], stride=1, pad=1)
    ups.append(deconv_bn_relu(h, params['d1_w'], params['d1_bn'], stride=2))
    return jnp.concatenate(ups, axis=0)       # channel-major spatial_features_2d


def where2comm_fuse(x, masks, record_len, Lmax):
    # x: channel-major (C, Ntot, H, W); masks: (Ntot, P) thresholded confidences.
    C, Ntot, H, W = x.shape
    P = H * W
    B = len(record_len)
    offsets = [0]
    for r in record_len:
        offsets.append(offsets[-1] + int(r))

    ego_idx = jnp.array([offsets[b] for b in range(B)], dtype=jnp.int32)
    # Rate from the ego map BEFORE forcing ego to 1 (matches reference).
    communication_rate = jnp.mean(jnp.sum(masks[ego_idx], axis=1) / P)
    masks = masks.at[ego_idx].set(1.0)                        # ego always kept

    # TODO(synk): warp_affine_simple (F.affine_grid + F.grid_sample) omitted;
    # pairwise_t_matrix is identity in this synthetic setup so the warp is a no-op.

    # Static regroup indices (record_len is static) -> one gather, no .at[].set loop.
    idx, valid = [], []
    for l in range(Lmax):
        row_i, row_v = [], []
        for b in range(B):
            n = min(int(record_len[b]), Lmax)
            row_i.append(offsets[b] + min(l, n - 1))
            row_v.append(1.0 if l < n else 0.0)
        idx.append(row_i)
        valid.append(row_v)
    idx_flat = jnp.array([i for row in idx for i in row], dtype=jnp.int32)
    valid_arr = jnp.array(valid, dtype=jnp.float32)           # (Lmax, B)

    x_flat = x.reshape(C, Ntot, P)
    xg = jnp.take(x_flat, idx_flat, axis=1).reshape(C, Lmax, B * P)
    cm = jnp.take(masks, idx_flat, axis=0).reshape(Lmax, B * P)
    vm = jnp.broadcast_to(valid_arr[:, :, None], (Lmax, B, P)).reshape(Lmax, B * P)

    fused = attn_fuse_all(xg, cm, vm, C)                      # (C, B*P) bf16
    return fused.reshape(C, B, H, W), communication_rate


def point_pillar_where2comm_forward(data, params, cfg):
    vf = data['voxel_features']
    vc = data['voxel_coords']
    vn = data['voxel_num_points']
    record_len = data['record_len']
    t_mat = data['pairwise_t_matrix']

    pillar_t = pillar_vfe(vf, vn, vc, params, cfg['voxel_size'], cfg['lidar_range'])
    n_cavs = int(sum(record_len))
    spatial = point_pillar_scatter(pillar_t, vc, n_cavs, cfg['ny'], cfg['nx'])
    sp2d = base_bev_backbone(spatial, params)                 # (C, Ntot, H, W) bf16
    C2, Ntot, H, W = sp2d.shape
    x_t = sp2d.reshape(C2, Ntot * H * W)

    # shrink_flag=False, compression=False, multi_scale=False
    # cls_head(psm_single) + Where2comm confidence mask fused in one kernel.
    masks_flat = head_conf_mask(x_t, params['cls_w'], params['cls_b'],
                                cfg['comm_thre'])
    fused, comm_rate = where2comm_fuse(sp2d, masks_flat.reshape(Ntot, H * W),
                                       record_len, Lmax=int(t_mat.shape[1]))
    B = len(record_len)
    psm, rm = conv1x1_heads(fused.reshape(C2, B * H * W),
                            params['cls_w'], params['cls_b'],
                            params['reg_w'], params['reg_b'], B, H, W)
    return {'psm': psm, 'rm': rm, 'com': comm_rate}


# ----------------------------------------------------------------------------
# Deterministic parameter init (synthetic; no checkpoint loading)
# ----------------------------------------------------------------------------
def init_params(key):
    keys = iter(jax.random.split(key, 64))

    def w(shape, s=0.1):
        return jax.random.normal(next(keys), shape, jnp.float32) * s

    def bn(c):
        gamma = 1.0 + 0.1 * jax.random.normal(next(keys), (c,), jnp.float32)
        beta = 0.1 * jax.random.normal(next(keys), (c,), jnp.float32)
        mean = 0.1 * jax.random.normal(next(keys), (c,), jnp.float32)
        var = 1.0 + 0.1 * jax.random.uniform(next(keys), (c,), jnp.float32)
        return (gamma, beta, mean, var)

    C_PILLAR, F0, F1, U = 16, 16, 32, 32
    p = {}
    p['pfn_w'] = w((10, C_PILLAR))          # torch Linear(10,16,bias=False).weight.T
    p['pfn_bn'] = bn(C_PILLAR)
    p['b0_w0'] = w((F0, C_PILLAR, 3, 3)); p['b0_bn0'] = bn(F0)
    p['b0_w1'] = w((F0, F0, 3, 3));       p['b0_bn1'] = bn(F0)
    p['b1_w0'] = w((F1, F0, 3, 3));       p['b1_bn0'] = bn(F1)
    p['b1_w1'] = w((F1, F1, 3, 3));       p['b1_bn1'] = bn(F1)
    p['d0_w'] = w((F0, U, 1, 1));         p['d0_bn'] = bn(U)   # ConvTranspose2d(16,32,1,1)
    p['d1_w'] = w((F1, U, 2, 2));         p['d1_bn'] = bn(U)   # ConvTranspose2d(32,32,2,2)
    head_dim, anchors = 2 * U, 2
    p['cls_w'] = w((anchors, head_dim, 1, 1));      p['cls_b'] = w((anchors,))
    p['reg_w'] = w((7 * anchors, head_dim, 1, 1));  p['reg_b'] = w((7 * anchors,))
    return p


# ----------------------------------------------------------------------------
if __name__ == "__main__":
    key = jax.random.PRNGKey(0)
    kp, kd = jax.random.split(key)
    params = init_params(kp)

    cfg = dict(voxel_size=(0.4, 0.4, 4.0),
               lidar_range=(-3.2, -3.2, -2.0, 3.2, 3.2, 2.0),
               nx=16, ny=16, comm_thre=0.5)

    record_len = [2, 2]                     # B=2 samples, max_cav=2 each
    n_cavs = sum(record_len)
    pillars_per_cav, max_pts = 10, 8
    M = n_cavs * pillars_per_cav

    kd1, kd2, kd3 = jax.random.split(kd, 3)
    coords_list = []
    for c in range(n_cavs):                 # distinct BEV cells per CAV
        perm = jax.random.permutation(jax.random.fold_in(kd1, c),
                                      cfg['nx'] * cfg['ny'])[:pillars_per_cav]
        y = perm // cfg['nx']
        x = perm % cfg['nx']
        z = jnp.zeros_like(x)
        bidx = jnp.full_like(x, c)
        coords_list.append(jnp.stack([bidx, z, y, x], axis=1))
    voxel_coords = jnp.concatenate(coords_list, axis=0).astype(jnp.int32)  # (M,4)

    voxel_features = jax.random.uniform(kd2, (M, max_pts, 4), jnp.float32,
                                        minval=-3.0, maxval=3.0)
    voxel_num_points = jax.random.randint(kd3, (M,), 1, max_pts + 1).astype(jnp.int32)
    pairwise_t_matrix = jnp.tile(jnp.eye(4, dtype=jnp.float32)[None, None, None],
                                 (len(record_len), 2, 2, 1, 1))

    @jax.jit
    def fwd(vf, vc, vn, tm):
        data = dict(voxel_features=vf, voxel_coords=vc, voxel_num_points=vn,
                    record_len=record_len, pairwise_t_matrix=tm)
        return point_pillar_where2comm_forward(data, params, cfg)

    out = fwd(voxel_features, voxel_coords, voxel_num_points, pairwise_t_matrix)
    jax.block_until_ready(out)

    assert out['psm'].shape == (2, 2, 8, 8)
    assert out['rm'].shape == (2, 14, 8, 8)
    assert out['com'].shape == ()
    print("KERNEL_OK")
</pallas_src>

<mosaic_0001>
module attributes {stable_mosaic.version = 11 : i64} {
  func.func @_mm_t_kernel(%arg0: i32, %arg1: memref<16x10xbf16, #tpu.memory_space<vmem>>, %arg2: memref<10x384xbf16, #tpu.memory_space<vmem>>, %arg3: memref<16x1xf32, #tpu.memory_space<vmem>>, %arg4: memref<16x384xbf16, #tpu.memory_space<vmem>>) attributes {dimension_semantics = [#tpu.dimension_semantics<parallel>], iteration_bounds = array<i64: 1>, scalar_prefetch = 0 : i64, scratch_operands = 0 : i64, tpu.core_type = #tpu.core_type<tc>, window_params = [{pipeline_mode = #tpu.pipeline_mode<synchronous>, transform_indices = @transform_0, window_bounds = array<i64: 16, 10>}, {transform_indices = @transform_1, window_bounds = array<i64: 10, 384>}, {pipeline_mode = #tpu.pipeline_mode<synchronous>, transform_indices = @transform_2, window_bounds = array<i64: 16, 1>}, {transform_indices = @transform_3, window_bounds = array<i64: 16, 384>}]} {
    %c0 = arith.constant 0 : index
    %c0_0 = arith.constant 0 : index
    %0 = vector.load %arg1[%c0, %c0_0] : memref<16x10xbf16, #tpu.memory_space<vmem>>, vector<16x10xbf16>
    %c0_1 = arith.constant 0 : index
    %c0_2 = arith.constant 0 : index
    %1 = vector.load %arg2[%c0_1, %c0_2] : memref<10x384xbf16, #tpu.memory_space<vmem>>, vector<10x384xbf16>
    %cst = arith.constant dense<0.000000e+00> : vector<16x384xf32>
    %2 = tpu.matmul %0, %1, %cst {dimension_numbers = #tpu.dot_dimension_numbers<[1], [0], [0], [1], [0, 0, 1, 1], [], []>} : vector<16x10xbf16>, vector<10x384xbf16>, vector<16x384xf32> -> vector<16x384xf32>
    %c0_3 = arith.constant 0 : index
    %c0_4 = arith.constant 0 : index
    %3 = vector.load %arg3[%c0_3, %c0_4] : memref<16x1xf32, #tpu.memory_space<vmem>>, vector<16x1xf32>
    %4 = vector.broadcast %3 : vector<16x1xf32> to vector<16x384xf32>
    %5 = arith.addf %2, %4 : vector<16x384xf32>
    %cst_5 = arith.constant 0.000000e+00 : f32
    %6 = vector.broadcast %cst_5 : f32 to vector<16x384xf32>
    %7 = arith.maximumf %5, %6 : vector<16x384xf32>
    %8 = arith.truncf %7 : vector<16x384xf32> to vector<16x384xbf16>
    %c0_6 = arith.constant 0 : index
    %c0_7 = arith.constant 0 : index
    %9 = vector.load %arg4[%c0_6, %c0_7] : memref<16x384xbf16, #tpu.memory_space<vmem>>, vector<16x384xbf16>
    tpu.vector_store %arg4[%c0_6, %c0_7], %8 {strides = array<i32>} : memref<16x384xbf16, #tpu.memory_space<vmem>>, vector<16x384xbf16>,
    return
  }
  func.func @transform_0(%arg0: i32) -> (i32, i32) {
    %c0_i32 = arith.constant 0 : i32
    %c0_i32_0 = arith.constant 0 : i32
    %c0_i32_1 = arith.constant 0 : i32
    return %c0_i32, %c0_i32_0 : i32, i32
  }
  func.func @transform_1(%arg0: i32) -> (i32, i32) {
    %c0_i32 = arith.constant 0 : i32
    %c0_i32_0 = arith.constant 0 : i32
    return %c0_i32, %arg0 : i32, i32
  }
  func.func @transform_2(%arg0: i32) -> (i32, i32) {
    %c0_i32 = arith.constant 0 : i32
    %c0_i32_0 = arith.constant 0 : i32
    %c0_i32_1 = arith.constant 0 : i32
    return %c0_i32, %c0_i32_0 : i32, i32
  }
  func.func @transform_3(%arg0: i32) -> (i32, i32) {
    %c0_i32 = arith.constant 0 : i32
    %c0_i32_0 = arith.constant 0 : i32
    return %c0_i32, %arg0 : i32, i32
  }
}

module attributes {stable_mosaic.version = 11 : i64} {
  func.func @_mm_t_kernel(%arg0: i32, %arg1: memref<16x144xbf16, #tpu.memory_space<vmem>>, %arg2: memref<144x256xbf16, #tpu.memory_space<vmem>>, %arg3: memref<16x1xf32, #tpu.memory_space<vmem>>, %arg4: memref<16x256xbf16, #tpu.memory_space<vmem>>) attributes {dimension_semantics = [#tpu.dimension_semantics<parallel>], iteration_bounds = array<i64: 1>, scalar_prefetch = 0 : i64, scratch_operands = 0 : i64, tpu.core_type = #tpu.core_type<tc>, window_params = [{pipeline_mode = #tpu.pipeline_mode<synchronous>, transform_indices = @transform_0, window_bounds = array<i64: 16, 144>}, {transform_indices = @transform_1, window_bounds = array<i64: 144, 256>}, {pipeline_mode = #tpu.pipeline_mode<synchronous>, transform_indices = @transform_2, window_bounds = array<i64: 16, 1>}, {transform_indices = @transform_3, window_bounds = array<i64: 16, 256>}]} {
    %c0 = arith.constant 0 : index
    %c0_0 = arith.constant 0 : index
    %0 = vector.load %arg1[%c0, %c0_0] : memref<16x144xbf16, #tpu.memory_space<vmem>>, vector<16x144xbf16>
    %c0_1 = arith.constant 0 : index
    %c0_2 = arith.constant 0 : index
    %1 = vector.load %arg2[%c0_1, %c0_2] : memref<144x256xbf16, #tpu.memory_space<vmem>>, vector<144x256xbf16>
    %cst = arith.constant dense<0.000000e+00> : vector<16x256xf32>
    %2 = tpu.matmul %0, %1, %cst {dimension_numbers = #tpu.dot_dimension_numbers<[1], [0], [0], [1], [0, 0, 1, 1], [], []>} : vector<16x144xbf16>, vector<144x256xbf16>, vector<16x256xf32> -> vector<16x256xf32>
    %c0_3 = arith.constant 0 : index
    %c0_4 = arith.constant 0 : index
    %3 = vector.load %arg3[%c0_3, %c0_4] : memref<16x1xf32, #tpu.memory_space<vmem>>, vector<16x1xf32>
    %4 = vector.broadcast %3 : vector<16x1xf32> to vector<16x256xf32>
    %5 = arith.addf %2, %4 : vector<16x256xf32>
    %cst_5 = arith.constant 0.000000e+00 : f32
    %6 = vector.broadcast %cst_5 : f32 to vector<16x256xf32>
    %7 = arith.maximumf %5, %6 : vector<16x256xf32>
    %8 = arith.truncf %7 : vector<16x256xf32> to vector<16x256xbf16>
    %c0_6 = arith.constant 0 : index
    %c0_7 = arith.constant 0 : index
    %9 = vector.load %arg4[%c0_6, %c0_7] : memref<16x256xbf16, #tpu.memory_space<vmem>>, vector<16x256xbf16>
    tpu.vector_store %arg4[%c0_6, %c0_7], %8 {strides = array<i32>} : memref<16x256xbf16, #tpu.memory_space<vmem>>, vector<16x256xbf16>,
    return
  }
  func.func @transform_0(%arg0: i32) -> (i32, i32) {
    %c0_i32 = arith.constant 0 : i32
    %c0_i32_0 = arith.constant 0 : i32
    %c0_i32_1 = arith.constant 0 : i32
    return %c0_i32, %c0_i32_0 : i32, i32
  }
  func.func @transform_1(%arg0: i32) -> (i32, i32) {
    %c0_i32 = arith.constant 0 : i32
    %c0_i32_0 = arith.constant 0 : i32
    return %c0_i32, %arg0 : i32, i32
  }
  func.func @transform_2(%arg0: i32) -> (i32, i32) {
    %c0_i32 = arith.constant 0 : i32
    %c0_i32_0 = arith.constant 0 : i32
    %c0_i32_1 = arith.constant 0 : i32
    return %c0_i32, %c0_i32_0 : i32, i32
  }
  func.func @transform_3(%arg0: i32) -> (i32, i32) {
    %c0_i32 = arith.constant 0 : i32
    %c0_i32_0 = arith.constant 0 : i32
    return %c0_i32, %arg0 : i32, i32
  }
}

module attributes {stable_mosaic.version = 11 : i64} {
  func.func @_mm_t_kernel(%arg0: i32, %arg1: memref<32x144xbf16, #tpu.memory_space<vmem>>, %arg2: memref<144x128xbf16, #tpu.memory_space<vmem>>, %arg3: memref<32x1xf32, #tpu.memory_space<vmem>>, %arg4: memref<32x128xbf16, #tpu.memory_space<vmem>>) attributes {dimension_semantics = [#tpu.dimension_semantics<parallel>], iteration_bounds = array<i64: 1>, scalar_prefetch = 0 : i64, scratch_operands = 0 : i64, tpu.core_type = #tpu.core_type<tc>, window_params = [{pipeline_mode = #tpu.pipeline_mode<synchronous>, transform_indices = @transform_0, window_bounds = array<i64: 32, 144>}, {transform_indices = @transform_1, window_bounds = array<i64: 144, 128>}, {pipeline_mode = #tpu.pipeline_mode<synchronous>, transform_indices = @transform_2, window_bounds = array<i64: 32, 1>}, {transform_indices = @transform_3, window_bounds = array<i64: 32, 128>}]} {
    %c0 = arith.constant 0 : index
    %c0_0 = arith.constant 0 : index
    %0 = vector.load %arg1[%c0, %c0_0] : memref<32x144xbf16, #tpu.memory_space<vmem>>, vector<32x144xbf16>
    %c0_1 = arith.constant 0 : index
    %c0_2 = arith.constant 0 : index
    %1 = vector.load %arg2[%c0_1, %c0_2] : memref<144x128xbf16, #tpu.memory_space<vmem>>, vector<144x128xbf16>
    %cst = arith.constant dense<0.000000e+00> : vector<32x128xf32>
    %2 = tpu.matmul %0, %1, %cst {dimension_numbers = #tpu.dot_dimension_numbers<[1], [0], [0], [1], [0, 0, 1, 1], [], []>} : vector<32x144xbf16>, vector<144x128xbf16>, vector<32x128xf32> -> vector<32x128xf32>
    %c0_3 = arith.constant 0 : index
    %c0_4 = arith.constant 0 : index
    %3 = vector.load %arg3[%c0_3, %c0_4] : memref<32x1xf32, #tpu.memory_space<vmem>>, vector<32x1xf32>
    %4 = vector.broadcast %3 : vector<32x1xf32> to vector<32x128xf32>
    %5 = arith.addf %2, %4 : vector<32x128xf32>
    %cst_5 = arith.constant 0.000000e+00 : f32
    %6 = vector.broadcast %cst_5 : f32 to vector<32x128xf32>
    %7 = arith.maximumf %5, %6 : vector<32x128xf32>
    %8 = arith.truncf %7 : vector<32x128xf32> to vector<32x128xbf16>
    %c0_6 = arith.constant 0 : index
    %c0_7 = arith.constant 0 : index
    %9 = vector.load %arg4[%c0_6, %c0_7] : memref<32x128xbf16, #tpu.memory_space<vmem>>, vector<32x128xbf16>
    tpu.vector_store %arg4[%c0_6, %c0_7], %8 {strides = array<i32>} : memref<32x128xbf16, #tpu.memory_space<vmem>>, vector<32x128xbf16>,
    return
  }
  func.func @transform_0(%arg0: i32) -> (i32, i32) {
    %c0_i32 = arith.constant 0 : i32
    %c0_i32_0 = arith.constant 0 : i32
    %c0_i32_1 = arith.constant 0 : i32
    return %c0_i32, %c0_i32_0 : i32, i32
  }
  func.func @transform_1(%arg0: i32) -> (i32, i32) {
    %c0_i32 = arith.constant 0 : i32
    %c0_i32_0 = arith.constant 0 : i32
    return %c0_i32, %arg0 : i32, i32
  }
  func.func @transform_2(%arg0: i32) -> (i32, i32) {
    %c0_i32 = arith.constant 0 : i32
    %c0_i32_0 = arith.constant 0 : i32
    %c0_i32_1 = arith.constant 0 : i32
    return %c0_i32, %c0_i32_0 : i32, i32
  }
  func.func @transform_3(%arg0: i32) -> (i32, i32) {
    %c0_i32 = arith.constant 0 : i32
    %c0_i32_0 = arith.constant 0 : i32
    return %c0_i32, %arg0 : i32, i32
  }
}

module attributes {stable_mosaic.version = 11 : i64} {
  func.func @_mm_t_kernel(%arg0: i32, %arg1: memref<32x288xbf16, #tpu.memory_space<vmem>>, %arg2: memref<288x128xbf16, #tpu.memory_space<vmem>>, %arg3: memref<32x1xf32, #tpu.memory_space<vmem>>, %arg4: memref<32x128xbf16, #tpu.memory_space<vmem>>) attributes {dimension_semantics = [#tpu.dimension_semantics<parallel>], iteration_bounds = array<i64: 1>, scalar_prefetch = 0 : i64, scratch_operands = 0 : i64, tpu.core_type = #tpu.core_type<tc>, window_params = [{pipeline_mode = #tpu.pipeline_mode<synchronous>, transform_indices = @transform_0, window_bounds = array<i64: 32, 288>}, {transform_indices = @transform_1, window_bounds = array<i64: 288, 128>}, {pipeline_mode = #tpu.pipeline_mode<synchronous>, transform_indices = @transform_2, window_bounds = array<i64: 32, 1>}, {transform_indices = @transform_3, window_bounds = array<i64: 32, 128>}]} {
    %c0 = arith.constant 0 : index
    %c0_0 = arith.constant 0 : index
    %0 = vector.load %arg1[%c0, %c0_0] : memref<32x288xbf16, #tpu.memory_space<vmem>>, vector<32x288xbf16>
    %c0_1 = arith.constant 0 : index
    %c0_2 = arith.constant 0 : index
    %1 = vector.load %arg2[%c0_1, %c0_2] : memref<288x128xbf16, #tpu.memory_space<vmem>>, vector<288x128xbf16>
    %cst = arith.constant dense<0.000000e+00> : vector<32x128xf32>
    %2 = tpu.matmul %0, %1, %cst {dimension_numbers = #tpu.dot_dimension_numbers<[1], [0], [0], [1], [0, 0, 1, 1], [], []>} : vector<32x288xbf16>, vector<288x128xbf16>, vector<32x128xf32> -> vector<32x128xf32>
    %c0_3 = arith.constant 0 : index
    %c0_4 = arith.constant 0 : index
    %3 = vector.load %arg3[%c0_3, %c0_4] : memref<32x1xf32, #tpu.memory_space<vmem>>, vector<32x1xf32>
    %4 = vector.broadcast %3 : vector<32x1xf32> to vector<32x128xf32>
    %5 = arith.addf %2, %4 : vector<32x128xf32>
    %cst_5 = arith.constant 0.000000e+00 : f32
    %6 = vector.broadcast %cst_5 : f32 to vector<32x128xf32>
    %7 = arith.maximumf %5, %6 : vector<32x128xf32>
    %8 = arith.truncf %7 : vector<32x128xf32> to vector<32x128xbf16>
    %c0_6 = arith.constant 0 : index
    %c0_7 = arith.constant 0 : index
    %9 = vector.load %arg4[%c0_6, %c0_7] : memref<32x128xbf16, #tpu.memory_space<vmem>>, vector<32x128xbf16>
    tpu.vector_store %arg4[%c0_6, %c0_7], %8 {strides = array<i32>} : memref<32x128xbf16, #tpu.memory_space<vmem>>, vector<32x128xbf16>,
    return
  }
  func.func @transform_0(%arg0: i32) -> (i32, i32) {
    %c0_i32 = arith.constant 0 : i32
    %c0_i32_0 = arith.constant 0 : i32
    %c0_i32_1 = arith.constant 0 : i32
    return %c0_i32, %c0_i32_0 : i32, i32
  }
  func.func @transform_1(%arg0: i32) -> (i32, i32) {
    %c0_i32 = arith.constant 0 : i32
    %c0_i32_0 = arith.constant 0 : i32
    return %c0_i32, %arg0 : i32, i32
  }
  func.func @transform_2(%arg0: i32) -> (i32, i32) {
    %c0_i32 = arith.constant 0 : i32
    %c0_i32_0 = arith.constant 0 : i32
    %c0_i32_1 = arith.constant 0 : i32
    return %c0_i32, %c0_i32_0 : i32, i32
  }
  func.func @transform_3(%arg0: i32) -> (i32, i32) {
    %c0_i32 = arith.constant 0 : i32
    %c0_i32_0 = arith.constant 0 : i32
    return %c0_i32, %arg0 : i32, i32
  }
}

module attributes {stable_mosaic.version = 11 : i64} {
  func.func @_mm_t_kernel(%arg0: i32, %arg1: memref<128x32xbf16, #tpu.memory_space<vmem>>, %arg2: memref<32x128xbf16, #tpu.memory_space<vmem>>, %arg3: memref<128x1xf32, #tpu.memory_space<vmem>>, %arg4: memref<128x128xbf16, #tpu.memory_space<vmem>>) attributes {dimension_semantics = [#tpu.dimension_semantics<parallel>], iteration_bounds = array<i64: 1>, scalar_prefetch = 0 : i64, scratch_operands = 0 : i64, tpu.core_type = #tpu.core_type<tc>, window_params = [{pipeline_mode = #tpu.pipeline_mode<synchronous>, transform_indices = @transform_0, window_bounds = array<i64: 128, 32>}, {transform_indices = @transform_1, window_bounds = array<i64: 32, 128>}, {pipeline_mode = #tpu.pipeline_mode<synchronous>, transform_indices = @transform_2, window_bounds = array<i64: 128, 1>}, {transform_indices = @transform_3, window_bounds = array<i64: 128, 128>}]} {
    %c0 = arith.constant 0 : index
    %c0_0 = arith.constant 0 : index
    %0 = vector.load %arg1[%c0, %c0_0] : memref<128x32xbf16, #tpu.memory_space<vmem>>, vector<128x32xbf16>
    %c0_1 = arith.constant 0 : index
    %c0_2 = arith.constant 0 : index
    %1 = vector.load %arg2[%c0_1, %c0_2] : memref<32x128xbf16, #tpu.memory_space<vmem>>, vector<32x128xbf16>
    %cst = arith.constant dense<0.000000e+00> : vector<128x128xf32>
    %2 = tpu.matmul %0, %1, %cst {dimension_numbers = #tpu.dot_dimension_numbers<[1], [0], [0], [1], [0, 0, 1, 1], [], []>} : vector<128x32xbf16>, vector<32x128xbf16>, vector<128x128xf32> -> vector<128x128xf32>
    %c0_3 = arith.constant 0 : index
    %c0_4 = arith.constant 0 : index
    %3 = vector.load %arg3[%c0_3, %c0_4] : memref<128x1xf32, #tpu.memory_space<vmem>>, vector<128x1xf32>
    %4 = vector.broadcast %3 : vector<128x1xf32> to vector<128x128xf32>
    %5 = arith.addf %2, %4 : vector<128x128xf32>
    %cst_5 = arith.constant 0.000000e+00 : f32
    %6 = vector.broadcast %cst_5 : f32 to vector<128x128xf32>
    %7 = arith.maximumf %5, %6 : vector<128x128xf32>
    %8 = arith.truncf %7 : vector<128x128xf32> to vector<128x128xbf16>
    %c0_6 = arith.constant 0 : index
    %c0_7 = arith.constant 0 : index
    %9 = vector.load %arg4[%c0_6, %c0_7] : memref<128x128xbf16, #tpu.memory_space<vmem>>, vector<128x128xbf16>
    tpu.vector_store %arg4[%c0_6, %c0_7], %8 {strides = array<i32>} : memref<128x128xbf16, #tpu.memory_space<vmem>>, vector<128x128xbf16>,
    return
  }
  func.func @transform_0(%arg0: i32) -> (i32, i32) {
    %c0_i32 = arith.constant 0 : i32
    %c0_i32_0 = arith.constant 0 : i32
    %c0_i32_1 = arith.constant 0 : i32
    return %c0_i32, %c0_i32_0 : i32, i32
  }
  func.func @transform_1(%arg0: i32) -> (i32, i32) {
    %c0_i32 = arith.constant 0 : i32
    %c0_i32_0 = arith.constant 0 : i32
    return %c0_i32, %arg0 : i32, i32
  }
  func.func @transform_2(%arg0: i32) -> (i32, i32) {
    %c0_i32 = arith.constant 0 : i32
    %c0_i32_0 = arith.constant 0 : i32
    %c0_i32_1 = arith.constant 0 : i32
    return %c0_i32, %c0_i32_0 : i32, i32
  }
  func.func @transform_3(%arg0: i32) -> (i32, i32) {
    %c0_i32 = arith.constant 0 : i32
    %c0_i32_0 = arith.constant 0 : i32
    return %c0_i32, %arg0 : i32, i32
  }
}

module attributes {stable_mosaic.version = 11 : i64} {
  func.func @_mm_t_kernel(%arg0: i32, %arg1: memref<32x16xbf16, #tpu.memory_space<vmem>>, %arg2: memref<16x256xbf16, #tpu.memory_space<vmem>>, %arg3: memref<32x1xf32, #tpu.memory_space<vmem>>, %arg4: memref<32x256xbf16, #tpu.memory_space<vmem>>) attributes {dimension_semantics = [#tpu.dimension_semantics<parallel>], iteration_bounds = array<i64: 1>, scalar_prefetch = 0 : i64, scratch_operands = 0 : i64, tpu.core_type = #tpu.core_type<tc>, window_params = [{pipeline_mode = #tpu.pipeline_mode<synchronous>, transform_indices = @transform_0, window_bounds = array<i64: 32, 16>}, {transform_indices = @transform_1, window_bounds = array<i64: 16, 256>}, {pipeline_mode = #tpu.pipeline_mode<synchronous>, transform_indices = @transform_2, window_bounds = array<i64: 32, 1>}, {transform_indices = @transform_3, window_bounds = array<i64: 32, 256>}]} {
    %c0 = arith.constant 0 : index
    %c0_0 = arith.constant 0 : index
    %0 = vector.load %arg1[%c0, %c0_0] : memref<32x16xbf16, #tpu.memory_space<vmem>>, vector<32x16xbf16>
    %c0_1 = arith.constant 0 : index
    %c0_2 = arith.constant 0 : index
    %1 = vector.load %arg2[%c0_1, %c0_2] : memref<16x256xbf16, #tpu.memory_space<vmem>>, vector<16x256xbf16>
    %cst = arith.constant dense<0.000000e+00> : vector<32x256xf32>
    %2 = tpu.matmul %0, %1, %cst {dimension_numbers = #tpu.dot_dimension_numbers<[1], [0], [0], [1], [0, 0, 1, 1], [], []>} : vector<32x16xbf16>, vector<16x256xbf16>, vector<32x256xf32> -> vector<32x256xf32>
    %c0_3 = arith.constant 0 : index
    %c0_4 = arith.constant 0 : index
    %3 = vector.load %arg3[%c0_3, %c0_4] : memref<32x1xf32, #tpu.memory_space<vmem>>, vector<32x1xf32>
    %4 = vector.broadcast %3 : vector<32x1xf32> to vector<32x256xf32>
    %5 = arith.addf %2, %4 : vector<32x256xf32>
    %cst_5 = arith.constant 0.000000e+00 : f32
    %6 = vector.broadcast %cst_5 : f32 to vector<32x256xf32>
    %7 = arith.maximumf %5, %6 : vector<32x256xf32>
    %8 = arith.truncf %7 : vector<32x256xf32> to vector<32x256xbf16>
    %c0_6 = arith.constant 0 : index
    %c0_7 = arith.constant 0 : index
    %9 = vector.load %arg4[%c0_6, %c0_7] : memref<32x256xbf16, #tpu.memory_space<vmem>>, vector<32x256xbf16>
    tpu.vector_store %arg4[%c0_6, %c0_7], %8 {strides = array<i32>} : memref<32x256xbf16, #tpu.memory_space<vmem>>, vector<32x256xbf16>,
    return
  }
  func.func @transform_0(%arg0: i32) -> (i32, i32) {
    %c0_i32 = arith.constant 0 : i32
    %c0_i32_0 = arith.constant 0 : i32
    %c0_i32_1 = arith.constant 0 : i32
    return %c0_i32, %c0_i32_0 : i32, i32
  }
  func.func @transform_1(%arg0: i32) -> (i32, i32) {
    %c0_i32 = arith.constant 0 : i32
    %c0_i32_0 = arith.constant 0 : i32
    return %c0_i32, %arg0 : i32, i32
  }
  func.func @transform_2(%arg0: i32) -> (i32, i32) {
    %c0_i32 = arith.constant 0 : i32
    %c0_i32_0 = arith.constant 0 : i32
    %c0_i32_1 = arith.constant 0 : i32
    return %c0_i32, %c0_i32_0 : i32, i32
  }
  func.func @transform_3(%arg0: i32) -> (i32, i32) {
    %c0_i32 = arith.constant 0 : i32
    %c0_i32_0 = arith.constant 0 : i32
    return %c0_i32, %arg0 : i32, i32
  }
}

module attributes {stable_mosaic.version = 11 : i64} {
  func.func @_head_mask_kernel(%arg0: i32, %arg1: memref<2x64xbf16, #tpu.memory_space<vmem>>, %arg2: memref<64x256xbf16, #tpu.memory_space<vmem>>, %arg3: memref<2x1xf32, #tpu.memory_space<vmem>>, %arg4: memref<1x256xf32, #tpu.memory_space<vmem>>) attributes {dimension_semantics = [#tpu.dimension_semantics<parallel>], iteration_bounds = array<i64: 1>, scalar_prefetch = 0 : i64, scratch_operands = 0 : i64, tpu.core_type = #tpu.core_type<tc>, window_params = [{pipeline_mode = #tpu.pipeline_mode<synchronous>, transform_indices = @transform_0, window_bounds = array<i64: 2, 64>}, {transform_indices = @transform_1, window_bounds = array<i64: 64, 256>}, {pipeline_mode = #tpu.pipeline_mode<synchronous>, transform_indices = @transform_2, window_bounds = array<i64: 2, 1>}, {transform_indices = @transform_3, window_bounds = array<i64: 1, 256>}]} {
    %c0 = arith.constant 0 : index
    %c0_0 = arith.constant 0 : index
    %0 = vector.load %arg1[%c0, %c0_0] : memref<2x64xbf16, #tpu.memory_space<vmem>>, vector<2x64xbf16>
    %c0_1 = arith.constant 0 : index
    %c0_2 = arith.constant 0 : index
    %1 = vector.load %arg2[%c0_1, %c0_2] : memref<64x256xbf16, #tpu.memory_space<vmem>>, vector<64x256xbf16>
    %cst = arith.constant dense<0.000000e+00> : vector<2x256xf32>
    %2 = tpu.matmul %0, %1, %cst {dimension_numbers = #tpu.dot_dimension_numbers<[1], [0], [0], [1], [0, 0, 1, 1], [], []>} : vector<2x64xbf16>, vector<64x256xbf16>, vector<2x256xf32> -> vector<2x256xf32>
    %c0_3 = arith.constant 0 : index
    %c0_4 = arith.constant 0 : index
    %3 = vector.load %arg3[%c0_3, %c0_4] : memref<2x1xf32, #tpu.memory_space<vmem>>, vector<2x1xf32>
    %4 = vector.broadcast %3 : vector<2x1xf32> to vector<2x256xf32>
    %5 = arith.addf %2, %4 : vector<2x256xf32>
    %cst_5 = arith.constant dense<0xFF800000> : vector<256xf32>
    %6 = vector.multi_reduction <maximumf>, %5, %cst_5 [0] : vector<2x256xf32> to vector<256xf32>
    %7 = vector.shape_cast %6 : vector<256xf32> to vector<1x256xf32>
    %cst_6 = arith.constant 0.000000e+00 : f32
    %8 = vector.broadcast %cst_6 : f32 to vector<1x256xf32>
    %9 = arith.cmpf ogt, %7, %8 : vector<1x256xf32>
    %cst_7 = arith.constant 1.000000e+00 : f32
    %cst_8 = arith.constant 0.000000e+00 : f32
    %10 = vector.broadcast %cst_7 : f32 to vector<1x256xf32>
    %11 = vector.broadcast %cst_8 : f32 to vector<1x256xf32>
    %12 = arith.select %9, %10, %11 : vector<1x256xi1>, vector<1x256xf32>
    %c0_9 = arith.constant 0 : index
    %c0_10 = arith.constant 0 : index
    %13 = vector.load %arg4[%c0_9, %c0_10] : memref<1x256xf32, #tpu.memory_space<vmem>>, vector<1x256xf32>
    tpu.vector_store %arg4[%c0_9, %c0_10], %12 {strides = array<i32>} : memref<1x256xf32, #tpu.memory_space<vmem>>, vector<1x256xf32>,
    return
  }
  func.func @transform_0(%arg0: i32) -> (i32, i32) {
    %c0_i32 = arith.constant 0 : i32
    %c0_i32_0 = arith.constant 0 : i32
    %c0_i32_1 = arith.constant 0 : i32
    return %c0_i32, %c0_i32_0 : i32, i32
  }
  func.func @transform_1(%arg0: i32) -> (i32, i32) {
    %c0_i32 = arith.constant 0 : i32
    %c0_i32_0 = arith.constant 0 : i32
    return %c0_i32, %arg0 : i32, i32
  }
  func.func @transform_2(%arg0: i32) -> (i32, i32) {
    %c0_i32 = arith.constant 0 : i32
    %c0_i32_0 = arith.constant 0 : i32
    %c0_i32_1 = arith.constant 0 : i32
    return %c0_i32, %c0_i32_0 : i32, i32
  }
  func.func @transform_3(%arg0: i32) -> (i32, i32) {
    %c0_i32 = arith.constant 0 : i32
    %c0_i32_0 = arith.constant 0 : i32
    return %c0_i32, %arg0 : i32, i32
  }
}

module attributes {stable_mosaic.version = 11 : i64} {
  func.func @_attn_fuse_kernel(%arg0: i32, %arg1: memref<64x2x128xbf16, #tpu.memory_space<vmem>>, %arg2: memref<2x128xf32, #tpu.memory_space<vmem>>, %arg3: memref<2x128xf32, #tpu.memory_space<vmem>>, %arg4: memref<64x128xbf16, #tpu.memory_space<vmem>>) attributes {dimension_semantics = [#tpu.dimension_semantics<parallel>], iteration_bounds = array<i64: 1>, scalar_prefetch = 0 : i64, scratch_operands = 0 : i64, tpu.core_type = #tpu.core_type<tc>, window_params = [{transform_indices = @transform_0, window_bounds = array<i64: 64, 2, 128>}, {transform_indices = @transform_1, window_bounds = array<i64: 2, 128>}, {transform_indices = @transform_2, window_bounds = array<i64: 2, 128>}, {transform_indices = @transform_3, window_bounds = array<i64: 64, 128>}]} {
    %c0 = arith.constant 0 : index
    %c0_0 = arith.constant 0 : index
    %c0_1 = arith.constant 0 : index
    %0 = vector.load %arg1[%c0, %c0_0, %c0_1] : memref<64x2x128xbf16, #tpu.memory_space<vmem>>, vector<64x2x128xbf16>
    %1 = arith.extf %0 : vector<64x2x128xbf16> to vector<64x2x128xf32>
    %c0_2 = arith.constant 0 : index
    %c0_3 = arith.constant 0 : index
    %2 = vector.load %arg2[%c0_2, %c0_3] : memref<2x128xf32, #tpu.memory_space<vmem>>, vector<2x128xf32>
    %3 = vector.shape_cast %2 : vector<2x128xf32> to vector<1x2x128xf32>
    %4 = vector.broadcast %3 : vector<1x2x128xf32> to vector<64x2x128xf32>
    %5 = arith.mulf %1, %4 : vector<64x2x128xf32>
    %6 = vector.extract_strided_slice %5 {offsets = [0, 0, 0], sizes = [64, 1, 128], strides = [1, 1, 1]} : vector<64x2x128xf32> to vector<64x1x128xf32>
    %7 = vector.shape_cast %6 : vector<64x1x128xf32> to vector<64x128xf32>
    %8 = vector.shape_cast %7 : vector<64x128xf32> to vector<64x1x128xf32>
    %9 = vector.broadcast %8 : vector<64x1x128xf32> to vector<64x2x128xf32>
    %10 = arith.mulf %9, %5 : vector<64x2x128xf32>
    %cst = arith.constant dense<0.000000e+00> : vector<2x128xf32>
    %11 = vector.multi_reduction <add>, %10, %cst [0] : vector<64x2x128xf32> to vector<2x128xf32>
    %cst_4 = arith.constant 1.250000e-01 : f32
    %12 = vector.broadcast %cst_4 : f32 to vector<2x128xf32>
    %13 = arith.mulf %11, %12 : vector<2x128xf32>
    %c0_5 = arith.constant 0 : index
    %c0_6 = arith.constant 0 : index
    %14 = vector.load %arg3[%c0_5, %c0_6] : memref<2x128xf32, #tpu.memory_space<vmem>>, vector<2x128xf32>
    %cst_7 = arith.constant 0.000000e+00 : f32
    %15 = vector.broadcast %cst_7 : f32 to vector<2x128xf32>
    %16 = arith.cmpf ogt, %14, %15 : vector<2x128xf32>
    %cst_8 = arith.constant -1.000000e+30 : f32
    %17 = vector.broadcast %cst_8 : f32 to vector<2x128xf32>
    %18 = arith.select %16, %13, %17 : vector<2x128xi1>, vector<2x128xf32>
    %cst_9 = arith.constant dense<0xFF800000> : vector<128xf32>
    %19 = vector.multi_reduction <maximumf>, %18, %cst_9 [0] : vector<2x128xf32> to vector<128xf32>
    %20 = vector.shape_cast %19 : vector<128xf32> to vector<1x128xf32>
    %21 = vector.broadcast %20 : vector<1x128xf32> to vector<2x128xf32>
    %22 = arith.subf %18, %21 : vector<2x128xf32>
    %23 = math.exp %22 : vector<2x128xf32>
    %cst_10 = arith.constant 0.000000e+00 : f32
    %24 = vector.broadcast %cst_10 : f32 to vector<2x128xf32>
    %25 = arith.select %16, %23, %24 : vector<2x128xi1>, vector<2x128xf32>
    %cst_11 = arith.constant dense<0.000000e+00> : vector<128xf32>
    %26 = vector.multi_reduction <add>, %25, %cst_11 [0] : vector<2x128xf32> to vector<128xf32>
    %27 = vector.shape_cast %26 : vector<128xf32> to vector<1x128xf32>
    %28 = tpu.reciprocal %27 {approx = true} : vector<1x128xf32> -> vector<1x128xf32>
    %29 = vector.broadcast %28 : vector<1x128xf32> to vector<2x128xf32>
    %30 = arith.mulf %25, %29 : vector<2x128xf32>
    %31 = vector.shape_cast %30 : vector<2x128xf32> to vector<1x2x128xf32>
    %32 = vector.broadcast %31 : vector<1x2x128xf32> to vector<64x2x128xf32>
    %33 = arith.mulf %32, %5 : vector<64x2x128xf32>
    %cst_12 = arith.constant dense<0.000000e+00> : vector<64x128xf32>
    %34 = vector.multi_reduction <add>, %33, %cst_12 [1] : vector<64x2x128xf32> to vector<64x128xf32>
    %35 = arith.truncf %34 : vector<64x128xf32> to vector<64x128xbf16>
    %c0_13 = arith.constant 0 : index
    %c0_14 = arith.constant 0 : index
    %36 = vector.load %arg4[%c0_13, %c0_14] : memref<64x128xbf16, #tpu.memory_space<vmem>>, vector<64x128xbf16>
    tpu.vector_store %arg4[%c0_13, %c0_14], %35 {strides = array<i32>} : memref<64x128xbf16, #tpu.memory_space<vmem>>, vector<64x128xbf16>,
    return
  }
  func.func @transform_0(%arg0: i32) -> (i32, i32, i32) {
    %c0_i32 = arith.constant 0 : i32
    %c0_i32_0 = arith.constant 0 : i32
    %c0_i32_1 = arith.constant 0 : i32
    return %c0_i32, %c0_i32_0, %arg0 : i32, i32, i32
  }
  func.func @transform_1(%arg0: i32) -> (i32, i32) {
    %c0_i32 = arith.constant 0 : i32
    %c0_i32_0 = arith.constant 0 : i32
    return %c0_i32, %arg0 : i32, i32
  }
  func.func @transform_2(%arg0: i32) -> (i32, i32) {
    %c0_i32 = arith.constant 0 : i32
    %c0_i32_0 = arith.constant 0 : i32
    return %c0_i32, %arg0 : i32, i32
  }
  func.func @transform_3(%arg0: i32) -> (i32, i32) {
    %c0_i32 = arith.constant 0 : i32
    %c0_i32_0 = arith.constant 0 : i32
    return %c0_i32, %arg0 : i32, i32
  }
}

module attributes {stable_mosaic.version = 11 : i64} {
  func.func @_mm_t_kernel(%arg0: i32, %arg1: memref<16x64xbf16, #tpu.memory_space<vmem>>, %arg2: memref<64x128xbf16, #tpu.memory_space<vmem>>, %arg3: memref<16x1xf32, #tpu.memory_space<vmem>>, %arg4: memref<16x128xf32, #tpu.memory_space<vmem>>) attributes {dimension_semantics = [#tpu.dimension_semantics<parallel>], iteration_bounds = array<i64: 1>, scalar_prefetch = 0 : i64, scratch_operands = 0 : i64, tpu.core_type = #tpu.core_type<tc>, window_params = [{pipeline_mode = #tpu.pipeline_mode<synchronous>, transform_indices = @transform_0, window_bounds = array<i64: 16, 64>}, {transform_indices = @transform_1, window_bounds = array<i64: 64, 128>}, {pipeline_mode = #tpu.pipeline_mode<synchronous>, transform_indices = @transform_2, window_bounds = array<i64: 16, 1>}, {transform_indices = @transform_3, window_bounds = array<i64: 16, 128>}]} {
    %c0 = arith.constant 0 : index
    %c0_0 = arith.constant 0 : index
    %0 = vector.load %arg1[%c0, %c0_0] : memref<16x64xbf16, #tpu.memory_space<vmem>>, vector<16x64xbf16>
    %c0_1 = arith.constant 0 : index
    %c0_2 = arith.constant 0 : index
    %1 = vector.load %arg2[%c0_1, %c0_2] : memref<64x128xbf16, #tpu.memory_space<vmem>>, vector<64x128xbf16>
    %cst = arith.constant dense<0.000000e+00> : vector<16x128xf32>
    %2 = tpu.matmul %0, %1, %cst {dimension_numbers = #tpu.dot_dimension_numbers<[1], [0], [0], [1], [0, 0, 1, 1], [], []>} : vector<16x64xbf16>, vector<64x128xbf16>, vector<16x128xf32> -> vector<16x128xf32>
    %c0_3 = arith.constant 0 : index
    %c0_4 = arith.constant 0 : index
    %3 = vector.load %arg3[%c0_3, %c0_4] : memref<16x1xf32, #tpu.memory_space<vmem>>, vector<16x1xf32>
    %4 = vector.broadcast %3 : vector<16x1xf32> to vector<16x128xf32>
    %5 = arith.addf %2, %4 : vector<16x128xf32>
    %c0_5 = arith.constant 0 : index
    %c0_6 = arith.constant 0 : index
    %6 = vector.load %arg4[%c0_5, %c0_6] : memref<16x128xf32, #tpu.memory_space<vmem>>, vector<16x128xf32>
    tpu.vector_store %arg4[%c0_5, %c0_6], %5 {strides = array<i32>} : memref<16x128xf32, #tpu.memory_space<vmem>>, vector<16x128xf32>,
    return
  }
  func.func @transform_0(%arg0: i32) -> (i32, i32) {
    %c0_i32 = arith.constant 0 : i32
    %c0_i32_0 = arith.constant 0 : i32
    %c0_i32_1 = arith.constant 0 : i32
    return %c0_i32, %c0_i32_0 : i32, i32
  }
  func.func @transform_1(%arg0: i32) -> (i32, i32) {
    %c0_i32 = arith.constant 0 : i32
    %c0_i32_0 = arith.constant 0 : i32
    return %c0_i32, %arg0 : i32, i32
  }
  func.func @transform_2(%arg0: i32) -> (i32, i32) {
    %c0_i32 = arith.constant 0 : i32
    %c0_i32_0 = arith.constant 0 : i32
    %c0_i32_1 = arith.constant 0 : i32
    return %c0_i32, %c0_i32_0 : i32, i32
  }
  func.func @transform_3(%arg0: i32) -> (i32, i32) {
    %c0_i32 = arith.constant 0 : i32
    %c0_i32_0 = arith.constant 0 : i32
    return %c0_i32, %arg0 : i32, i32
  }
}

</mosaic_0001>

<llo_original>
// kernel: fwd.10
$region0: #{fwd.10}
  #allocation0 [shape = 'u32[]', space=smem, size = 0x4, offset = 0x4, fixed_abs, tag = 'smem constant byte address 0x4 - core index']
  #allocation1 [shape = 'u32[144,128]{1,0:T(1,128)}', space=vmem, size = 0x12000, scoped, tag = 'internal scratch']
  %s0 = inlined_call_operand.hbm [shape: bf16[16,10], index: 0, kind: input, shape index: {}]
  %s1 = inlined_call_operand.vmem [shape: bf16[10,384], index: 1, kind: input, shape index: {}]
  %s2 = inlined_call_operand.hbm [shape: f32[16,1], index: 2, kind: input, shape index: {}]
  %s3 = inlined_call_operand.vmem [shape: bf16[16,384], index: 3, kind: output, shape index: {}]
  %s4 = sld [smem:[#allocation0]]
  $region30: #{fwd.10} parent=0
    _
  %s6 = ssub.s32 1, %s4
  %s7 = scalar_select 0, %s6, %s4
  $region1: #{fwd.10} parent=0
    #allocation2 [shape = 'u8[4096]{0}', space=vmem, size = 0x1000, scoped, tag = 'input window, operand 0, single buffered']
    #allocation3 [shape = 's32[1]{0}', space=sflag, size = 0x4, scoped, tag = 'scoped memory for fwd.10']
    #allocation4 [shape = 'u8[8192]{0}', space=vmem, size = 0x2000, scoped, tag = 'input window, operand 2, single buffered']
    #allocation5 [shape = 's32[1]{0}', space=sflag, size = 0x4, scoped, tag = 'scoped memory for fwd.10']
    %8 = vsyncpa [#allocation3], 0
    %9 = vsyncpa [#allocation5], 0
    // Predicated region
    $region2: #{fwd.10} parent=1 // pred_check
      _
    $region3: #{fwd.10} parent=1 // pred_check_branch
      %11 = sbr.rel (0) target = $region5
    $region4: #{fwd.10} parent=1 // pred_region
      %s13 = ssub.s32 128, 128
      %14 = vsyncadd [#allocation3], %s13
      %s15 = sshll.u32 [#allocation2], 4
      %s16 = int_to_ptr.vmem [resolvable:$true] %s15
      %21 = dma.hbm_to_vmem [thread:$0]  %s0, 128, %s16, [#allocation3], 64, 64, 4
    $region5: #{fwd.10} parent=1 // pred_fallthru
      _
    // Predicated region
    $region6: #{fwd.10} parent=1 // pred_check
      _
    $region7: #{fwd.10} parent=1 // pred_check_branch
      %23 = sbr.rel (0) target = $region9
    $region8: #{fwd.10} parent=1 // pred_region
      _
    $region9: #{fwd.10} parent=1 // pred_fallthru
      _
    // Predicated region
    $region10: #{fwd.10} parent=1 // pred_check
      _
    $region11: #{fwd.10} parent=1 // pred_check_branch
      %25 = sbr.rel (0) target = $region13
    $region12: #{fwd.10} parent=1 // pred_region
      %s27 = ssub.s32 256, 256
      %28 = vsyncadd [#allocation5], %s27
      %s29 = sshll.u32 [#allocation4], 4
      %s30 = int_to_ptr.vmem [resolvable:$true] %s29
      %35 = dma.hbm_to_vmem [thread:$0]  %s2, 256, %s30, [#allocation5], 128, 128, 8
    $region13: #{fwd.10} parent=1 // pred_fallthru
      _
    // Predicated region
    $region14: #{fwd.10} parent=1 // pred_check
      _
    $region15: #{fwd.10} parent=1 // pred_check_branch
      %37 = sbr.rel (0) target = $region17
    $region16: #{fwd.10} parent=1 // pred_region
      %38 = dma.done [#allocation3], 128
    $region17: #{fwd.10} parent=1 // pred_fallthru
      _
    // Predicated region
    $region18: #{fwd.10} parent=1 // pred_check
      _
    $region19: #{fwd.10} parent=1 // pred_check_branch
      %40 = sbr.rel (0) target = $region21
    $region20: #{fwd.10} parent=1 // pred_region
      %41 = dma.done [#allocation5], 256
    $region21: #{fwd.10} parent=1 // pred_fallthru
      _
    %v43 = vld [vmem:[#allocation2] sm:$0xf]
    %v44 = vld [vmem:[#allocation2 + $0x4] sm:$0xf]
    %v45 = vld [vmem:[%s1] sm:$0xff]
    %v46 = vld [vmem:[%s1 + $0x8] sm:$0xf]
    %v47 = vld [vmem:[%s1 + $0xc] sm:$0x11]
    %v48 = vld [vmem:[%s1 + $0x14] sm:$0x1]
    %v49 = vld [vmem:[#allocation4] sm:$0xff]
    %v50 = vld [vmem:[#allocation4 + $0x8] sm:$0xff]
    %52 = vset.pattern.permute.xlu0 0
    %53 = vperm.xlu0 %52, %v49
    %v54 = vpop.permute.xlu0 %53
    %57 = vset.pattern.permute.xlu0 0
    %58 = vperm.xlu0 %57, %v50
    %v59 = vpop.permute.xlu0 %58
    %v63 = vunpack.c.l.b16 %v43
    %v64 = vunpack.c.l.b16 %v44
    %v65 = vpack.c.b16 %v64, %v63
    %v70 = vunpack.c.l.b16 %v45
    %v71 = vunpack.c.h.b16 %v45
    %v72 = vunpack.c.l.b16 %v46
    %v73 = vunpack.c.l.b16 %v47
    %v74 = vunpack.c.h.b16 %v47
    %v75 = vunpack.c.l.b16 %v48
    %v76 = vpack.c.b16 %v73, %v70
    %v77 = vpack.c.b16 %v74, %v71
    %v78 = vpack.c.b16 %v75, %v72
    %vm79 = vcmask 80896
    %v81 = vsel %vm79, %v65, 0
    %vm83 = vcmask 1044480
    %v85 = vsel %vm83, %v76, 0
    %v88 = vsel %vm83, %v77, 0
    %v91 = vsel %vm83, %v78, 0
    %93 = vmatprep.subr.bf16.mxu0 %v88
    %94 = vmatpush1.bf16.msra.mxu0 %v85
    %95 = vmatprep.subr.bf16.mxu0 0
    %96 = vmatpush1.bf16.msra.mxu0 0
    %97 = vmatprep.subr.bf16.mxu0 0
    %98 = vmatpush1.bf16.msra.mxu0 0
    %99 = vmatprep.subr.bf16.mxu0 0
    %100 = vmatpush1.bf16.msra.mxu0 0
    %101 = vmatprep.subr.bf16.mxu0 0
    %102 = vmatpush1.bf16.msra.mxu0 0
    %103 = vmatprep.subr.bf16.mxu0 0
    %104 = vmatpush1.bf16.msra.mxu0 0
    %105 = vmatprep.subr.bf16.mxu0 0
    %106 = vmatpush1.bf16.msra.mxu0 0
    %107 = vmatprep.subr.bf16.mxu0 0
    %108 = vmatpush1.bf16.msra.mxu0 0
    %109 = vmatprep.subr.bf16.mxu0 0
    %110 = vmatpush1.bf16.msra.mxu0 0
    %111 = vmatprep.subr.bf16.mxu0 0
    %112 = vmatpush1.bf16.msra.mxu0 0
    %113 = vmatprep.subr.bf16.mxu0 0
    %114 = vmatpush1.bf16.msra.mxu0 0
    %115 = vmatprep.subr.bf16.mxu0 0
    %116 = vmatpush1.bf16.msra.mxu0 0
    %117 = vmatprep.subr.bf16.mxu0 0
    %118 = vmatpush1.bf16.msra.mxu0 0
    %119 = vmatprep.subr.bf16.mxu0 0
    %120 = vmatpush1.bf16.msra.mxu0 0
    %121 = vmatprep.subr.bf16.mxu0 0
    %122 = vmatpush1.bf16.msra.mxu0 0
    %123 = vmatprep.subr.bf16.mxu0 0
    %124 = vmatpush1.bf16.msra.mxu0 0
    %125 = vmatprep.mubr.bf16.mxu0 0
    %126 = vmatmul.mubr.bf16.gmra.mrb[0].mxu0 %v81
    %v127 = vpop.f32.mrb[0].mxu0
    %v128 = vadd.f32 %v54, %v127
    %v129 = vpop.f32.mrb[0].mxu0
    %v130 = vadd.f32 %v54, %v129
    %v131 = vpop.f32.mrb[0].mxu0
    %v132 = vadd.f32 %v59, %v131
    %v133 = vpop.f32.mrb[0].mxu0
    %v134 = vadd.f32 %v59, %v133
    %135 = vdwg.mxu0
    %136 = vmatprep.subr.bf16.mxu0 0
    %137 = vmatpush1.bf16.msra.mxu0 %v91
    %138 = vmatprep.subr.bf16.mxu0 0
    %139 = vmatpush1.bf16.msra.mxu0 0
    %140 = vmatprep.subr.bf16.mxu0 0
    %141 = vmatpush1.bf16.msra.mxu0 0
    %142 = vmatprep.subr.bf16.mxu0 0
    %143 = vmatpush1.bf16.msra.mxu0 0
    %144 = vmatprep.subr.bf16.mxu0 0
    %145 = vmatpush1.bf16.msra.mxu0 0
    %146 = vmatprep.subr.bf16.mxu0 0
    %147 = vmatpush1.bf16.msra.mxu0 0
    %148 = vmatprep.subr.bf16.mxu0 0
    %149 = vmatpush1.bf16.msra.mxu0 0
    %150 = vmatprep.subr.bf16.mxu0 0
    %151 = vmatpush1.bf16.msra.mxu0 0
    %152 = vmatprep.subr.bf16.mxu0 0
    %153 = vmatpush1.bf16.msra.mxu0 0
    %154 = vmatprep.subr.bf16.mxu0 0
    %155 = vmatpush1.bf16.msra.mxu0 0
    %156 = vmatprep.subr.bf16.mxu0 0
    %157 = vmatpush1.bf16.msra.mxu0 0
    %158 = vmatprep.subr.bf16.mxu0 0
    %159 = vmatpush1.bf16.msra.mxu0 0
    %160 = vmatprep.subr.bf16.mxu0 0
    %161 = vmatpush1.bf16.msra.mxu0 0
    %162 = vmatprep.subr.bf16.mxu0 0
    %163 = vmatpush1.bf16.msra.mxu0 0
    %164 = vmatprep.subr.bf16.mxu0 0
    %165 = vmatpush1.bf16.msra.mxu0 0
    %166 = vmatprep.subr.bf16.mxu0 0
    %167 = vmatpush1.bf16.msra.mxu0 0
    %168 = vmatprep.mubr.bf16.mxu0 0
    %169 = vmatmul.mubr.bf16.gmra.mrb[0].mxu0 %v81
    %v170 = vpop.f32.mrb[0].mxu0
    %v171 = vadd.f32 %v54, %v170
    %v172 = vpop.f32.mrb[0].mxu0
    %v173 = vpop.f32.mrb[0].mxu0
    %v174 = vadd.f32 %v59, %v173
    %v175 = vpop.f32.mrb[0].mxu0
    %176 = vdwg.mxu0
    %v177 = vmax.f32 %v128, 0.0
    %v178 = vmax.f32 %v130, 0.0
    %v179 = vmax.f32 %v171, 0.0
    %v180 = vmax.f32 %v132, 0.0
    %v181 = vmax.f32 %v134, 0.0
    %v182 = vmax.f32 %v174, 0.0
    %v183 = vpack.c.bf16 %v180, %v177
    %v184 = vpack.c.bf16 %v181, %v178
    %v185 = vpack.c.bf16 %v182, %v179
    %v189 = vunpack.c.l.b16 %v183
    %v190 = vunpack.c.l.b16 %v184
    %v191 = vunpack.c.l.b16 %v185
    %v192 = vunpack.c.h.b16 %v183
    %v193 = vunpack.c.h.b16 %v184
    %v194 = vunpack.c.h.b16 %v185
    %v195 = vpack.c.b16 %v190, %v189
    %v196 = vpack.c.b16 %v191, %v191
    %v197 = vpack.c.b16 %v193, %v192
    %v198 = vpack.c.b16 %v194, %v194
    %203 = vst [vmem:[%s3] sm:$0xff] %v195
    %204 = vst [vmem:[%s3 + $0x8] sm:$0xf] %v196
    %205 = vst [vmem:[%s3 + $0xc] sm:$0xff] %v197
    %206 = vst [vmem:[%s3 + $0x14] sm:$0xf] %v198
    // Predicated region
    $region22: #{fwd.10} parent=1 // pred_check
      _
    $region23: #{fwd.10} parent=1 // pred_check_branch
      %208 = sbr.rel (0) target = $region25
    $region24: #{fwd.10} parent=1 // pred_region
      _
    $region25: #{fwd.10} parent=1 // pred_fallthru
      _
    // Predicated region
    $region26: #{fwd.10} parent=1 // pred_check
      _
    $region27: #{fwd.10} parent=1 // pred_check_branch
      %210 = sbr.rel (0) target = $region29
    $region28: #{fwd.10} parent=1 // pred_region
      _
    $region29: #{fwd.10} parent=1 // pred_fallthru
      _
    %211 = vsyncpa [#allocation3], 1
    %212 = vsyncpa [#allocation5], 1

// kernel: fwd.11
$region0: #{fwd.11}
  #allocation0 [shape = 'u32[]', space=smem, size = 0x4, offset = 0x4, fixed_abs, tag = 'smem constant byte address 0x4 - core index']
  #allocation1 [shape = 'u32[144,128]{1,0:T(1,128)}', space=vmem, size = 0x12000, scoped, tag = 'internal scratch']
  %s0 = inlined_call_operand.vmem [shape: bf16[16,144], index: 0, kind: input, shape index: {}]
  %s1 = inlined_call_operand.vmem [shape: bf16[144,256], index: 1, kind: input, shape index: {}]
  %s2 = inlined_call_operand.vmem [shape: f32[16,1], index: 2, kind: input, shape index: {}]
  %s3 = inlined_call_operand.vmem [shape: bf16[16,256], index: 3, kind: output, shape index: {}]
  %s4 = sld [smem:[#allocation0]]
  $region22: #{fwd.11} parent=0
    _
  %s6 = ssub.s32 1, %s4
  %s7 = scalar_select 0, %s6, %s4
  // Predicated region
  $region2: #{fwd.11} parent=0 // pred_check
    _
  $region3: #{fwd.11} parent=0 // pred_check_branch
    %9 = sbr.rel (0) target = $region5
  $region4: #{fwd.11} parent=0 // pred_region
    _
  $region5: #{fwd.11} parent=0 // pred_fallthru
    _
  // Predicated region
  $region6: #{fwd.11} parent=0 // pred_check
    _
  $region7: #{fwd.11} parent=0 // pred_check_branch
    %11 = sbr.rel (0) target = $region9
  $region8: #{fwd.11} parent=0 // pred_region
    _
  $region9: #{fwd.11} parent=0 // pred_fallthru
    _
  // Predicated region
  $region10: #{fwd.11} parent=0 // pred_check
    _
  $region11: #{fwd.11} parent=0 // pred_check_branch
    %13 = sbr.rel (0) target = $region13
  $region12: #{fwd.11} parent=0 // pred_region
    _
  $region13: #{fwd.11} parent=0 // pred_fallthru
    _
  %v15 = vld [vmem:[%s0] sm:$0xff]
  %v16 = vld [vmem:[%s0 + $0x8] sm:$0xff]
  %v17 = vld [vmem:[%s1] sm:$0xff]
  %v18 = vld [vmem:[%s1 + $0x8] sm:$0xff]
  %v19 = vld [vmem:[%s1 + $0x10] sm:$0xff]
  %v20 = vld [vmem:[%s1 + $0x18] sm:$0xff]
  %v21 = vld [vmem:[%s1 + $0x20] sm:$0xff]
  %v22 = vld [vmem:[%s1 + $0x28] sm:$0xff]
  %v23 = vld [vmem:[%s1 + $0x30] sm:$0xff]
  %v24 = vld [vmem:[%s1 + $0x38] sm:$0xff]
  %v25 = vld [vmem:[%s1 + $0x40] sm:$0xff]
  %v26 = vld [vmem:[%s1 + $0x48] sm:$0xff]
  %v27 = vld [vmem:[%s1 + $0x50] sm:$0xff]
  %v28 = vld [vmem:[%s1 + $0x58] sm:$0xff]
  %v29 = vld [vmem:[%s1 + $0x60] sm:$0xff]
  %v30 = vld [vmem:[%s1 + $0x68] sm:$0xff]
  %v31 = vld [vmem:[%s1 + $0x70] sm:$0xff]
  %v32 = vld [vmem:[%s1 + $0x78] sm:$0xff]
  %v33 = vld [vmem:[%s1 + $0x80] sm:$0xff]
  %v34 = vld [vmem:[%s1 + $0x88] sm:$0xff]
  %v35 = vld [vmem:[%s2] sm:$0xff]
  %v36 = vld [vmem:[%s2 + $0x8] sm:$0xff]
  %38 = vset.pattern.permute.xlu0 0
  %39 = vperm.xlu0 %38, %v35
  %v40 = vpop.permute.xlu0 %39
  %43 = vset.pattern.permute.xlu0 0
  %44 = vperm.xlu0 %43, %v36
  %v45 = vpop.permute.xlu0 %44
  %v49 = vunpack.c.l.b16 %v15
  %v50 = vunpack.c.h.b16 %v15
  %v51 = vunpack.c.l.b16 %v16
  %v52 = vunpack.c.h.b16 %v16
  %v53 = vpack.c.b16 %v51, %v49
  %v54 = vpack.c.b16 %v52, %v50
  %v74 = vunpack.c.l.b16 %v17
  %v75 = vunpack.c.h.b16 %v17
  %v76 = vunpack.c.l.b16 %v18
  %v77 = vunpack.c.h.b16 %v18
  %v78 = vunpack.c.l.b16 %v19
  %v79 = vunpack.c.h.b16 %v19
  %v80 = vunpack.c.l.b16 %v20
  %v81 = vunpack.c.h.b16 %v20
  %v82 = vunpack.c.l.b16 %v21
  %v83 = vunpack.c.h.b16 %v21
  %v84 = vunpack.c.l.b16 %v22
  %v85 = vunpack.c.h.b16 %v22
  %v86 = vunpack.c.l.b16 %v23
  %v87 = vunpack.c.h.b16 %v23
  %v88 = vunpack.c.l.b16 %v24
  %v89 = vunpack.c.h.b16 %v24
  %v90 = vunpack.c.l.b16 %v25
  %v91 = vunpack.c.h.b16 %v25
  %v92 = vunpack.c.l.b16 %v26
  %v93 = vunpack.c.h.b16 %v26
  %v94 = vunpack.c.l.b16 %v27
  %v95 = vunpack.c.h.b16 %v27
  %v96 = vunpack.c.l.b16 %v28
  %v97 = vunpack.c.h.b16 %v28
  %v98 = vunpack.c.l.b16 %v29
  %v99 = vunpack.c.h.b16 %v29
  %v100 = vunpack.c.l.b16 %v30
  %v101 = vunpack.c.h.b16 %v30
  %v102 = vunpack.c.l.b16 %v31
  %v103 = vunpack.c.h.b16 %v31
  %v104 = vunpack.c.l.b16 %v32
  %v105 = vunpack.c.h.b16 %v32
  %v106 = vunpack.c.l.b16 %v33
  %v107 = vunpack.c.h.b16 %v33
  %v108 = vunpack.c.l.b16 %v34
  %v109 = vunpack.c.h.b16 %v34
  %v110 = vpack.c.b16 %v76, %v74
  %v111 = vpack.c.b16 %v77, %v75
  %v112 = vpack.c.b16 %v80, %v78
  %v113 = vpack.c.b16 %v81, %v79
  %v114 = vpack.c.b16 %v84, %v82
  %v115 = vpack.c.b16 %v85, %v83
  %v116 = vpack.c.b16 %v88, %v86
  %v117 = vpack.c.b16 %v89, %v87
  %v118 = vpack.c.b16 %v92, %v90
  %v119 = vpack.c.b16 %v93, %v91
  %v120 = vpack.c.b16 %v96, %v94
  %v121 = vpack.c.b16 %v97, %v95
  %v122 = vpack.c.b16 %v100, %v98
  %v123 = vpack.c.b16 %v101, %v99
  %v124 = vpack.c.b16 %v104, %v102
  %v125 = vpack.c.b16 %v105, %v103
  %v126 = vpack.c.b16 %v108, %v106
  %v127 = vpack.c.b16 %v109, %v107
  %vm146 = vcmask 130048
  %v148 = vsel %vm146, %v54, 0
  %150 = vmatprep.subr.bf16.mxu0 %v111
  %151 = vmatpush1.bf16.msra.mxu0 %v110
  %152 = vmatprep.subr.bf16.mxu0 %v113
  %153 = vmatpush1.bf16.msra.mxu0 %v112
  %154 = vmatprep.subr.bf16.mxu0 %v115
  %155 = vmatpush1.bf16.msra.mxu0 %v114
  %156 = vmatprep.subr.bf16.mxu0 %v117
  %157 = vmatpush1.bf16.msra.mxu0 %v116
  %158 = vmatprep.subr.bf16.mxu0 %v119
  %159 = vmatpush1.bf16.msra.mxu0 %v118
  %160 = vmatprep.subr.bf16.mxu0 %v121
  %161 = vmatpush1.bf16.msra.mxu0 %v120
  %162 = vmatprep.subr.bf16.mxu0 %v123
  %163 = vmatpush1.bf16.msra.mxu0 %v122
  %164 = vmatprep.subr.bf16.mxu0 %v125
  %165 = vmatpush1.bf16.msra.mxu0 %v124
  %166 = vmatprep.subr.bf16.mxu0 %v127
  %167 = vmatpush1.bf16.msra.mxu0 %v126
  %168 = vmatprep.subr.bf16.mxu0 0
  %169 = vmatpush1.bf16.msra.mxu0 0
  %170 = vmatprep.subr.bf16.mxu0 0
  %171 = vmatpush1.bf16.msra.mxu0 0
  %172 = vmatprep.subr.bf16.mxu0 0
  %173 = vmatpush1.bf16.msra.mxu0 0
  %174 = vmatprep.subr.bf16.mxu0 0
  %175 = vmatpush1.bf16.msra.mxu0 0
  %176 = vmatprep.subr.bf16.mxu0 0
  %177 = vmatpush1.bf16.msra.mxu0 0
  %178 = vmatprep.subr.bf16.mxu0 0
  %179 = vmatpush1.bf16.msra.mxu0 0
  %180 = vmatprep.subr.bf16.mxu0 0
  %181 = vmatpush1.bf16.msra.mxu0 0
  %182 = vmatprep.mubr.bf16.mxu0 %v148
  %183 = vmatmul.mubr.bf16.gmra.mrb[0].mxu0 %v53
  %v184 = vpop.f32.mrb[0].mxu0
  %v185 = vadd.f32 %v40, %v184
  %v186 = vpop.f32.mrb[0].mxu0
  %v187 = vadd.f32 %v40, %v186
  %v188 = vpop.f32.mrb[0].mxu0
  %v189 = vadd.f32 %v45, %v188
  %v190 = vpop.f32.mrb[0].mxu0
  %v191 = vadd.f32 %v45, %v190
  %192 = vdwg.mxu0
  %v193 = vmax.f32 %v185, 0.0
  %v194 = vmax.f32 %v187, 0.0
  %v195 = vmax.f32 %v189, 0.0
  %v196 = vmax.f32 %v191, 0.0
  %v197 = vpack.c.bf16 %v195, %v193
  %v198 = vpack.c.bf16 %v196, %v194
  %v201 = vunpack.c.l.b16 %v197
  %v202 = vunpack.c.l.b16 %v198
  %v203 = vunpack.c.h.b16 %v197
  %v204 = vunpack.c.h.b16 %v198
  %v205 = vpack.c.b16 %v202, %v201
  %v206 = vpack.c.b16 %v204, %v203
  %209 = vst [vmem:[%s3] sm:$0xff] %v205
  %210 = vst [vmem:[%s3 + $0x8] sm:$0xff] %v206
  // Predicated region
  $region14: #{fwd.11} parent=0 // pred_check
    _
  $region15: #{fwd.11} parent=0 // pred_check_branch
    %212 = sbr.rel (0) target = $region17
  $region16: #{fwd.11} parent=0 // pred_region
    _
  $region17: #{fwd.11} parent=0 // pred_fallthru
    _
  // Predicated region
  $region18: #{fwd.11} parent=0 // pred_check
    _
  $region19: #{fwd.11} parent=0 // pred_check_branch
    %214 = sbr.rel (0) target = $region21
  $region20: #{fwd.11} parent=0 // pred_region
    _
  $region21: #{fwd.11} parent=0 // pred_fallthru
    _

// kernel: fwd.14
$region0: #{fwd.14}
  #allocation0 [shape = 'u32[]', space=smem, size = 0x4, offset = 0x4, fixed_abs, tag = 'smem constant byte address 0x4 - core index']
  #allocation1 [shape = 'u32[144,128]{1,0:T(1,128)}', space=vmem, size = 0x12000, scoped, tag = 'internal scratch']
  %s0 = inlined_call_operand.vmem [shape: bf16[32,144], index: 0, kind: input, shape index: {}]
  %s1 = inlined_call_operand.vmem [shape: bf16[144,128], index: 1, kind: input, shape index: {}]
  %s2 = inlined_call_operand.vmem [shape: f32[32,1], index: 2, kind: input, shape index: {}]
  %s3 = inlined_call_operand.vmem [shape: bf16[32,128], index: 3, kind: output, shape index: {}]
  %s4 = sld [smem:[#allocation0]]
  $region22: #{fwd.14} parent=0
    _
  %s6 = ssub.s32 1, %s4
  %s7 = scalar_select 0, %s6, %s4
  // Predicated region
  $region2: #{fwd.14} parent=0 // pred_check
    _
  $region3: #{fwd.14} parent=0 // pred_check_branch
    %9 = sbr.rel (0) target = $region5
  $region4: #{fwd.14} parent=0 // pred_region
    _
  $region5: #{fwd.14} parent=0 // pred_fallthru
    _
  // Predicated region
  $region6: #{fwd.14} parent=0 // pred_check
    _
  $region7: #{fwd.14} parent=0 // pred_check_branch
    %11 = sbr.rel (0) target = $region9
  $region8: #{fwd.14} parent=0 // pred_region
    _
  $region9: #{fwd.14} parent=0 // pred_fallthru
    _
  // Predicated region
  $region10: #{fwd.14} parent=0 // pred_check
    _
  $region11: #{fwd.14} parent=0 // pred_check_branch
    %13 = sbr.rel (0) target = $region13
  $region12: #{fwd.14} parent=0 // pred_region
    _
  $region13: #{fwd.14} parent=0 // pred_fallthru
    _
  %v15 = vld [vmem:[%s0] sm:$0xff]
  %v16 = vld [vmem:[%s0 + $0x8] sm:$0xff]
  %v17 = vld [vmem:[%s0 + $0x10] sm:$0xff]
  %v18 = vld [vmem:[%s0 + $0x18] sm:$0xff]
  %v19 = vld [vmem:[%s1] sm:$0xf]
  %v20 = vld [vmem:[%s1 + $0x4] sm:$0xf]
  %v21 = vld [vmem:[%s1 + $0x8] sm:$0xf]
  %v22 = vld [vmem:[%s1 + $0xc] sm:$0xf]
  %v23 = vld [vmem:[%s1 + $0x10] sm:$0xf]
  %v24 = vld [vmem:[%s1 + $0x14] sm:$0xf]
  %v25 = vld [vmem:[%s1 + $0x18] sm:$0xf]
  %v26 = vld [vmem:[%s1 + $0x1c] sm:$0xf]
  %v27 = vld [vmem:[%s1 + $0x20] sm:$0xf]
  %v28 = vld [vmem:[%s1 + $0x24] sm:$0xf]
  %v29 = vld [vmem:[%s1 + $0x28] sm:$0xf]
  %v30 = vld [vmem:[%s1 + $0x2c] sm:$0xf]
  %v31 = vld [vmem:[%s1 + $0x30] sm:$0xf]
  %v32 = vld [vmem:[%s1 + $0x34] sm:$0xf]
  %v33 = vld [vmem:[%s1 + $0x38] sm:$0xf]
  %v34 = vld [vmem:[%s1 + $0x3c] sm:$0xf]
  %v35 = vld [vmem:[%s1 + $0x40] sm:$0xf]
  %v36 = vld [vmem:[%s1 + $0x44] sm:$0xf]
  %v37 = vld [vmem:[%s2] sm:$0xff]
  %v38 = vld [vmem:[%s2 + $0x8] sm:$0xff]
  %v39 = vld [vmem:[%s2 + $0x10] sm:$0xff]
  %v40 = vld [vmem:[%s2 + $0x18] sm:$0xff]
  %42 = vset.pattern.permute.xlu0 0
  %43 = vperm.xlu0 %42, %v37
  %v44 = vpop.permute.xlu0 %43
  %47 = vset.pattern.permute.xlu0 0
  %48 = vperm.xlu0 %47, %v38
  %v49 = vpop.permute.xlu0 %48
  %52 = vset.pattern.permute.xlu0 0
  %53 = vperm.xlu0 %52, %v39
  %v54 = vpop.permute.xlu0 %53
  %57 = vset.pattern.permute.xlu0 0
  %58 = vperm.xlu0 %57, %v40
  %v59 = vpop.permute.xlu0 %58
  %v65 = vunpack.c.l.b16 %v15
  %v66 = vunpack.c.h.b16 %v15
  %v67 = vunpack.c.l.b16 %v16
  %v68 = vunpack.c.h.b16 %v16
  %v69 = vunpack.c.l.b16 %v17
  %v70 = vunpack.c.h.b16 %v17
  %v71 = vunpack.c.l.b16 %v18
  %v72 = vunpack.c.h.b16 %v18
  %v73 = vpack.c.b16 %v67, %v65
  %v74 = vpack.c.b16 %v68, %v66
  %v75 = vpack.c.b16 %v71, %v69
  %v76 = vpack.c.b16 %v72, %v70
  %v97 = vunpack.c.l.b16 %v19
  %v98 = vunpack.c.l.b16 %v20
  %v99 = vunpack.c.l.b16 %v21
  %v100 = vunpack.c.l.b16 %v22
  %v101 = vunpack.c.l.b16 %v23
  %v102 = vunpack.c.l.b16 %v24
  %v103 = vunpack.c.l.b16 %v25
  %v104 = vunpack.c.l.b16 %v26
  %v105 = vunpack.c.l.b16 %v27
  %v106 = vunpack.c.l.b16 %v28
  %v107 = vunpack.c.l.b16 %v29
  %v108 = vunpack.c.l.b16 %v30
  %v109 = vunpack.c.l.b16 %v31
  %v110 = vunpack.c.l.b16 %v32
  %v111 = vunpack.c.l.b16 %v33
  %v112 = vunpack.c.l.b16 %v34
  %v113 = vunpack.c.l.b16 %v35
  %v114 = vunpack.c.l.b16 %v36
  %v115 = vpack.c.b16 %v98, %v97
  %v116 = vpack.c.b16 %v100, %v99
  %v117 = vpack.c.b16 %v102, %v101
  %v118 = vpack.c.b16 %v104, %v103
  %v119 = vpack.c.b16 %v106, %v105
  %v120 = vpack.c.b16 %v108, %v107
  %v121 = vpack.c.b16 %v110, %v109
  %v122 = vpack.c.b16 %v112, %v111
  %v123 = vpack.c.b16 %v114, %v113
  %vm133 = vcmask 130048
  %v135 = vsel %vm133, %v74, 0
  %v138 = vsel %vm133, %v76, 0
  %140 = vmatprep.subr.bf16.mxu0 0
  %141 = vmatpush1.bf16.msra.mxu0 %v115
  %142 = vmatprep.subr.bf16.mxu0 0
  %143 = vmatpush1.bf16.msra.mxu0 %v116
  %144 = vmatprep.subr.bf16.mxu0 0
  %145 = vmatpush1.bf16.msra.mxu0 %v117
  %146 = vmatprep.subr.bf16.mxu0 0
  %147 = vmatpush1.bf16.msra.mxu0 %v118
  %148 = vmatprep.subr.bf16.mxu0 0
  %149 = vmatpush1.bf16.msra.mxu0 %v119
  %150 = vmatprep.subr.bf16.mxu0 0
  %151 = vmatpush1.bf16.msra.mxu0 %v120
  %152 = vmatprep.subr.bf16.mxu0 0
  %153 = vmatpush1.bf16.msra.mxu0 %v121
  %154 = vmatprep.subr.bf16.mxu0 0
  %155 = vmatpush1.bf16.msra.mxu0 %v122
  %156 = vmatprep.subr.bf16.mxu0 0
  %157 = vmatpush1.bf16.msra.mxu0 %v123
  %158 = vmatprep.subr.bf16.mxu0 0
  %159 = vmatpush1.bf16.msra.mxu0 0
  %160 = vmatprep.subr.bf16.mxu0 0
  %161 = vmatpush1.bf16.msra.mxu0 0
  %162 = vmatprep.subr.bf16.mxu0 0
  %163 = vmatpush1.bf16.msra.mxu0 0
  %164 = vmatprep.subr.bf16.mxu0 0
  %165 = vmatpush1.bf16.msra.mxu0 0
  %166 = vmatprep.subr.bf16.mxu0 0
  %167 = vmatpush1.bf16.msra.mxu0 0
  %168 = vmatprep.subr.bf16.mxu0 0
  %169 = vmatpush1.bf16.msra.mxu0 0
  %170 = vmatprep.subr.bf16.mxu0 0
  %171 = vmatpush1.bf16.msra.mxu0 0
  %172 = vmatprep.mubr.bf16.mxu0 %v135
  %173 = vmatmul.mubr.bf16.gmra.mrb[0].mxu0 %v73
  %v174 = vpop.f32.mrb[0].mxu0
  %v175 = vadd.f32 %v44, %v174
  %v176 = vpop.f32.mrb[0].mxu0
  %v177 = vpop.f32.mrb[0].mxu0
  %v178 = vadd.f32 %v49, %v177
  %v179 = vpop.f32.mrb[0].mxu0
  %180 = vmatprep.mubr.bf16.mxu0 %v138
  %181 = vmatmul.mubr.bf16.gmra.mrb[0].mxu0 %v75
  %v182 = vpop.f32.mrb[0].mxu0
  %v183 = vadd.f32 %v54, %v182
  %v184 = vpop.f32.mrb[0].mxu0
  %v185 = vpop.f32.mrb[0].mxu0
  %v186 = vadd.f32 %v59, %v185
  %v187 = vpop.f32.mrb[0].mxu0
  %188 = vdwg.mxu0
  %v189 = vmax.f32 %v175, 0.0
  %v190 = vmax.f32 %v178, 0.0
  %v191 = vmax.f32 %v183, 0.0
  %v192 = vmax.f32 %v186, 0.0
  %v193 = vpack.c.bf16 %v190, %v189
  %v194 = vpack.c.bf16 %v192, %v191
  %v197 = vunpack.c.l.b16 %v193
  %v198 = vunpack.c.h.b16 %v193
  %v199 = vunpack.c.l.b16 %v194
  %v200 = vunpack.c.h.b16 %v194
  %v201 = vpack.c.b16 %v197, %v197
  %v202 = vpack.c.b16 %v198, %v198
  %v203 = vpack.c.b16 %v199, %v199
  %v204 = vpack.c.b16 %v200, %v200
  %209 = vst [vmem:[%s3] sm:$0xf] %v201
  %210 = vst [vmem:[%s3 + $0x4] sm:$0xf] %v202
  %211 = vst [vmem:[%s3 + $0x8] sm:$0xf] %v203
  %212 = vst [vmem:[%s3 + $0xc] sm:$0xf] %v204
  // Predicated region
  $region14: #{fwd.14} parent=0 // pred_check
    _
  $region15: #{fwd.14} parent=0 // pred_check_branch
    %214 = sbr.rel (0) target = $region17
  $region16: #{fwd.14} parent=0 // pred_region
    _
  $region17: #{fwd.14} parent=0 // pred_fallthru
    _
  // Predicated region
  $region18: #{fwd.14} parent=0 // pred_check
    _
  $region19: #{fwd.14} parent=0 // pred_check_branch
    %216 = sbr.rel (0) target = $region21
  $region20: #{fwd.14} parent=0 // pred_region
    _
  $region21: #{fwd.14} parent=0 // pred_fallthru
    _

// kernel: fwd.15
$region0: #{fwd.15}
  #allocation0 [shape = 'u32[]', space=smem, size = 0x4, offset = 0x4, fixed_abs, tag = 'smem constant byte address 0x4 - core index']
  #allocation1 [shape = 'u32[144,128]{1,0:T(1,128)}', space=vmem, size = 0x12000, scoped, tag = 'internal scratch']
  %s0 = inlined_call_operand.vmem [shape: bf16[32,288], index: 0, kind: input, shape index: {}]
  %s1 = inlined_call_operand.vmem [shape: bf16[288,128], index: 1, kind: input, shape index: {}]
  %s2 = inlined_call_operand.vmem [shape: f32[32,1], index: 2, kind: input, shape index: {}]
  %s3 = inlined_call_operand.vmem [shape: bf16[32,128], index: 3, kind: output, shape index: {}]
  %s4 = sld [smem:[#allocation0]]
  $region22: #{fwd.15} parent=0
    _
  %s6 = ssub.s32 1, %s4
  %s7 = scalar_select 0, %s6, %s4
  // Predicated region
  $region2: #{fwd.15} parent=0 // pred_check
    _
  $region3: #{fwd.15} parent=0 // pred_check_branch
    %9 = sbr.rel (0) target = $region5
  $region4: #{fwd.15} parent=0 // pred_region
    _
  $region5: #{fwd.15} parent=0 // pred_fallthru
    _
  // Predicated region
  $region6: #{fwd.15} parent=0 // pred_check
    _
  $region7: #{fwd.15} parent=0 // pred_check_branch
    %11 = sbr.rel (0) target = $region9
  $region8: #{fwd.15} parent=0 // pred_region
    _
  $region9: #{fwd.15} parent=0 // pred_fallthru
    _
  // Predicated region
  $region10: #{fwd.15} parent=0 // pred_check
    _
  $region11: #{fwd.15} parent=0 // pred_check_branch
    %13 = sbr.rel (0) target = $region13
  $region12: #{fwd.15} parent=0 // pred_region
    _
  $region13: #{fwd.15} parent=0 // pred_fallthru
    _
  %v15 = vld [vmem:[%s0] sm:$0xff]
  %v16 = vld [vmem:[%s0 + $0x8] sm:$0xf]
  %v17 = vld [vmem:[%s0 + $0xc] sm:$0xff]
  %v18 = vld [vmem:[%s0 + $0x14] sm:$0xf]
  %v19 = vld [vmem:[%s0 + $0x18] sm:$0xff]
  %v20 = vld [vmem:[%s0 + $0x20] sm:$0xf]
  %v21 = vld [vmem:[%s0 + $0x24] sm:$0xff]
  %v22 = vld [vmem:[%s0 + $0x2c] sm:$0xf]
  %v23 = vld [vmem:[%s1] sm:$0xf]
  %v24 = vld [vmem:[%s1 + $0x4] sm:$0xf]
  %v25 = vld [vmem:[%s1 + $0x8] sm:$0xf]
  %v26 = vld [vmem:[%s1 + $0xc] sm:$0xf]
  %v27 = vld [vmem:[%s1 + $0x10] sm:$0xf]
  %v28 = vld [vmem:[%s1 + $0x14] sm:$0xf]
  %v29 = vld [vmem:[%s1 + $0x18] sm:$0xf]
  %v30 = vld [vmem:[%s1 + $0x1c] sm:$0xf]
  %v31 = vld [vmem:[%s1 + $0x20] sm:$0xf]
  %v32 = vld [vmem:[%s1 + $0x24] sm:$0xf]
  %v33 = vld [vmem:[%s1 + $0x28] sm:$0xf]
  %v34 = vld [vmem:[%s1 + $0x2c] sm:$0xf]
  %v35 = vld [vmem:[%s1 + $0x30] sm:$0xf]
  %v36 = vld [vmem:[%s1 + $0x34] sm:$0xf]
  %v37 = vld [vmem:[%s1 + $0x38] sm:$0xf]
  %v38 = vld [vmem:[%s1 + $0x3c] sm:$0xf]
  %v39 = vld [vmem:[%s1 + $0x40] sm:$0xf]
  %v40 = vld [vmem:[%s1 + $0x44] sm:$0xf]
  %v41 = vld [vmem:[%s1 + $0x48] sm:$0xf]
  %v42 = vld [vmem:[%s1 + $0x4c] sm:$0xf]
  %v43 = vld [vmem:[%s1 + $0x50] sm:$0xf]
  %v44 = vld [vmem:[%s1 + $0x54] sm:$0xf]
  %v45 = vld [vmem:[%s1 + $0x58] sm:$0xf]
  %v46 = vld [vmem:[%s1 + $0x5c] sm:$0xf]
  %v47 = vld [vmem:[%s1 + $0x60] sm:$0xf]
  %v48 = vld [vmem:[%s1 + $0x64] sm:$0xf]
  %v49 = vld [vmem:[%s1 + $0x68] sm:$0xf]
  %v50 = vld [vmem:[%s1 + $0x6c] sm:$0xf]
  %v51 = vld [vmem:[%s1 + $0x70] sm:$0xf]
  %v52 = vld [vmem:[%s1 + $0x74] sm:$0xf]
  %v53 = vld [vmem:[%s1 + $0x78] sm:$0xf]
  %v54 = vld [vmem:[%s1 + $0x7c] sm:$0xf]
  %v55 = vld [vmem:[%s1 + $0x80] sm:$0xf]
  %v56 = vld [vmem:[%s1 + $0x84] sm:$0xf]
  %v57 = vld [vmem:[%s1 + $0x88] sm:$0xf]
  %v58 = vld [vmem:[%s1 + $0x8c] sm:$0xf]
  %v59 = vld [vmem:[%s2] sm:$0xff]
  %v60 = vld [vmem:[%s2 + $0x8] sm:$0xff]
  %v61 = vld [vmem:[%s2 + $0x10] sm:$0xff]
  %v62 = vld [vmem:[%s2 + $0x18] sm:$0xff]
  %64 = vset.pattern.permute.xlu0 0
  %65 = vperm.xlu0 %64, %v59
  %v66 = vpop.permute.xlu0 %65
  %69 = vset.pattern.permute.xlu0 0
  %70 = vperm.xlu0 %69, %v60
  %v71 = vpop.permute.xlu0 %70
  %74 = vset.pattern.permute.xlu0 0
  %75 = vperm.xlu0 %74, %v61
  %v76 = vpop.permute.xlu0 %75
  %79 = vset.pattern.permute.xlu0 0
  %80 = vperm.xlu0 %79, %v62
  %v81 = vpop.permute.xlu0 %80
  %v91 = vunpack.c.l.b16 %v15
  %v92 = vunpack.c.h.b16 %v15
  %v93 = vunpack.c.l.b16 %v16
  %v94 = vunpack.c.l.b16 %v17
  %v95 = vunpack.c.h.b16 %v17
  %v96 = vunpack.c.l.b16 %v18
  %v97 = vunpack.c.l.b16 %v19
  %v98 = vunpack.c.h.b16 %v19
  %v99 = vunpack.c.l.b16 %v20
  %v100 = vunpack.c.l.b16 %v21
  %v101 = vunpack.c.h.b16 %v21
  %v102 = vunpack.c.l.b16 %v22
  %v103 = vpack.c.b16 %v94, %v91
  %v104 = vpack.c.b16 %v95, %v92
  %v105 = vpack.c.b16 %v96, %v93
  %v106 = vpack.c.b16 %v100, %v97
  %v107 = vpack.c.b16 %v101, %v98
  %v108 = vpack.c.b16 %v102, %v99
  %v149 = vunpack.c.l.b16 %v23
  %v150 = vunpack.c.l.b16 %v24
  %v151 = vunpack.c.l.b16 %v25
  %v152 = vunpack.c.l.b16 %v26
  %v153 = vunpack.c.l.b16 %v27
  %v154 = vunpack.c.l.b16 %v28
  %v155 = vunpack.c.l.b16 %v29
  %v156 = vunpack.c.l.b16 %v30
  %v157 = vunpack.c.l.b16 %v31
  %v158 = vunpack.c.l.b16 %v32
  %v159 = vunpack.c.l.b16 %v33
  %v160 = vunpack.c.l.b16 %v34
  %v161 = vunpack.c.l.b16 %v35
  %v162 = vunpack.c.l.b16 %v36
  %v163 = vunpack.c.l.b16 %v37
  %v164 = vunpack.c.l.b16 %v38
  %v165 = vunpack.c.l.b16 %v39
  %v166 = vunpack.c.l.b16 %v40
  %v167 = vunpack.c.l.b16 %v41
  %v168 = vunpack.c.l.b16 %v42
  %v169 = vunpack.c.l.b16 %v43
  %v170 = vunpack.c.l.b16 %v44
  %v171 = vunpack.c.l.b16 %v45
  %v172 = vunpack.c.l.b16 %v46
  %v173 = vunpack.c.l.b16 %v47
  %v174 = vunpack.c.l.b16 %v48
  %v175 = vunpack.c.l.b16 %v49
  %v176 = vunpack.c.l.b16 %v50
  %v177 = vunpack.c.l.b16 %v51
  %v178 = vunpack.c.l.b16 %v52
  %v179 = vunpack.c.l.b16 %v53
  %v180 = vunpack.c.l.b16 %v54
  %v181 = vunpack.c.l.b16 %v55
  %v182 = vunpack.c.l.b16 %v56
  %v183 = vunpack.c.l.b16 %v57
  %v184 = vunpack.c.l.b16 %v58
  %v185 = vpack.c.b16 %v150, %v149
  %v186 = vpack.c.b16 %v152, %v151
  %v187 = vpack.c.b16 %v154, %v153
  %v188 = vpack.c.b16 %v156, %v155
  %v189 = vpack.c.b16 %v158, %v157
  %v190 = vpack.c.b16 %v160, %v159
  %v191 = vpack.c.b16 %v162, %v161
  %v192 = vpack.c.b16 %v164, %v163
  %v193 = vpack.c.b16 %v166, %v165
  %v194 = vpack.c.b16 %v168, %v167
  %v195 = vpack.c.b16 %v170, %v169
  %v196 = vpack.c.b16 %v172, %v171
  %v197 = vpack.c.b16 %v174, %v173
  %v198 = vpack.c.b16 %v176, %v175
  %v199 = vpack.c.b16 %v178, %v177
  %v200 = vpack.c.b16 %v180, %v179
  %v201 = vpack.c.b16 %v182, %v181
  %v202 = vpack.c.b16 %v184, %v183
  %vm221 = vcmask 261120
  %v223 = vsel %vm221, %v105, 0
  %v226 = vsel %vm221, %v108, 0
  %228 = vmatprep.subr.bf16.mxu0 0
  %229 = vmatpush1.bf16.msra.mxu0 %v185
  %230 = vmatprep.subr.bf16.mxu0 0
  %231 = vmatpush1.bf16.msra.mxu0 %v186
  %232 = vmatprep.subr.bf16.mxu0 0
  %233 = vmatpush1.bf16.msra.mxu0 %v187
  %234 = vmatprep.subr.bf16.mxu0 0
  %235 = vmatpush1.bf16.msra.mxu0 %v188
  %236 = vmatprep.subr.bf16.mxu0 0
  %237 = vmatpush1.bf16.msra.mxu0 %v189
  %238 = vmatprep.subr.bf16.mxu0 0
  %239 = vmatpush1.bf16.msra.mxu0 %v190
  %240 = vmatprep.subr.bf16.mxu0 0
  %241 = vmatpush1.bf16.msra.mxu0 %v191
  %242 = vmatprep.subr.bf16.mxu0 0
  %243 = vmatpush1.bf16.msra.mxu0 %v192
  %244 = vmatprep.subr.bf16.mxu0 0
  %245 = vmatpush1.bf16.msra.mxu0 %v193
  %246 = vmatprep.subr.bf16.mxu0 0
  %247 = vmatpush1.bf16.msra.mxu0 %v194
  %248 = vmatprep.subr.bf16.mxu0 0
  %249 = vmatpush1.bf16.msra.mxu0 %v195
  %250 = vmatprep.subr.bf16.mxu0 0
  %251 = vmatpush1.bf16.msra.mxu0 %v196
  %252 = vmatprep.subr.bf16.mxu0 0
  %253 = vmatpush1.bf16.msra.mxu0 %v197
  %254 = vmatprep.subr.bf16.mxu0 0
  %255 = vmatpush1.bf16.msra.mxu0 %v198
  %256 = vmatprep.subr.bf16.mxu0 0
  %257 = vmatpush1.bf16.msra.mxu0 %v199
  %258 = vmatprep.subr.bf16.mxu0 0
  %259 = vmatpush1.bf16.msra.mxu0 %v200
  %260 = vmatprep.mubr.bf16.mxu0 %v104
  %261 = vmatmul.mubr.bf16.gmra.mrb[0].mxu0 %v103
  %v262 = vpop.f32.mrb[0].mxu0
  %v263 = vadd.f32 %v66, %v262
  %v264 = vpop.f32.mrb[0].mxu0
  %v265 = vpop.f32.mrb[0].mxu0
  %v266 = vadd.f32 %v71, %v265
  %v267 = vpop.f32.mrb[0].mxu0
  %268 = vmatprep.mubr.bf16.mxu0 %v107
  %269 = vmatmul.mubr.bf16.gmra.mrb[0].mxu0 %v106
  %v270 = vpop.f32.mrb[0].mxu0
  %v271 = vadd.f32 %v76, %v270
  %v272 = vpop.f32.mrb[0].mxu0
  %v273 = vpop.f32.mrb[0].mxu0
  %v274 = vadd.f32 %v81, %v273
  %v275 = vpop.f32.mrb[0].mxu0
  %276 = vdwg.mxu0
  %277 = vmatprep.subr.bf16.mxu0 0
  %278 = vmatpush1.bf16.msra.mxu0 %v201
  %279 = vmatprep.subr.bf16.mxu0 0
  %280 = vmatpush1.bf16.msra.mxu0 %v202
  %281 = vmatprep.subr.bf16.mxu0 0
  %282 = vmatpush1.bf16.msra.mxu0 0
  %283 = vmatprep.subr.bf16.mxu0 0
  %284 = vmatpush1.bf16.msra.mxu0 0
  %285 = vmatprep.subr.bf16.mxu0 0
  %286 = vmatpush1.bf16.msra.mxu0 0
  %287 = vmatprep.subr.bf16.mxu0 0
  %288 = vmatpush1.bf16.msra.mxu0 0
  %289 = vmatprep.subr.bf16.mxu0 0
  %290 = vmatpush1.bf16.msra.mxu0 0
  %291 = vmatprep.subr.bf16.mxu0 0
  %292 = vmatpush1.bf16.msra.mxu0 0
  %293 = vmatprep.subr.bf16.mxu0 0
  %294 = vmatpush1.bf16.msra.mxu0 0
  %295 = vmatprep.subr.bf16.mxu0 0
  %296 = vmatpush1.bf16.msra.mxu0 0
  %297 = vmatprep.subr.bf16.mxu0 0
  %298 = vmatpush1.bf16.msra.mxu0 0
  %299 = vmatprep.subr.bf16.mxu0 0
  %300 = vmatpush1.bf16.msra.mxu0 0
  %301 = vmatprep.subr.bf16.mxu0 0
  %302 = vmatpush1.bf16.msra.mxu0 0
  %303 = vmatprep.subr.bf16.mxu0 0
  %304 = vmatpush1.bf16.msra.mxu0 0
  %305 = vmatprep.subr.bf16.mxu0 0
  %306 = vmatpush1.bf16.msra.mxu0 0
  %307 = vmatprep.subr.bf16.mxu0 0
  %308 = vmatpush1.bf16.msra.mxu0 0
  %309 = vmatprep.mubr.bf16.mxu0 0
  %310 = vmatmul.mubr.bf16.gmra.mrb[0].mxu0 %v223
  %v311 = vpop.f32.mrb[0].mxu0
  %v312 = vadd.f32 %v263, %v311
  %v313 = vpop.f32.mrb[0].mxu0
  %v314 = vpop.f32.mrb[0].mxu0
  %v315 = vadd.f32 %v266, %v314
  %v316 = vpop.f32.mrb[0].mxu0
  %317 = vmatprep.mubr.bf16.mxu0 0
  %318 = vmatmul.mubr.bf16.gmra.mrb[0].mxu0 %v226
  %v319 = vpop.f32.mrb[0].mxu0
  %v320 = vadd.f32 %v271, %v319
  %v321 = vpop.f32.mrb[0].mxu0
  %v322 = vpop.f32.mrb[0].mxu0
  %v323 = vadd.f32 %v274, %v322
  %v324 = vpop.f32.mrb[0].mxu0
  %325 = vdwg.mxu0
  %v326 = vmax.f32 %v312, 0.0
  %v327 = vmax.f32 %v315, 0.0
  %v328 = vmax.f32 %v320, 0.0
  %v329 = vmax.f32 %v323, 0.0
  %v330 = vpack.c.bf16 %v327, %v326
  %v331 = vpack.c.bf16 %v329, %v328
  %v334 = vunpack.c.l.b16 %v330
  %v335 = vunpack.c.h.b16 %v330
  %v336 = vunpack.c.l.b16 %v331
  %v337 = vunpack.c.h.b16 %v331
  %v338 = vpack.c.b16 %v334, %v334
  %v339 = vpack.c.b16 %v335, %v335
  %v340 = vpack.c.b16 %v336, %v336
  %v341 = vpack.c.b16 %v337, %v337
  %346 = vst [vmem:[%s3] sm:$0xf] %v338
  %347 = vst [vmem:[%s3 + $0x4] sm:$0xf] %v339
  %348 = vst [vmem:[%s3 + $0x8] sm:$0xf] %v340
  %349 = vst [vmem:[%s3 + $0xc] sm:$0xf] %v341
  // Predicated region
  $region14: #{fwd.15} parent=0 // pred_check
    _
  $region15: #{fwd.15} parent=0 // pred_check_branch
    %351 = sbr.rel (0) target = $region17
  $region16: #{fwd.15} parent=0 // pred_region
    _
  $region17: #{fwd.15} parent=0 // pred_fallthru
    _
  // Predicated region
  $region18: #{fwd.15} parent=0 // pred_check
    _
  $region19: #{fwd.15} parent=0 // pred_check_branch
    %353 = sbr.rel (0) target = $region21
  $region20: #{fwd.15} parent=0 // pred_region
    _
  $region21: #{fwd.15} parent=0 // pred_fallthru
    _

// kernel: tile.14
$region0: #{tile.14}
  #allocation0 [shape = 's32[1]{0}', space=sflag, size = 0x4, scoped, tag = 'scoped memory for tile.14']
  %s0 = inlined_call_operand.vmem [shape: f32[32], index: 0, kind: input, shape index: {}]
  %s1 = inlined_call_operand.vmem [shape: f32[4,32], index: 1, kind: output, shape index: {}]
  // Predicated region
  $region2: #{tile.14} parent=0 // pred_check
    _
  $region3: #{tile.14} parent=0 // pred_check_branch
    %3 = sbr.rel (0) target = $region5
  $region4: #{tile.14} parent=0 // pred_region
    _
  $region5: #{tile.14} parent=0 // pred_fallthru
    _
  %v4 = vld [vmem:[%s0] ss:$0 sm:$0xff]
  %5 = vst [vmem:[%s1] sm:$0xf] %v4

// kernel: tile.0
$region0: #{tile.0}
  %s0 = inlined_call_operand.vmem [shape: f32[4,32], index: 0, kind: input, shape index: {}]
  %s1 = inlined_call_operand.vmem [shape: f32[128,1], index: 1, kind: output, shape index: {}]
  $region1: #{tile.0} parent=0
    #allocation0 [shape = 'u8[4096]{0}', space=vmem, size = 0x1000, scoped, tag = 'scoped mem for input reshape']
    %s3 = sshllo.u32 0, 4
    %v4 = vld [vmem:[%s0] sm:%s3]
    %5 = vst [vmem:[#allocation0] sm:%s3] %v4
    %v6 = vld [vmem:[#allocation0] sm:$0xf]
    %vm7 = vcmask 7168
    %8 = vst.msk [vmem:[%s1] sm:$0x1] %vm7, %v6
    %s9 = scalar_lea.vmem %s1, 31
    %10 = vst.msk [vmem:[%s9] sm:$0x2] %vm7, %v6
    %s11 = scalar_lea.vmem %s1, 62
    %12 = vst.msk [vmem:[%s11] sm:$0x4] %vm7, %v6
    %s13 = scalar_lea.vmem %s1, 93
    %14 = vst.msk [vmem:[%s13] sm:$0x8] %vm7, %v6
    %v15 = vld [vmem:[#allocation0] sm:$0xf]
    %16 = vrot.lane.b32.xlu0 %v15, 127
    %v17 = vpop.permute.xlu0 %16
    %vm18 = vcmask 7168
    %s19 = scalar_lea.vmem %s1, 1
    %20 = vst.msk [vmem:[%s19] sm:$0x1] %vm18, %v17
    %s21 = scalar_lea.vmem %s1, 32
    %22 = vst.msk [vmem:[%s21] sm:$0x2] %vm18, %v17
    %s23 = scalar_lea.vmem %s1, 63
    %24 = vst.msk [vmem:[%s23] sm:$0x4] %vm18, %v17
    %s25 = scalar_lea.vmem %s1, 94
    %26 = vst.msk [vmem:[%s25] sm:$0x8] %vm18, %v17
    %v27 = vld [vmem:[#allocation0] sm:$0xf]
    %28 = vrot.lane.b32.xlu0 %v27, 126
    %v29 = vpop.permute.xlu0 %28
    %vm30 = vcmask 7168
    %s31 = scalar_lea.vmem %s1, 2
    %32 = vst.msk [vmem:[%s31] sm:$0x1] %vm30, %v29
    %s33 = scalar_lea.vmem %s1, 33
    %34 = vst.msk [vmem:[%s33] sm:$0x2] %vm30, %v29
    %s35 = scalar_lea.vmem %s1, 64
    %36 = vst.msk [vmem:[%s35] sm:$0x4] %vm30, %v29
    %s37 = scalar_lea.vmem %s1, 95
    %38 = vst.msk [vmem:[%s37] sm:$0x8] %vm30, %v29
    %v39 = vld [vmem:[#allocation0] sm:$0xf]
    %40 = vrot.lane.b32.xlu0 %v39, 125
    %v41 = vpop.permute.xlu0 %40
    %vm42 = vcmask 7168
    %s43 = scalar_lea.vmem %s1, 3
    %44 = vst.msk [vmem:[%s43] sm:$0x1] %vm42, %v41
    %s45 = scalar_lea.vmem %s1, 34
    %46 = vst.msk [vmem:[%s45] sm:$0x2] %vm42, %v41
    %s47 = scalar_lea.vmem %s1, 65
    %48 = vst.msk [vmem:[%s47] sm:$0x4] %vm42, %v41
    %s49 = scalar_lea.vmem %s1, 96
    %50 = vst.msk [vmem:[%s49] sm:$0x8] %vm42, %v41
    %v51 = vld [vmem:[#allocation0] sm:$0xf]
    %52 = vrot.lane.b32.xlu0 %v51, 124
    %v53 = vpop.permute.xlu0 %52
    %vm54 = vcmask 7168
    %s55 = scalar_lea.vmem %s1, 4
    %56 = vst.msk [vmem:[%s55] sm:$0x1] %vm54, %v53
    %s57 = scalar_lea.vmem %s1, 35
    %58 = vst.msk [vmem:[%s57] sm:$0x2] %vm54, %v53
    %s59 = scalar_lea.vmem %s1, 66
    %60 = vst.msk [vmem:[%s59] sm:$0x4] %vm54, %v53
    %s61 = scalar_lea.vmem %s1, 97
    %62 = vst.msk [vmem:[%s61] sm:$0x8] %vm54, %v53
    %v63 = vld [vmem:[#allocation0] sm:$0xf]
    %64 = vrot.lane.b32.xlu0 %v63, 123
    %v65 = vpop.permute.xlu0 %64
    %vm66 = vcmask 7168
    %s67 = scalar_lea.vmem %s1, 5
    %68 = vst.msk [vmem:[%s67] sm:$0x1] %vm66, %v65
    %s69 = scalar_lea.vmem %s1, 36
    %70 = vst.msk [vmem:[%s69] sm:$0x2] %vm66, %v65
    %s71 = scalar_lea.vmem %s1, 67
    %72 = vst.msk [vmem:[%s71] sm:$0x4] %vm66, %v65
    %s73 = scalar_lea.vmem %s1, 98
    %74 = vst.msk [vmem:[%s73] sm:$0x8] %vm66, %v65
    %v75 = vld [vmem:[#allocation0] sm:$0xf]
    %76 = vrot.lane.b32.xlu0 %v75, 122
    %v77 = vpop.permute.xlu0 %76
    %vm78 = vcmask 7168
    %s79 = scalar_lea.vmem %s1, 6
    %80 = vst.msk [vmem:[%s79] sm:$0x1] %vm78, %v77
    %s81 = scalar_lea.vmem %s1, 37
    %82 = vst.msk [vmem:[%s81] sm:$0x2] %vm78, %v77
    %s83 = scalar_lea.vmem %s1, 68
    %84 = vst.msk [vmem:[%s83] sm:$0x4] %vm78, %v77
    %s85 = scalar_lea.vmem %s1, 99
    %86 = vst.msk [vmem:[%s85] sm:$0x8] %vm78, %v77
    %v87 = vld [vmem:[#allocation0] sm:$0xf]
    %88 = vrot.lane.b32.xlu0 %v87, 121
    %v89 = vpop.permute.xlu0 %88
    %vm90 = vcmask 7168
    %s91 = scalar_lea.vmem %s1, 7
    %92 = vst.msk [vmem:[%s91] sm:$0x1] %vm90, %v89
    %s93 = scalar_lea.vmem %s1, 38
    %94 = vst.msk [vmem:[%s93] sm:$0x2] %vm90, %v89
    %s95 = scalar_lea.vmem %s1, 69
    %96 = vst.msk [vmem:[%s95] sm:$0x4] %vm90, %v89
    %s97 = scalar_lea.vmem %s1, 100
    %98 = vst.msk [vmem:[%s97] sm:$0x8] %vm90, %v89
    %v99 = vld [vmem:[#allocation0] sm:$0xf]
    %100 = vrot.lane.b32.xlu0 %v99, 120
    %v101 = vpop.permute.xlu0 %100
    %vm102 = vcmask 7168
    %s103 = scalar_lea.vmem %s1, 8
    %104 = vst.msk [vmem:[%s103] sm:$0x1] %vm102, %v101
    %s105 = scalar_lea.vmem %s1, 39
    %106 = vst.msk [vmem:[%s105] sm:$0x2] %vm102, %v101
    %s107 = scalar_lea.vmem %s1, 70
    %108 = vst.msk [vmem:[%s107] sm:$0x4] %vm102, %v101
    %s109 = scalar_lea.vmem %s1, 101
    %110 = vst.msk [vmem:[%s109] sm:$0x8] %vm102, %v101
    %v111 = vld [vmem:[#allocation0] sm:$0xf]
    %112 = vrot.lane.b32.xlu0 %v111, 119
    %v113 = vpop.permute.xlu0 %112
    %vm114 = vcmask 7168
    %s115 = scalar_lea.vmem %s1, 9
    %116 = vst.msk [vmem:[%s115] sm:$0x1] %vm114, %v113
    %s117 = scalar_lea.vmem %s1, 40
    %118 = vst.msk [vmem:[%s117] sm:$0x2] %vm114, %v113
    %s119 = scalar_lea.vmem %s1, 71
    %120 = vst.msk [vmem:[%s119] sm:$0x4] %vm114, %v113
    %s121 = scalar_lea.vmem %s1, 102
    %122 = vst.msk [vmem:[%s121] sm:$0x8] %vm114, %v113
    %v123 = vld [vmem:[#allocation0] sm:$0xf]
    %124 = vrot.lane.b32.xlu0 %v123, 118
    %v125 = vpop.permute.xlu0 %124
    %vm126 = vcmask 7168
    %s127 = scalar_lea.vmem %s1, 10
    %128 = vst.msk [vmem:[%s127] sm:$0x1] %vm126, %v125
    %s129 = scalar_lea.vmem %s1, 41
    %130 = vst.msk [vmem:[%s129] sm:$0x2] %vm126, %v125
    %s131 = scalar_lea.vmem %s1, 72
    %132 = vst.msk [vmem:[%s131] sm:$0x4] %vm126, %v125
    %s133 = scalar_lea.vmem %s1, 103
    %134 = vst.msk [vmem:[%s133] sm:$0x8] %vm126, %v125
    %v135 = vld [vmem:[#allocation0] sm:$0xf]
    %136 = vrot.lane.b32.xlu0 %v135, 117
    %v137 = vpop.permute.xlu0 %136
    %vm138 = vcmask 7168
    %s139 = scalar_lea.vmem %s1, 11
    %140 = vst.msk [vmem:[%s139] sm:$0x1] %vm138, %v137
    %s141 = scalar_lea.vmem %s1, 42
    %142 = vst.msk [vmem:[%s141] sm:$0x2] %vm138, %v137
    %s143 = scalar_lea.vmem %s1, 73
    %144 = vst.msk [vmem:[%s143] sm:$0x4] %vm138, %v137
    %s145 = scalar_lea.vmem %s1, 104
    %146 = vst.msk [vmem:[%s145] sm:$0x8] %vm138, %v137
    %v147 = vld [vmem:[#allocation0] sm:$0xf]
    %148 = vrot.lane.b32.xlu0 %v147, 116
    %v149 = vpop.permute.xlu0 %148
    %vm150 = vcmask 7168
    %s151 = scalar_lea.vmem %s1, 12
    %152 = vst.msk [vmem:[%s151] sm:$0x1] %vm150, %v149
    %s153 = scalar_lea.vmem %s1, 43
    %154 = vst.msk [vmem:[%s153] sm:$0x2] %vm150, %v149
    %s155 = scalar_lea.vmem %s1, 74
    %156 = vst.msk [vmem:[%s155] sm:$0x4] %vm150, %v149
    %s157 = scalar_lea.vmem %s1, 105
    %158 = vst.msk [vmem:[%s157] sm:$0x8] %vm150, %v149
    %v159 = vld [vmem:[#allocation0] sm:$0xf]
    %160 = vrot.lane.b32.xlu0 %v159, 115
    %v161 = vpop.permute.xlu0 %160
    %vm162 = vcmask 7168
    %s163 = scalar_lea.vmem %s1, 13
    %164 = vst.msk [vmem:[%s163] sm:$0x1] %vm162, %v161
    %s165 = scalar_lea.vmem %s1, 44
    %166 = vst.msk [vmem:[%s165] sm:$0x2] %vm162, %v161
    %s167 = scalar_lea.vmem %s1, 75
    %168 = vst.msk [vmem:[%s167] sm:$0x4] %vm162, %v161
    %s169 = scalar_lea.vmem %s1, 106
    %170 = vst.msk [vmem:[%s169] sm:$0x8] %vm162, %v161
    %v171 = vld [vmem:[#allocation0] sm:$0xf]
    %172 = vrot.lane.b32.xlu0 %v171, 114
    %v173 = vpop.permute.xlu0 %172
    %vm174 = vcmask 7168
    %s175 = scalar_lea.vmem %s1, 14
    %176 = vst.msk [vmem:[%s175] sm:$0x1] %vm174, %v173
    %s177 = scalar_lea.vmem %s1, 45
    %178 = vst.msk [vmem:[%s177] sm:$0x2] %vm174, %v173
    %s179 = scalar_lea.vmem %s1, 76
    %180 = vst.msk [vmem:[%s179] sm:$0x4] %vm174, %v173
    %s181 = scalar_lea.vmem %s1, 107
    %182 = vst.msk [vmem:[%s181] sm:$0x8] %vm174, %v173
    %v183 = vld [vmem:[#allocation0] sm:$0xf]
    %184 = vrot.lane.b32.xlu0 %v183, 113
    %v185 = vpop.permute.xlu0 %184
    %vm186 = vcmask 7168
    %s187 = scalar_lea.vmem %s1, 15
    %188 = vst.msk [vmem:[%s187] sm:$0x1] %vm186, %v185
    %s189 = scalar_lea.vmem %s1, 46
    %190 = vst.msk [vmem:[%s189] sm:$0x2] %vm186, %v185
    %s191 = scalar_lea.vmem %s1, 77
    %192 = vst.msk [vmem:[%s191] sm:$0x4] %vm186, %v185
    %s193 = scalar_lea.vmem %s1, 108
    %194 = vst.msk [vmem:[%s193] sm:$0x8] %vm186, %v185
    %v195 = vld [vmem:[#allocation0] sm:$0xf]
    %196 = vrot.lane.b32.xlu0 %v195, 112
    %v197 = vpop.permute.xlu0 %196
    %vm198 = vcmask 7168
    %s199 = scalar_lea.vmem %s1, 16
    %200 = vst.msk [vmem:[%s199] sm:$0x1] %vm198, %v197
    %s201 = scalar_lea.vmem %s1, 47
    %202 = vst.msk [vmem:[%s201] sm:$0x2] %vm198, %v197
    %s203 = scalar_lea.vmem %s1, 78
    %204 = vst.msk [vmem:[%s203] sm:$0x4] %vm198, %v197
    %s205 = scalar_lea.vmem %s1, 109
    %206 = vst.msk [vmem:[%s205] sm:$0x8] %vm198, %v197
    %v207 = vld [vmem:[#allocation0] sm:$0xf]
    %208 = vrot.lane.b32.xlu0 %v207, 111
    %v209 = vpop.permute.xlu0 %208
    %vm210 = vcmask 7168
    %s211 = scalar_lea.vmem %s1, 17
    %212 = vst.msk [vmem:[%s211] sm:$0x1] %vm210, %v209
    %s213 = scalar_lea.vmem %s1, 48
    %214 = vst.msk [vmem:[%s213] sm:$0x2] %vm210, %v209
    %s215 = scalar_lea.vmem %s1, 79
    %216 = vst.msk [vmem:[%s215] sm:$0x4] %vm210, %v209
    %s217 = scalar_lea.vmem %s1, 110
    %218 = vst.msk [vmem:[%s217] sm:$0x8] %vm210, %v209
    %v219 = vld [vmem:[#allocation0] sm:$0xf]
    %220 = vrot.lane.b32.xlu0 %v219, 110
    %v221 = vpop.permute.xlu0 %220
    %vm222 = vcmask 7168
    %s223 = scalar_lea.vmem %s1, 18
    %224 = vst.msk [vmem:[%s223] sm:$0x1] %vm222, %v221
    %s225 = scalar_lea.vmem %s1, 49
    %226 = vst.msk [vmem:[%s225] sm:$0x2] %vm222, %v221
    %s227 = scalar_lea.vmem %s1, 80
    %228 = vst.msk [vmem:[%s227] sm:$0x4] %vm222, %v221
    %s229 = scalar_lea.vmem %s1, 111
    %230 = vst.msk [vmem:[%s229] sm:$0x8] %vm222, %v221
    %v231 = vld [vmem:[#allocation0] sm:$0xf]
    %232 = vrot.lane.b32.xlu0 %v231, 109
    %v233 = vpop.permute.xlu0 %232
    %vm234 = vcmask 7168
    %s235 = scalar_lea.vmem %s1, 19
    %236 = vst.msk [vmem:[%s235] sm:$0x1] %vm234, %v233
    %s237 = scalar_lea.vmem %s1, 50
    %238 = vst.msk [vmem:[%s237] sm:$0x2] %vm234, %v233
    %s239 = scalar_lea.vmem %s1, 81
    %240 = vst.msk [vmem:[%s239] sm:$0x4] %vm234, %v233
    %s241 = scalar_lea.vmem %s1, 112
    %242 = vst.msk [vmem:[%s241] sm:$0x8] %vm234, %v233
    %v243 = vld [vmem:[#allocation0] sm:$0xf]
    %244 = vrot.lane.b32.xlu0 %v243, 108
    %v245 = vpop.permute.xlu0 %244
    %vm246 = vcmask 7168
    %s247 = scalar_lea.vmem %s1, 20
    %248 = vst.msk [vmem:[%s247] sm:$0x1] %vm246, %v245
    %s249 = scalar_lea.vmem %s1, 51
    %250 = vst.msk [vmem:[%s249] sm:$0x2] %vm246, %v245
    %s251 = scalar_lea.vmem %s1, 82
    %252 = vst.msk [vmem:[%s251] sm:$0x4] %vm246, %v245
    %s253 = scalar_lea.vmem %s1, 113
    %254 = vst.msk [vmem:[%s253] sm:$0x8] %vm246, %v245
    %v255 = vld [vmem:[#allocation0] sm:$0xf]
    %256 = vrot.lane.b32.xlu0 %v255, 107
    %v257 = vpop.permute.xlu0 %256
    %vm258 = vcmask 7168
    %s259 = scalar_lea.vmem %s1, 21
    %260 = vst.msk [vmem:[%s259] sm:$0x1] %vm258, %v257
    %s261 = scalar_lea.vmem %s1, 52
    %262 = vst.msk [vmem:[%s261] sm:$0x2] %vm258, %v257
    %s263 = scalar_lea.vmem %s1, 83
    %264 = vst.msk [vmem:[%s263] sm:$0x4] %vm258, %v257
    %s265 = scalar_lea.vmem %s1, 114
    %266 = vst.msk [vmem:[%s265] sm:$0x8] %vm258, %v257
    %v267 = vld [vmem:[#allocation0] sm:$0xf]
    %268 = vrot.lane.b32.xlu0 %v267, 106
    %v269 = vpop.permute.xlu0 %268
    %vm270 = vcmask 7168
    %s271 = scalar_lea.vmem %s1, 22
    %272 = vst.msk [vmem:[%s271] sm:$0x1] %vm270, %v269
    %s273 = scalar_lea.vmem %s1, 53
    %274 = vst.msk [vmem:[%s273] sm:$0x2] %vm270, %v269
    %s275 = scalar_lea.vmem %s1, 84
    %276 = vst.msk [vmem:[%s275] sm:$0x4] %vm270, %v269
    %s277 = scalar_lea.vmem %s1, 115
    %278 = vst.msk [vmem:[%s277] sm:$0x8] %vm270, %v269
    %v279 = vld [vmem:[#allocation0] sm:$0xf]
    %280 = vrot.lane.b32.xlu0 %v279, 105
    %v281 = vpop.permute.xlu0 %280
    %vm282 = vcmask 7168
    %s283 = scalar_lea.vmem %s1, 23
    %284 = vst.msk [vmem:[%s283] sm:$0x1] %vm282, %v281
    %s285 = scalar_lea.vmem %s1, 54
    %286 = vst.msk [vmem:[%s285] sm:$0x2] %vm282, %v281
    %s287 = scalar_lea.vmem %s1, 85
    %288 = vst.msk [vmem:[%s287] sm:$0x4] %vm282, %v281
    %s289 = scalar_lea.vmem %s1, 116
    %290 = vst.msk [vmem:[%s289] sm:$0x8] %vm282, %v281
    %v291 = vld [vmem:[#allocation0] sm:$0xf]
    %292 = vrot.lane.b32.xlu0 %v291, 104
    %v293 = vpop.permute.xlu0 %292
    %vm294 = vcmask 7168
    %s295 = scalar_lea.vmem %s1, 24
    %296 = vst.msk [vmem:[%s295] sm:$0x1] %vm294, %v293
    %s297 = scalar_lea.vmem %s1, 55
    %298 = vst.msk [vmem:[%s297] sm:$0x2] %vm294, %v293
    %s299 = scalar_lea.vmem %s1, 86
    %300 = vst.msk [vmem:[%s299] sm:$0x4] %vm294, %v293
    %s301 = scalar_lea.vmem %s1, 117
    %302 = vst.msk [vmem:[%s301] sm:$0x8] %vm294, %v293
    %v303 = vld [vmem:[#allocation0] sm:$0xf]
    %304 = vrot.lane.b32.xlu0 %v303, 103
    %v305 = vpop.permute.xlu0 %304
    %vm306 = vcmask 7168
    %s307 = scalar_lea.vmem %s1, 25
    %308 = vst.msk [vmem:[%s307] sm:$0x1] %vm306, %v305
    %s309 = scalar_lea.vmem %s1, 56
    %310 = vst.msk [vmem:[%s309] sm:$0x2] %vm306, %v305
    %s311 = scalar_lea.vmem %s1, 87
    %312 = vst.msk [vmem:[%s311] sm:$0x4] %vm306, %v305
    %s313 = scalar_lea.vmem %s1, 118
    %314 = vst.msk [vmem:[%s313] sm:$0x8] %vm306, %v305
    %v315 = vld [vmem:[#allocation0] sm:$0xf]
    %316 = vrot.lane.b32.xlu0 %v315, 102
    %v317 = vpop.permute.xlu0 %316
    %vm318 = vcmask 7168
    %s319 = scalar_lea.vmem %s1, 26
    %320 = vst.msk [vmem:[%s319] sm:$0x1] %vm318, %v317
    %s321 = scalar_lea.vmem %s1, 57
    %322 = vst.msk [vmem:[%s321] sm:$0x2] %vm318, %v317
    %s323 = scalar_lea.vmem %s1, 88
    %324 = vst.msk [vmem:[%s323] sm:$0x4] %vm318, %v317
    %s325 = scalar_lea.vmem %s1, 119
    %326 = vst.msk [vmem:[%s325] sm:$0x8] %vm318, %v317
    %v327 = vld [vmem:[#allocation0] sm:$0xf]
    %328 = vrot.lane.b32.xlu0 %v327, 101
    %v329 = vpop.permute.xlu0 %328
    %vm330 = vcmask 7168
    %s331 = scalar_lea.vmem %s1, 27
    %332 = vst.msk [vmem:[%s331] sm:$0x1] %vm330, %v329
    %s333 = scalar_lea.vmem %s1, 58
    %334 = vst.msk [vmem:[%s333] sm:$0x2] %vm330, %v329
    %s335 = scalar_lea.vmem %s1, 89
    %336 = vst.msk [vmem:[%s335] sm:$0x4] %vm330, %v329
    %s337 = scalar_lea.vmem %s1, 120
    %338 = vst.msk [vmem:[%s337] sm:$0x8] %vm330, %v329
    %v339 = vld [vmem:[#allocation0] sm:$0xf]
    %340 = vrot.lane.b32.xlu0 %v339, 100
    %v341 = vpop.permute.xlu0 %340
    %vm342 = vcmask 7168
    %s343 = scalar_lea.vmem %s1, 28
    %344 = vst.msk [vmem:[%s343] sm:$0x1] %vm342, %v341
    %s345 = scalar_lea.vmem %s1, 59
    %346 = vst.msk [vmem:[%s345] sm:$0x2] %vm342, %v341
    %s347 = scalar_lea.vmem %s1, 90
    %348 = vst.msk [vmem:[%s347] sm:$0x4] %vm342, %v341
    %s349 = scalar_lea.vmem %s1, 121
    %350 = vst.msk [vmem:[%s349] sm:$0x8] %vm342, %v341
    %v351 = vld [vmem:[#allocation0] sm:$0xf]
    %352 = vrot.lane.b32.xlu0 %v351, 99
    %v353 = vpop.permute.xlu0 %352
    %vm354 = vcmask 7168
    %s355 = scalar_lea.vmem %s1, 29
    %356 = vst.msk [vmem:[%s355] sm:$0x1] %vm354, %v353
    %s357 = scalar_lea.vmem %s1, 60
    %358 = vst.msk [vmem:[%s357] sm:$0x2] %vm354, %v353
    %s359 = scalar_lea.vmem %s1, 91
    %360 = vst.msk [vmem:[%s359] sm:$0x4] %vm354, %v353
    %s361 = scalar_lea.vmem %s1, 122
    %362 = vst.msk [vmem:[%s361] sm:$0x8] %vm354, %v353
    %v363 = vld [vmem:[#allocation0] sm:$0xf]
    %364 = vrot.lane.b32.xlu0 %v363, 98
    %v365 = vpop.permute.xlu0 %364
    %vm366 = vcmask 7168
    %s367 = scalar_lea.vmem %s1, 30
    %368 = vst.msk [vmem:[%s367] sm:$0x1] %vm366, %v365
    %s369 = scalar_lea.vmem %s1, 61
    %370 = vst.msk [vmem:[%s369] sm:$0x2] %vm366, %v365
    %s371 = scalar_lea.vmem %s1, 92
    %372 = vst.msk [vmem:[%s371] sm:$0x4] %vm366, %v365
    %s373 = scalar_lea.vmem %s1, 123
    %374 = vst.msk [vmem:[%s373] sm:$0x8] %vm366, %v365
    %v375 = vld [vmem:[#allocation0] sm:$0xf]
    %376 = vrot.lane.b32.xlu0 %v375, 97
    %v377 = vpop.permute.xlu0 %376
    %vm378 = vcmask 7168
    %s379 = scalar_lea.vmem %s1, 31
    %380 = vst.msk [vmem:[%s379] sm:$0x1] %vm378, %v377
    %s381 = scalar_lea.vmem %s1, 62
    %382 = vst.msk [vmem:[%s381] sm:$0x2] %vm378, %v377
    %s383 = scalar_lea.vmem %s1, 93
    %384 = vst.msk [vmem:[%s383] sm:$0x4] %vm378, %v377
    %s385 = scalar_lea.vmem %s1, 124
    %386 = vst.msk [vmem:[%s385] sm:$0x8] %vm378, %v377

// kernel: mul.64
$region0: #{mul.64}
  %s0 = inlined_call_operand.vmem [shape: f32[4,32], index: 0, kind: input, shape index: {}]
  %s1 = inlined_call_operand.vmem [shape: f32[128], index: 1, kind: output, shape index: {}]
  $region1: #{mul.64} parent=0
    #allocation0 [shape = 'u8[4096]{0}', space=vmem, size = 0x1000, scoped, tag = 'scoped mem for output reshape']
    #allocation1 [shape = 'u8[4096]{0}', space=vmem, size = 0x1000, scoped, tag = 'scoped mem for input reshape']
    %s3 = sshllo.u32 0, 4
    %v4 = vld [vmem:[%s0] sm:%s3]
    %5 = vst [vmem:[#allocation1] sm:%s3] %v4
    %v6 = vld [vmem:[#allocation1] sm:$0x1]
    %vm7 = vcmask 261120
    %8 = vst.msk [vmem:[#allocation0] sm:$0x1] %vm7, %v6
    %s9 = scalar_lea.vmem [#allocation1], 3
    %v10 = vld [vmem:[%s9] sm:$0x1]
    %11 = vrot.lane.b32.xlu0 %v10, 96
    %v12 = vpop.permute.xlu0 %11
    %vm13 = vcmask 1048320
    %14 = vst.msk [vmem:[#allocation0] sm:$0x1] %vm13, %v12
    %s15 = scalar_lea.vmem [#allocation1], 2
    %v16 = vld [vmem:[%s15] sm:$0x1]
    %17 = vrot.lane.b32.xlu0 %v16, 64
    %v18 = vpop.permute.xlu0 %17
    %vm19 = vcmask 785920
    %20 = vst.msk [vmem:[#allocation0] sm:$0x1] %vm19, %v18
    %s21 = scalar_lea.vmem [#allocation1], 1
    %v22 = vld [vmem:[%s21] sm:$0x1]
    %23 = vrot.lane.b32.xlu0 %v22, 32
    %v24 = vpop.permute.xlu0 %23
    %vm25 = vcmask 523520
    %26 = vst.msk [vmem:[#allocation0] sm:$0x1] %vm25, %v24
    %s28 = sshllo.u32 0, 1
    %v30 = vld [vmem:[#allocation0] sm:%s28]
    %s31 = sshllo.u32 0, 1
    %32 = vst [vmem:[%s1] sm:%s31] %v30

// kernel: fwd.16
$region0: #{fwd.16}
  #allocation0 [shape = 'u32[]', space=smem, size = 0x4, offset = 0x4, fixed_abs, tag = 'smem constant byte address 0x4 - core index']
  #allocation1 [shape = 'u32[144,128]{1,0:T(1,128)}', space=vmem, size = 0x12000, scoped, tag = 'internal scratch']
  %s0 = inlined_call_operand.vmem [shape: bf16[128,32], index: 0, kind: input, shape index: {}]
  %s1 = inlined_call_operand.vmem [shape: bf16[32,128], index: 1, kind: input, shape index: {}]
  %s2 = inlined_call_operand.vmem [shape: f32[128,1], index: 2, kind: input, shape index: {}]
  %s3 = inlined_call_operand.vmem [shape: bf16[128,128], index: 3, kind: output, shape index: {}]
  %s4 = sld [smem:[#allocation0]]
  $region22: #{fwd.16} parent=0
    _
  %s6 = ssub.s32 1, %s4
  %s7 = scalar_select 0, %s6, %s4
  // Predicated region
  $region2: #{fwd.16} parent=0 // pred_check
    _
  $region3: #{fwd.16} parent=0 // pred_check_branch
    %9 = sbr.rel (0) target = $region5
  $region4: #{fwd.16} parent=0 // pred_region
    _
  $region5: #{fwd.16} parent=0 // pred_fallthru
    _
  // Predicated region
  $region6: #{fwd.16} parent=0 // pred_check
    _
  $region7: #{fwd.16} parent=0 // pred_check_branch
    %11 = sbr.rel (0) target = $region9
  $region8: #{fwd.16} parent=0 // pred_region
    _
  $region9: #{fwd.16} parent=0 // pred_fallthru
    _
  // Predicated region
  $region10: #{fwd.16} parent=0 // pred_check
    _
  $region11: #{fwd.16} parent=0 // pred_check_branch
    %13 = sbr.rel (0) target = $region13
  $region12: #{fwd.16} parent=0 // pred_region
    _
  $region13: #{fwd.16} parent=0 // pred_fallthru
    _
  %v15 = vld [vmem:[%s0] sm:$0xf]
  %v16 = vld [vmem:[%s0 + $0x4] sm:$0xf]
  %v17 = vld [vmem:[%s0 + $0x8] sm:$0xf]
  %v18 = vld [vmem:[%s0 + $0xc] sm:$0xf]
  %v19 = vld [vmem:[%s0 + $0x10] sm:$0xf]
  %v20 = vld [vmem:[%s0 + $0x14] sm:$0xf]
  %v21 = vld [vmem:[%s0 + $0x18] sm:$0xf]
  %v22 = vld [vmem:[%s0 + $0x1c] sm:$0xf]
  %v23 = vld [vmem:[%s0 + $0x20] sm:$0xf]
  %v24 = vld [vmem:[%s0 + $0x24] sm:$0xf]
  %v25 = vld [vmem:[%s0 + $0x28] sm:$0xf]
  %v26 = vld [vmem:[%s0 + $0x2c] sm:$0xf]
  %v27 = vld [vmem:[%s0 + $0x30] sm:$0xf]
  %v28 = vld [vmem:[%s0 + $0x34] sm:$0xf]
  %v29 = vld [vmem:[%s0 + $0x38] sm:$0xf]
  %v30 = vld [vmem:[%s0 + $0x3c] sm:$0xf]
  %v31 = vld [vmem:[%s1] sm:$0xf]
  %v32 = vld [vmem:[%s1 + $0x4] sm:$0xf]
  %v33 = vld [vmem:[%s1 + $0x8] sm:$0xf]
  %v34 = vld [vmem:[%s1 + $0xc] sm:$0xf]
  %v35 = vld [vmem:[%s2] sm:$0xff]
  %v36 = vld [vmem:[%s2 + $0x8] sm:$0xff]
  %v37 = vld [vmem:[%s2 + $0x10] sm:$0xff]
  %v38 = vld [vmem:[%s2 + $0x18] sm:$0xff]
  %v39 = vld [vmem:[%s2 + $0x20] sm:$0xff]
  %v40 = vld [vmem:[%s2 + $0x28] sm:$0xff]
  %v41 = vld [vmem:[%s2 + $0x30] sm:$0xff]
  %v42 = vld [vmem:[%s2 + $0x38] sm:$0xff]
  %v43 = vld [vmem:[%s2 + $0x40] sm:$0xff]
  %v44 = vld [vmem:[%s2 + $0x48] sm:$0xff]
  %v45 = vld [vmem:[%s2 + $0x50] sm:$0xff]
  %v46 = vld [vmem:[%s2 + $0x58] sm:$0xff]
  %v47 = vld [vmem:[%s2 + $0x60] sm:$0xff]
  %v48 = vld [vmem:[%s2 + $0x68] sm:$0xff]
  %v49 = vld [vmem:[%s2 + $0x70] sm:$0xff]
  %v50 = vld [vmem:[%s2 + $0x78] sm:$0xff]
  %52 = vset.pattern.permute.xlu0 0
  %53 = vperm.xlu0 %52, %v35
  %v54 = vpop.permute.xlu0 %53
  %57 = vset.pattern.permute.xlu0 0
  %58 = vperm.xlu0 %57, %v36
  %v59 = vpop.permute.xlu0 %58
  %62 = vset.pattern.permute.xlu0 0
  %63 = vperm.xlu0 %62, %v37
  %v64 = vpop.permute.xlu0 %63
  %67 = vset.pattern.permute.xlu0 0
  %68 = vperm.xlu0 %67, %v38
  %v69 = vpop.permute.xlu0 %68
  %72 = vset.pattern.permute.xlu0 0
  %73 = vperm.xlu0 %72, %v39
  %v74 = vpop.permute.xlu0 %73
  %77 = vset.pattern.permute.xlu0 0
  %78 = vperm.xlu0 %77, %v40
  %v79 = vpop.permute.xlu0 %78
  %82 = vset.pattern.permute.xlu0 0
  %83 = vperm.xlu0 %82, %v41
  %v84 = vpop.permute.xlu0 %83
  %87 = vset.pattern.permute.xlu0 0
  %88 = vperm.xlu0 %87, %v42
  %v89 = vpop.permute.xlu0 %88
  %92 = vset.pattern.permute.xlu0 0
  %93 = vperm.xlu0 %92, %v43
  %v94 = vpop.permute.xlu0 %93
  %97 = vset.pattern.permute.xlu0 0
  %98 = vperm.xlu0 %97, %v44
  %v99 = vpop.permute.xlu0 %98
  %102 = vset.pattern.permute.xlu0 0
  %103 = vperm.xlu0 %102, %v45
  %v104 = vpop.permute.xlu0 %103
  %107 = vset.pattern.permute.xlu0 0
  %108 = vperm.xlu0 %107, %v46
  %v109 = vpop.permute.xlu0 %108
  %112 = vset.pattern.permute.xlu0 0
  %113 = vperm.xlu0 %112, %v47
  %v114 = vpop.permute.xlu0 %113
  %117 = vset.pattern.permute.xlu0 0
  %118 = vperm.xlu0 %117, %v48
  %v119 = vpop.permute.xlu0 %118
  %122 = vset.pattern.permute.xlu0 0
  %123 = vperm.xlu0 %122, %v49
  %v124 = vpop.permute.xlu0 %123
  %127 = vset.pattern.permute.xlu0 0
  %128 = vperm.xlu0 %127, %v50
  %v129 = vpop.permute.xlu0 %128
  %v147 = vunpack.c.l.b16 %v15
  %v148 = vunpack.c.l.b16 %v16
  %v149 = vunpack.c.l.b16 %v17
  %v150 = vunpack.c.l.b16 %v18
  %v151 = vunpack.c.l.b16 %v19
  %v152 = vunpack.c.l.b16 %v20
  %v153 = vunpack.c.l.b16 %v21
  %v154 = vunpack.c.l.b16 %v22
  %v155 = vunpack.c.l.b16 %v23
  %v156 = vunpack.c.l.b16 %v24
  %v157 = vunpack.c.l.b16 %v25
  %v158 = vunpack.c.l.b16 %v26
  %v159 = vunpack.c.l.b16 %v27
  %v160 = vunpack.c.l.b16 %v28
  %v161 = vunpack.c.l.b16 %v29
  %v162 = vunpack.c.l.b16 %v30
  %v163 = vpack.c.b16 %v148, %v147
  %v164 = vpack.c.b16 %v150, %v149
  %v165 = vpack.c.b16 %v152, %v151
  %v166 = vpack.c.b16 %v154, %v153
  %v167 = vpack.c.b16 %v156, %v155
  %v168 = vpack.c.b16 %v158, %v157
  %v169 = vpack.c.b16 %v160, %v159
  %v170 = vpack.c.b16 %v162, %v161
  %v175 = vunpack.c.l.b16 %v31
  %v176 = vunpack.c.l.b16 %v32
  %v177 = vunpack.c.l.b16 %v33
  %v178 = vunpack.c.l.b16 %v34
  %v179 = vpack.c.b16 %v176, %v175
  %v180 = vpack.c.b16 %v178, %v177
  %vm183 = vcmask 261120
  %v185 = vsel %vm183, %v163, 0
  %v188 = vsel %vm183, %v164, 0
  %v191 = vsel %vm183, %v165, 0
  %v194 = vsel %vm183, %v166, 0
  %v197 = vsel %vm183, %v167, 0
  %v200 = vsel %vm183, %v168, 0
  %v203 = vsel %vm183, %v169, 0
  %v206 = vsel %vm183, %v170, 0
  %208 = vmatprep.subr.bf16.mxu0 0
  %209 = vmatpush1.bf16.msra.mxu0 %v179
  %210 = vmatprep.subr.bf16.mxu0 0
  %211 = vmatpush1.bf16.msra.mxu0 %v180
  %212 = vmatprep.subr.bf16.mxu0 0
  %213 = vmatpush1.bf16.msra.mxu0 0
  %214 = vmatprep.subr.bf16.mxu0 0
  %215 = vmatpush1.bf16.msra.mxu0 0
  %216 = vmatprep.subr.bf16.mxu0 0
  %217 = vmatpush1.bf16.msra.mxu0 0
  %218 = vmatprep.subr.bf16.mxu0 0
  %219 = vmatpush1.bf16.msra.mxu0 0
  %220 = vmatprep.subr.bf16.mxu0 0
  %221 = vmatpush1.bf16.msra.mxu0 0
  %222 = vmatprep.subr.bf16.mxu0 0
  %223 = vmatpush1.bf16.msra.mxu0 0
  %224 = vmatprep.subr.bf16.mxu0 0
  %225 = vmatpush1.bf16.msra.mxu0 0
  %226 = vmatprep.subr.bf16.mxu0 0
  %227 = vmatpush1.bf16.msra.mxu0 0
  %228 = vmatprep.subr.bf16.mxu0 0
  %229 = vmatpush1.bf16.msra.mxu0 0
  %230 = vmatprep.subr.bf16.mxu0 0
  %231 = vmatpush1.bf16.msra.mxu0 0
  %232 = vmatprep.subr.bf16.mxu0 0
  %233 = vmatpush1.bf16.msra.mxu0 0
  %234 = vmatprep.subr.bf16.mxu0 0
  %235 = vmatpush1.bf16.msra.mxu0 0
  %236 = vmatprep.subr.bf16.mxu0 0
  %237 = vmatpush1.bf16.msra.mxu0 0
  %238 = vmatprep.subr.bf16.mxu0 0
  %239 = vmatpush1.bf16.msra.mxu0 0
  %240 = vmatprep.mubr.bf16.mxu0 0
  %241 = vmatmul.mubr.bf16.gmra.mrb[0].mxu0 %v185
  %v242 = vpop.f32.mrb[0].mxu0
  %v243 = vadd.f32 %v54, %v242
  %v244 = vpop.f32.mrb[0].mxu0
  %v245 = vpop.f32.mrb[0].mxu0
  %v246 = vadd.f32 %v59, %v245
  %v247 = vpop.f32.mrb[0].mxu0
  %248 = vmatprep.mubr.bf16.mxu0 0
  %249 = vmatmul.mubr.bf16.gmra.mrb[0].mxu0 %v188
  %v250 = vpop.f32.mrb[0].mxu0
  %v251 = vadd.f32 %v64, %v250
  %v252 = vpop.f32.mrb[0].mxu0
  %v253 = vpop.f32.mrb[0].mxu0
  %v254 = vadd.f32 %v69, %v253
  %v255 = vpop.f32.mrb[0].mxu0
  %256 = vmatprep.mubr.bf16.mxu0 0
  %257 = vmatmul.mubr.bf16.gmra.mrb[0].mxu0 %v191
  %v258 = vpop.f32.mrb[0].mxu0
  %v259 = vadd.f32 %v74, %v258
  %v260 = vpop.f32.mrb[0].mxu0
  %v261 = vpop.f32.mrb[0].mxu0
  %v262 = vadd.f32 %v79, %v261
  %v263 = vpop.f32.mrb[0].mxu0
  %264 = vmatprep.mubr.bf16.mxu0 0
  %265 = vmatmul.mubr.bf16.gmra.mrb[0].mxu0 %v194
  %v266 = vpop.f32.mrb[0].mxu0
  %v267 = vadd.f32 %v84, %v266
  %v268 = vpop.f32.mrb[0].mxu0
  %v269 = vpop.f32.mrb[0].mxu0
  %v270 = vadd.f32 %v89, %v269
  %v271 = vpop.f32.mrb[0].mxu0
  %272 = vmatprep.mubr.bf16.mxu0 0
  %273 = vmatmul.mubr.bf16.gmra.mrb[0].mxu0 %v197
  %v274 = vpop.f32.mrb[0].mxu0
  %v275 = vadd.f32 %v94, %v274
  %v276 = vpop.f32.mrb[0].mxu0
  %v277 = vpop.f32.mrb[0].mxu0
  %v278 = vadd.f32 %v99, %v277
  %v279 = vpop.f32.mrb[0].mxu0
  %280 = vmatprep.mubr.bf16.mxu0 0
  %281 = vmatmul.mubr.bf16.gmra.mrb[0].mxu0 %v200
  %v282 = vpop.f32.mrb[0].mxu0
  %v283 = vadd.f32 %v104, %v282
  %v284 = vpop.f32.mrb[0].mxu0
  %v285 = vpop.f32.mrb[0].mxu0
  %v286 = vadd.f32 %v109, %v285
  %v287 = vpop.f32.mrb[0].mxu0
  %288 = vmatprep.mubr.bf16.mxu0 0
  %289 = vmatmul.mubr.bf16.gmra.mrb[0].mxu0 %v203
  %v290 = vpop.f32.mrb[0].mxu0
  %v291 = vadd.f32 %v114, %v290
  %v292 = vpop.f32.mrb[0].mxu0
  %v293 = vpop.f32.mrb[0].mxu0
  %v294 = vadd.f32 %v119, %v293
  %v295 = vpop.f32.mrb[0].mxu0
  %296 = vmatprep.mubr.bf16.mxu0 0
  %297 = vmatmul.mubr.bf16.gmra.mrb[0].mxu0 %v206
  %v298 = vpop.f32.mrb[0].mxu0
  %v299 = vadd.f32 %v124, %v298
  %v300 = vpop.f32.mrb[0].mxu0
  %v301 = vpop.f32.mrb[0].mxu0
  %v302 = vadd.f32 %v129, %v301
  %v303 = vpop.f32.mrb[0].mxu0
  %304 = vdwg.mxu0
  %v305 = vmax.f32 %v243, 0.0
  %v306 = vmax.f32 %v246, 0.0
  %v307 = vmax.f32 %v251, 0.0
  %v308 = vmax.f32 %v254, 0.0
  %v309 = vmax.f32 %v259, 0.0
  %v310 = vmax.f32 %v262, 0.0
  %v311 = vmax.f32 %v267, 0.0
  %v312 = vmax.f32 %v270, 0.0
  %v313 = vmax.f32 %v275, 0.0
  %v314 = vmax.f32 %v278, 0.0
  %v315 = vmax.f32 %v283, 0.0
  %v316 = vmax.f32 %v286, 0.0
  %v317 = vmax.f32 %v291, 0.0
  %v318 = vmax.f32 %v294, 0.0
  %v319 = vmax.f32 %v299, 0.0
  %v320 = vmax.f32 %v302, 0.0
  %v321 = vpack.c.bf16 %v306, %v305
  %v322 = vpack.c.bf16 %v308, %v307
  %v323 = vpack.c.bf16 %v310, %v309
  %v324 = vpack.c.bf16 %v312, %v311
  %v325 = vpack.c.bf16 %v314, %v313
  %v326 = vpack.c.bf16 %v316, %v315
  %v327 = vpack.c.bf16 %v318, %v317
  %v328 = vpack.c.bf16 %v320, %v319
  %v337 = vunpack.c.l.b16 %v321
  %v338 = vunpack.c.h.b16 %v321
  %v339 = vunpack.c.l.b16 %v322
  %v340 = vunpack.c.h.b16 %v322
  %v341 = vunpack.c.l.b16 %v323
  %v342 = vunpack.c.h.b16 %v323
  %v343 = vunpack.c.l.b16 %v324
  %v344 = vunpack.c.h.b16 %v324
  %v345 = vunpack.c.l.b16 %v325
  %v346 = vunpack.c.h.b16 %v325
  %v347 = vunpack.c.l.b16 %v326
  %v348 = vunpack.c.h.b16 %v326
  %v349 = vunpack.c.l.b16 %v327
  %v350 = vunpack.c.h.b16 %v327
  %v351 = vunpack.c.l.b16 %v328
  %v352 = vunpack.c.h.b16 %v328
  %v353 = vpack.c.b16 %v337, %v337
  %v354 = vpack.c.b16 %v338, %v338
  %v355 = vpack.c.b16 %v339, %v339
  %v356 = vpack.c.b16 %v340, %v340
  %v357 = vpack.c.b16 %v341, %v341
  %v358 = vpack.c.b16 %v342, %v342
  %v359 = vpack.c.b16 %v343, %v343
  %v360 = vpack.c.b16 %v344, %v344
  %v361 = vpack.c.b16 %v345, %v345
  %v362 = vpack.c.b16 %v346, %v346
  %v363 = vpack.c.b16 %v347, %v347
  %v364 = vpack.c.b16 %v348, %v348
  %v365 = vpack.c.b16 %v349, %v349
  %v366 = vpack.c.b16 %v350, %v350
  %v367 = vpack.c.b16 %v351, %v351
  %v368 = vpack.c.b16 %v352, %v352
  %385 = vst [vmem:[%s3] sm:$0xf] %v353
  %386 = vst [vmem:[%s3 + $0x4] sm:$0xf] %v354
  %387 = vst [vmem:[%s3 + $0x8] sm:$0xf] %v355
  %388 = vst [vmem:[%s3 + $0xc] sm:$0xf] %v356
  %389 = vst [vmem:[%s3 + $0x10] sm:$0xf] %v357
  %390 = vst [vmem:[%s3 + $0x14] sm:$0xf] %v358
  %391 = vst [vmem:[%s3 + $0x18] sm:$0xf] %v359
  %392 = vst [vmem:[%s3 + $0x1c] sm:$0xf] %v360
  %393 = vst [vmem:[%s3 + $0x20] sm:$0xf] %v361
  %394 = vst [vmem:[%s3 + $0x24] sm:$0xf] %v362
  %395 = vst [vmem:[%s3 + $0x28] sm:$0xf] %v363
  %396 = vst [vmem:[%s3 + $0x2c] sm:$0xf] %v364
  %397 = vst [vmem:[%s3 + $0x30] sm:$0xf] %v365
  %398 = vst [vmem:[%s3 + $0x34] sm:$0xf] %v366
  %399 = vst [vmem:[%s3 + $0x38] sm:$0xf] %v367
  %400 = vst [vmem:[%s3 + $0x3c] sm:$0xf] %v368
  // Predicated region
  $region14: #{fwd.16} parent=0 // pred_check
    _
  $region15: #{fwd.16} parent=0 // pred_check_branch
    %402 = sbr.rel (0) target = $region17
  $region16: #{fwd.16} parent=0 // pred_region
    _
  $region17: #{fwd.16} parent=0 // pred_fallthru
    _
  // Predicated region
  $region18: #{fwd.16} parent=0 // pred_check
    _
  $region19: #{fwd.16} parent=0 // pred_check_branch
    %404 = sbr.rel (0) target = $region21
  $region20: #{fwd.16} parent=0 // pred_region
    _
  $region21: #{fwd.16} parent=0 // pred_fallthru
    _

// kernel: fwd.13
$region0: #{fwd.13}
  #allocation0 [shape = 'u32[]', space=smem, size = 0x4, offset = 0x4, fixed_abs, tag = 'smem constant byte address 0x4 - core index']
  #allocation1 [shape = 'u32[144,128]{1,0:T(1,128)}', space=vmem, size = 0x12000, scoped, tag = 'internal scratch']
  %s0 = inlined_call_operand.vmem [shape: bf16[32,16], index: 0, kind: input, shape index: {}]
  %s1 = inlined_call_operand.vmem [shape: bf16[16,256], index: 1, kind: input, shape index: {}]
  %s2 = inlined_call_operand.vmem [shape: f32[32,1], index: 2, kind: input, shape index: {}]
  %s3 = inlined_call_operand.vmem [shape: bf16[32,256], index: 3, kind: output, shape index: {}]
  %s4 = sld [smem:[#allocation0]]
  $region22: #{fwd.13} parent=0
    _
  %s6 = ssub.s32 1, %s4
  %s7 = scalar_select 0, %s6, %s4
  // Predicated region
  $region2: #{fwd.13} parent=0 // pred_check
    _
  $region3: #{fwd.13} parent=0 // pred_check_branch
    %9 = sbr.rel (0) target = $region5
  $region4: #{fwd.13} parent=0 // pred_region
    _
  $region5: #{fwd.13} parent=0 // pred_fallthru
    _
  // Predicated region
  $region6: #{fwd.13} parent=0 // pred_check
    _
  $region7: #{fwd.13} parent=0 // pred_check_branch
    %11 = sbr.rel (0) target = $region9
  $region8: #{fwd.13} parent=0 // pred_region
    _
  $region9: #{fwd.13} parent=0 // pred_fallthru
    _
  // Predicated region
  $region10: #{fwd.13} parent=0 // pred_check
    _
  $region11: #{fwd.13} parent=0 // pred_check_branch
    %13 = sbr.rel (0) target = $region13
  $region12: #{fwd.13} parent=0 // pred_region
    _
  $region13: #{fwd.13} parent=0 // pred_fallthru
    _
  %v15 = vld [vmem:[%s0] sm:$0xf]
  %v16 = vld [vmem:[%s0 + $0x4] sm:$0xf]
  %v17 = vld [vmem:[%s0 + $0x8] sm:$0xf]
  %v18 = vld [vmem:[%s0 + $0xc] sm:$0xf]
  %v19 = vld [vmem:[%s1] sm:$0xff]
  %v20 = vld [vmem:[%s1 + $0x8] sm:$0xff]
  %v21 = vld [vmem:[%s2] sm:$0xff]
  %v22 = vld [vmem:[%s2 + $0x8] sm:$0xff]
  %v23 = vld [vmem:[%s2 + $0x10] sm:$0xff]
  %v24 = vld [vmem:[%s2 + $0x18] sm:$0xff]
  %26 = vset.pattern.permute.xlu0 0
  %27 = vperm.xlu0 %26, %v21
  %v28 = vpop.permute.xlu0 %27
  %31 = vset.pattern.permute.xlu0 0
  %32 = vperm.xlu0 %31, %v22
  %v33 = vpop.permute.xlu0 %32
  %36 = vset.pattern.permute.xlu0 0
  %37 = vperm.xlu0 %36, %v23
  %v38 = vpop.permute.xlu0 %37
  %41 = vset.pattern.permute.xlu0 0
  %42 = vperm.xlu0 %41, %v24
  %v43 = vpop.permute.xlu0 %42
  %v49 = vunpack.c.l.b16 %v15
  %v50 = vunpack.c.l.b16 %v16
  %v51 = vunpack.c.l.b16 %v17
  %v52 = vunpack.c.l.b16 %v18
  %v53 = vpack.c.b16 %v50, %v49
  %v54 = vpack.c.b16 %v52, %v51
  %v57 = vunpack.c.l.b16 %v19
  %v58 = vunpack.c.h.b16 %v19
  %v59 = vunpack.c.l.b16 %v20
  %v60 = vunpack.c.h.b16 %v20
  %v61 = vpack.c.b16 %v59, %v57
  %v62 = vpack.c.b16 %v60, %v58
  %vm65 = vcmask 130048
  %v67 = vsel %vm65, %v53, 0
  %v70 = vsel %vm65, %v54, 0
  %72 = vmatprep.subr.bf16.mxu0 %v62
  %73 = vmatpush1.bf16.msra.mxu0 %v61
  %74 = vmatprep.subr.bf16.mxu0 0
  %75 = vmatpush1.bf16.msra.mxu0 0
  %76 = vmatprep.subr.bf16.mxu0 0
  %77 = vmatpush1.bf16.msra.mxu0 0
  %78 = vmatprep.subr.bf16.mxu0 0
  %79 = vmatpush1.bf16.msra.mxu0 0
  %80 = vmatprep.subr.bf16.mxu0 0
  %81 = vmatpush1.bf16.msra.mxu0 0
  %82 = vmatprep.subr.bf16.mxu0 0
  %83 = vmatpush1.bf16.msra.mxu0 0
  %84 = vmatprep.subr.bf16.mxu0 0
  %85 = vmatpush1.bf16.msra.mxu0 0
  %86 = vmatprep.subr.bf16.mxu0 0
  %87 = vmatpush1.bf16.msra.mxu0 0
  %88 = vmatprep.subr.bf16.mxu0 0
  %89 = vmatpush1.bf16.msra.mxu0 0
  %90 = vmatprep.subr.bf16.mxu0 0
  %91 = vmatpush1.bf16.msra.mxu0 0
  %92 = vmatprep.subr.bf16.mxu0 0
  %93 = vmatpush1.bf16.msra.mxu0 0
  %94 = vmatprep.subr.bf16.mxu0 0
  %95 = vmatpush1.bf16.msra.mxu0 0
  %96 = vmatprep.subr.bf16.mxu0 0
  %97 = vmatpush1.bf16.msra.mxu0 0
  %98 = vmatprep.subr.bf16.mxu0 0
  %99 = vmatpush1.bf16.msra.mxu0 0
  %100 = vmatprep.subr.bf16.mxu0 0
  %101 = vmatpush1.bf16.msra.mxu0 0
  %102 = vmatprep.subr.bf16.mxu0 0
  %103 = vmatpush1.bf16.msra.mxu0 0
  %104 = vmatprep.mubr.bf16.mxu0 0
  %105 = vmatmul.mubr.bf16.gmra.mrb[0].mxu0 %v67
  %v106 = vpop.f32.mrb[0].mxu0
  %v107 = vadd.f32 %v28, %v106
  %v108 = vpop.f32.mrb[0].mxu0
  %v109 = vadd.f32 %v28, %v108
  %v110 = vpop.f32.mrb[0].mxu0
  %v111 = vadd.f32 %v33, %v110
  %v112 = vpop.f32.mrb[0].mxu0
  %v113 = vadd.f32 %v33, %v112
  %114 = vmatprep.mubr.bf16.mxu0 0
  %115 = vmatmul.mubr.bf16.gmra.mrb[0].mxu0 %v70
  %v116 = vpop.f32.mrb[0].mxu0
  %v117 = vadd.f32 %v38, %v116
  %v118 = vpop.f32.mrb[0].mxu0
  %v119 = vadd.f32 %v38, %v118
  %v120 = vpop.f32.mrb[0].mxu0
  %v121 = vadd.f32 %v43, %v120
  %v122 = vpop.f32.mrb[0].mxu0
  %v123 = vadd.f32 %v43, %v122
  %124 = vdwg.mxu0
  %v125 = vmax.f32 %v107, 0.0
  %v126 = vmax.f32 %v109, 0.0
  %v127 = vmax.f32 %v111, 0.0
  %v128 = vmax.f32 %v113, 0.0
  %v129 = vmax.f32 %v117, 0.0
  %v130 = vmax.f32 %v119, 0.0
  %v131 = vmax.f32 %v121, 0.0
  %v132 = vmax.f32 %v123, 0.0
  %v133 = vpack.c.bf16 %v127, %v125
  %v134 = vpack.c.bf16 %v128, %v126
  %v135 = vpack.c.bf16 %v131, %v129
  %v136 = vpack.c.bf16 %v132, %v130
  %v141 = vunpack.c.l.b16 %v133
  %v142 = vunpack.c.l.b16 %v134
  %v143 = vunpack.c.h.b16 %v133
  %v144 = vunpack.c.h.b16 %v134
  %v145 = vunpack.c.l.b16 %v135
  %v146 = vunpack.c.l.b16 %v136
  %v147 = vunpack.c.h.b16 %v135
  %v148 = vunpack.c.h.b16 %v136
  %v149 = vpack.c.b16 %v142, %v141
  %v150 = vpack.c.b16 %v144, %v143
  %v151 = vpack.c.b16 %v146, %v145
  %v152 = vpack.c.b16 %v148, %v147
  %157 = vst [vmem:[%s3] sm:$0xff] %v149
  %158 = vst [vmem:[%s3 + $0x8] sm:$0xff] %v150
  %159 = vst [vmem:[%s3 + $0x10] sm:$0xff] %v151
  %160 = vst [vmem:[%s3 + $0x18] sm:$0xff] %v152
  // Predicated region
  $region14: #{fwd.13} parent=0 // pred_check
    _
  $region15: #{fwd.13} parent=0 // pred_check_branch
    %162 = sbr.rel (0) target = $region17
  $region16: #{fwd.13} parent=0 // pred_region
    _
  $region17: #{fwd.13} parent=0 // pred_fallthru
    _
  // Predicated region
  $region18: #{fwd.13} parent=0 // pred_check
    _
  $region19: #{fwd.13} parent=0 // pred_check_branch
    %164 = sbr.rel (0) target = $region21
  $region20: #{fwd.13} parent=0 // pred_region
    _
  $region21: #{fwd.13} parent=0 // pred_fallthru
    _

// kernel: fwd.17
$region0: #{fwd.17}
  #allocation0 [shape = 'u32[]', space=smem, size = 0x4, offset = 0x4, fixed_abs, tag = 'smem constant byte address 0x4 - core index']
  #allocation1 [shape = 'u32[144,128]{1,0:T(1,128)}', space=vmem, size = 0x12000, scoped, tag = 'internal scratch']
  %s0 = inlined_call_operand.vmem [shape: bf16[2,64], index: 0, kind: input, shape index: {}]
  %s1 = inlined_call_operand.vmem [shape: bf16[64,256], index: 1, kind: input, shape index: {}]
  %s2 = inlined_call_operand.vmem [shape: f32[2,1], index: 2, kind: input, shape index: {}]
  %s3 = inlined_call_operand.vmem [shape: f32[1,256], index: 3, kind: output, shape index: {}]
  %s4 = sld [smem:[#allocation0]]
  $region22: #{fwd.17} parent=0
    _
  %s6 = ssub.s32 1, %s4
  %s7 = scalar_select 0, %s6, %s4
  // Predicated region
  $region2: #{fwd.17} parent=0 // pred_check
    _
  $region3: #{fwd.17} parent=0 // pred_check_branch
    %9 = sbr.rel (0) target = $region5
  $region4: #{fwd.17} parent=0 // pred_region
    _
  $region5: #{fwd.17} parent=0 // pred_fallthru
    _
  // Predicated region
  $region6: #{fwd.17} parent=0 // pred_check
    _
  $region7: #{fwd.17} parent=0 // pred_check_branch
    %11 = sbr.rel (0) target = $region9
  $region8: #{fwd.17} parent=0 // pred_region
    _
  $region9: #{fwd.17} parent=0 // pred_fallthru
    _
  // Predicated region
  $region10: #{fwd.17} parent=0 // pred_check
    _
  $region11: #{fwd.17} parent=0 // pred_check_branch
    %13 = sbr.rel (0) target = $region13
  $region12: #{fwd.17} parent=0 // pred_region
    _
  $region13: #{fwd.17} parent=0 // pred_fallthru
    _
  %v15 = vld [vmem:[%s0] sm:$0x1]
  %v16 = vld [vmem:[%s1] sm:$0xff]
  %v17 = vld [vmem:[%s1 + $0x8] sm:$0xff]
  %v18 = vld [vmem:[%s1 + $0x10] sm:$0xff]
  %v19 = vld [vmem:[%s1 + $0x18] sm:$0xff]
  %v20 = vld [vmem:[%s1 + $0x20] sm:$0xff]
  %v21 = vld [vmem:[%s1 + $0x28] sm:$0xff]
  %v22 = vld [vmem:[%s1 + $0x30] sm:$0xff]
  %v23 = vld [vmem:[%s1 + $0x38] sm:$0xff]
  %v24 = vld [vmem:[%s2] sm:$0x3]
  %26 = vset.pattern.permute.xlu0 0
  %27 = vperm.xlu0 %26, %v24
  %v28 = vpop.permute.xlu0 %27
  %v38 = vunpack.c.l.b16 %v16
  %v39 = vunpack.c.h.b16 %v16
  %v40 = vunpack.c.l.b16 %v17
  %v41 = vunpack.c.h.b16 %v17
  %v42 = vunpack.c.l.b16 %v18
  %v43 = vunpack.c.h.b16 %v18
  %v44 = vunpack.c.l.b16 %v19
  %v45 = vunpack.c.h.b16 %v19
  %v46 = vunpack.c.l.b16 %v20
  %v47 = vunpack.c.h.b16 %v20
  %v48 = vunpack.c.l.b16 %v21
  %v49 = vunpack.c.h.b16 %v21
  %v50 = vunpack.c.l.b16 %v22
  %v51 = vunpack.c.h.b16 %v22
  %v52 = vunpack.c.l.b16 %v23
  %v53 = vunpack.c.h.b16 %v23
  %v54 = vpack.c.b16 %v40, %v38
  %v55 = vpack.c.b16 %v41, %v39
  %v56 = vpack.c.b16 %v44, %v42
  %v57 = vpack.c.b16 %v45, %v43
  %v58 = vpack.c.b16 %v48, %v46
  %v59 = vpack.c.b16 %v49, %v47
  %v60 = vpack.c.b16 %v52, %v50
  %v61 = vpack.c.b16 %v53, %v51
  %vm70 = vcmask 523264
  %v72 = vsel %vm70, %v15, 0
  %74 = vmatprep.subr.bf16.mxu0 %v55
  %75 = vmatpush1.bf16.msra.mxu0 %v54
  %76 = vmatprep.subr.bf16.mxu0 %v57
  %77 = vmatpush1.bf16.msra.mxu0 %v56
  %78 = vmatprep.subr.bf16.mxu0 %v59
  %79 = vmatpush1.bf16.msra.mxu0 %v58
  %80 = vmatprep.subr.bf16.mxu0 %v61
  %81 = vmatpush1.bf16.msra.mxu0 %v60
  %82 = vmatprep.subr.bf16.mxu0 0
  %83 = vmatpush1.bf16.msra.mxu0 0
  %84 = vmatprep.subr.bf16.mxu0 0
  %85 = vmatpush1.bf16.msra.mxu0 0
  %86 = vmatprep.subr.bf16.mxu0 0
  %87 = vmatpush1.bf16.msra.mxu0 0
  %88 = vmatprep.subr.bf16.mxu0 0
  %89 = vmatpush1.bf16.msra.mxu0 0
  %90 = vmatprep.subr.bf16.mxu0 0
  %91 = vmatpush1.bf16.msra.mxu0 0
  %92 = vmatprep.subr.bf16.mxu0 0
  %93 = vmatpush1.bf16.msra.mxu0 0
  %94 = vmatprep.subr.bf16.mxu0 0
  %95 = vmatpush1.bf16.msra.mxu0 0
  %96 = vmatprep.subr.bf16.mxu0 0
  %97 = vmatpush1.bf16.msra.mxu0 0
  %98 = vmatprep.subr.bf16.mxu0 0
  %99 = vmatpush1.bf16.msra.mxu0 0
  %100 = vmatprep.subr.bf16.mxu0 0
  %101 = vmatpush1.bf16.msra.mxu0 0
  %102 = vmatprep.subr.bf16.mxu0 0
  %103 = vmatpush1.bf16.msra.mxu0 0
  %104 = vmatprep.subr.bf16.mxu0 0
  %105 = vmatpush1.bf16.msra.mxu0 0
  %106 = vmatprep.mubr.bf16.mxu0 0
  %107 = vmatmul.mubr.bf16.gmra.mrb[0].mxu0 %v72
  %v108 = vpop.f32.mrb[0].mxu0
  %v109 = vadd.f32 %v28, %v108
  %v110 = vpop.f32.mrb[0].mxu0
  %v111 = vadd.f32 %v28, %v110
  %v112 = vpop.f32.mrb[0].mxu0
  %v113 = vpop.f32.mrb[0].mxu0
  %114 = vdwg.mxu0
  %vm115 = vcmask 1041408
  %v116 = vsel %vm115, %v109, -inf
  %v117 = vrot.slane %v116, 4
  %v118 = vmax.f32 %v116, %v117
  %v119 = vrot.slane %v118, 2
  %v120 = vmax.f32 %v118, %v119
  %v121 = vrot.slane %v120, 1
  %v122 = vmax.f32 %v120, %v121
  %v123 = vsel %vm115, %v111, -inf
  %v124 = vrot.slane %v123, 4
  %v125 = vmax.f32 %v123, %v124
  %v126 = vrot.slane %v125, 2
  %v127 = vmax.f32 %v125, %v126
  %v128 = vrot.slane %v127, 1
  %v129 = vmax.f32 %v127, %v128
  %vm130 = vcmp.gt.f32.partialorder %v122, 0.0
  %vm131 = vcmp.gt.f32.partialorder %v129, 0.0
  %v132 = vsel %vm130, 1.0, 0.0
  %v133 = vsel %vm131, 1.0, 0.0
  %v136 = vcombine.low %v132, %v133
  %v138 = vunpack.c.l.s4 1966171168
  %v139 = vunpack.c.0.s8 %v138
  %v140 = vlaneseq
  %v141 = vshrl.u32 %v140, 7
  %v142 = vsub.s32 %v139, %v141
  %v143 = vrot.slane %v136, %v142
  %v145 = vunpack.c.l.s4 1966171168
  %v146 = vunpack.c.0.s8 %v145
  %v147 = vlaneseq
  %v148 = vshrl.u32 %v147, 7
  %v149 = vsub.s32 %v146, %v148
  %v150 = vrot.slane %v143, %v149
  %v152 = vlaneseq
  %vm153 = vcmp.ge.s32.totalorder %v152, 0
  %vm154 = vcmp.lt.s32.totalorder %v152, 256
  %vm155 = vmand %vm153, %vm154
  %156 = vst.msk [vmem:[%s3] sm:$0x3] %vm155, %v150
  // Predicated region
  $region14: #{fwd.17} parent=0 // pred_check
    _
  $region15: #{fwd.17} parent=0 // pred_check_branch
    %158 = sbr.rel (0) target = $region17
  $region16: #{fwd.17} parent=0 // pred_region
    _
  $region17: #{fwd.17} parent=0 // pred_fallthru
    _
  // Predicated region
  $region18: #{fwd.17} parent=0 // pred_check
    _
  $region19: #{fwd.17} parent=0 // pred_check_branch
    %160 = sbr.rel (0) target = $region21
  $region20: #{fwd.17} parent=0 // pred_region
    _
  $region21: #{fwd.17} parent=0 // pred_fallthru
    _

// kernel: fwd.19
$region0: #{fwd.19}
  #allocation0 [shape = 'u32[]', space=smem, size = 0x4, offset = 0x4, fixed_abs, tag = 'smem constant byte address 0x4 - core index']
  #allocation1 [shape = 'u32[144,128]{1,0:T(1,128)}', space=vmem, size = 0x12000, scoped, tag = 'internal scratch']
  %s0 = inlined_call_operand.vmem [shape: bf16[16,64], index: 0, kind: input, shape index: {}]
  %s1 = inlined_call_operand.vmem [shape: bf16[64,128], index: 1, kind: input, shape index: {}]
  %s2 = inlined_call_operand.vmem [shape: f32[16,1], index: 2, kind: input, shape index: {}]
  %s3 = inlined_call_operand.vmem [shape: f32[16,128], index: 3, kind: output, shape index: {}]
  %s4 = sld [smem:[#allocation0]]
  $region22: #{fwd.19} parent=0
    _
  %s6 = ssub.s32 1, %s4
  %s7 = scalar_select 0, %s6, %s4
  // Predicated region
  $region2: #{fwd.19} parent=0 // pred_check
    _
  $region3: #{fwd.19} parent=0 // pred_check_branch
    %9 = sbr.rel (0) target = $region5
  $region4: #{fwd.19} parent=0 // pred_region
    _
  $region5: #{fwd.19} parent=0 // pred_fallthru
    _
  // Predicated region
  $region6: #{fwd.19} parent=0 // pred_check
    _
  $region7: #{fwd.19} parent=0 // pred_check_branch
    %11 = sbr.rel (0) target = $region9
  $region8: #{fwd.19} parent=0 // pred_region
    _
  $region9: #{fwd.19} parent=0 // pred_fallthru
    _
  // Predicated region
  $region10: #{fwd.19} parent=0 // pred_check
    _
  $region11: #{fwd.19} parent=0 // pred_check_branch
    %13 = sbr.rel (0) target = $region13
  $region12: #{fwd.19} parent=0 // pred_region
    _
  $region13: #{fwd.19} parent=0 // pred_fallthru
    _
  %v15 = vld [vmem:[%s0] sm:$0xf]
  %v16 = vld [vmem:[%s0 + $0x4] sm:$0xf]
  %v17 = vld [vmem:[%s1] sm:$0xf]
  %v18 = vld [vmem:[%s1 + $0x4] sm:$0xf]
  %v19 = vld [vmem:[%s1 + $0x8] sm:$0xf]
  %v20 = vld [vmem:[%s1 + $0xc] sm:$0xf]
  %v21 = vld [vmem:[%s1 + $0x10] sm:$0xf]
  %v22 = vld [vmem:[%s1 + $0x14] sm:$0xf]
  %v23 = vld [vmem:[%s1 + $0x18] sm:$0xf]
  %v24 = vld [vmem:[%s1 + $0x1c] sm:$0xf]
  %v25 = vld [vmem:[%s2] sm:$0xff]
  %v26 = vld [vmem:[%s2 + $0x8] sm:$0xff]
  %28 = vset.pattern.permute.xlu0 0
  %29 = vperm.xlu0 %28, %v25
  %v30 = vpop.permute.xlu0 %29
  %33 = vset.pattern.permute.xlu0 0
  %34 = vperm.xlu0 %33, %v26
  %v35 = vpop.permute.xlu0 %34
  %v39 = vunpack.c.l.b16 %v15
  %v40 = vunpack.c.l.b16 %v16
  %v41 = vpack.c.b16 %v40, %v39
  %v50 = vunpack.c.l.b16 %v17
  %v51 = vunpack.c.l.b16 %v18
  %v52 = vunpack.c.l.b16 %v19
  %v53 = vunpack.c.l.b16 %v20
  %v54 = vunpack.c.l.b16 %v21
  %v55 = vunpack.c.l.b16 %v22
  %v56 = vunpack.c.l.b16 %v23
  %v57 = vunpack.c.l.b16 %v24
  %v58 = vpack.c.b16 %v51, %v50
  %v59 = vpack.c.b16 %v53, %v52
  %v60 = vpack.c.b16 %v55, %v54
  %v61 = vpack.c.b16 %v57, %v56
  %vm66 = vcmask 523264
  %v68 = vsel %vm66, %v41, 0
  %70 = vmatprep.subr.bf16.mxu0 0
  %71 = vmatpush1.bf16.msra.mxu0 %v58
  %72 = vmatprep.subr.bf16.mxu0 0
  %73 = vmatpush1.bf16.msra.mxu0 %v59
  %74 = vmatprep.subr.bf16.mxu0 0
  %75 = vmatpush1.bf16.msra.mxu0 %v60
  %76 = vmatprep.subr.bf16.mxu0 0
  %77 = vmatpush1.bf16.msra.mxu0 %v61
  %78 = vmatprep.subr.bf16.mxu0 0
  %79 = vmatpush1.bf16.msra.mxu0 0
  %80 = vmatprep.subr.bf16.mxu0 0
  %81 = vmatpush1.bf16.msra.mxu0 0
  %82 = vmatprep.subr.bf16.mxu0 0
  %83 = vmatpush1.bf16.msra.mxu0 0
  %84 = vmatprep.subr.bf16.mxu0 0
  %85 = vmatpush1.bf16.msra.mxu0 0
  %86 = vmatprep.subr.bf16.mxu0 0
  %87 = vmatpush1.bf16.msra.mxu0 0
  %88 = vmatprep.subr.bf16.mxu0 0
  %89 = vmatpush1.bf16.msra.mxu0 0
  %90 = vmatprep.subr.bf16.mxu0 0
  %91 = vmatpush1.bf16.msra.mxu0 0
  %92 = vmatprep.subr.bf16.mxu0 0
  %93 = vmatpush1.bf16.msra.mxu0 0
  %94 = vmatprep.subr.bf16.mxu0 0
  %95 = vmatpush1.bf16.msra.mxu0 0
  %96 = vmatprep.subr.bf16.mxu0 0
  %97 = vmatpush1.bf16.msra.mxu0 0
  %98 = vmatprep.subr.bf16.mxu0 0
  %99 = vmatpush1.bf16.msra.mxu0 0
  %100 = vmatprep.subr.bf16.mxu0 0
  %101 = vmatpush1.bf16.msra.mxu0 0
  %102 = vmatprep.mubr.bf16.mxu0 0
  %103 = vmatmul.mubr.bf16.gmra.mrb[0].mxu0 %v68
  %v104 = vpop.f32.mrb[0].mxu0
  %v105 = vadd.f32 %v30, %v104
  %v106 = vpop.f32.mrb[0].mxu0
  %v107 = vpop.f32.mrb[0].mxu0
  %v108 = vadd.f32 %v35, %v107
  %v109 = vpop.f32.mrb[0].mxu0
  %110 = vdwg.mxu0
  %111 = vst [vmem:[%s3] sm:$0xff] %v105
  %112 = vst [vmem:[%s3 + $0x8] sm:$0xff] %v108
  // Predicated region
  $region14: #{fwd.19} parent=0 // pred_check
    _
  $region15: #{fwd.19} parent=0 // pred_check_branch
    %114 = sbr.rel (0) target = $region17
  $region16: #{fwd.19} parent=0 // pred_region
    _
  $region17: #{fwd.19} parent=0 // pred_fallthru
    _
  // Predicated region
  $region18: #{fwd.19} parent=0 // pred_check
    _
  $region19: #{fwd.19} parent=0 // pred_check_branch
    %116 = sbr.rel (0) target = $region21
  $region20: #{fwd.19} parent=0 // pred_region
    _
  $region21: #{fwd.19} parent=0 // pred_fallthru
    _

// kernel: fwd.18
$region0: #{fwd.18}
  #allocation0 [shape = 'u32[]', space=smem, size = 0x4, offset = 0x4, fixed_abs, tag = 'smem constant byte address 0x4 - core index']
  #allocation1 [shape = 'u32[144,128]{1,0:T(1,128)}', space=vmem, size = 0x12000, scoped, tag = 'internal scratch']
  %s0 = inlined_call_operand.vmem [shape: bf16[64,2,128], index: 0, kind: input, shape index: {}]
  %s1 = inlined_call_operand.vmem [shape: f32[2,128], index: 1, kind: input, shape index: {}]
  %s2 = inlined_call_operand.vmem [shape: f32[2,128], index: 2, kind: input, shape index: {}]
  %s3 = inlined_call_operand.vmem [shape: bf16[64,128], index: 3, kind: output, shape index: {}]
  %s4 = sld [smem:[#allocation0]]
  $region22: #{fwd.18} parent=0
    _
  %s6 = ssub.s32 1, %s4
  %s7 = scalar_select 0, %s6, %s4
  // Predicated region
  $region2: #{fwd.18} parent=0 // pred_check
    _
  $region3: #{fwd.18} parent=0 // pred_check_branch
    %9 = sbr.rel (0) target = $region5
  $region4: #{fwd.18} parent=0 // pred_region
    _
  $region5: #{fwd.18} parent=0 // pred_fallthru
    _
  // Predicated region
  $region6: #{fwd.18} parent=0 // pred_check
    _
  $region7: #{fwd.18} parent=0 // pred_check_branch
    %11 = sbr.rel (0) target = $region9
  $region8: #{fwd.18} parent=0 // pred_region
    _
  $region9: #{fwd.18} parent=0 // pred_fallthru
    _
  // Predicated region
  $region10: #{fwd.18} parent=0 // pred_check
    _
  $region11: #{fwd.18} parent=0 // pred_check_branch
    %13 = sbr.rel (0) target = $region13
  $region12: #{fwd.18} parent=0 // pred_region
    _
  $region13: #{fwd.18} parent=0 // pred_fallthru
    _
  %v14 = vld [vmem:[%s0] sm:$0x1]
  %v15 = vld [vmem:[%s0 + $0x1] sm:$0x1]
  %v16 = vld [vmem:[%s0 + $0x2] sm:$0x1]
  %v17 = vld [vmem:[%s0 + $0x3] sm:$0x1]
  %v18 = vld [vmem:[%s0 + $0x4] sm:$0x1]
  %v19 = vld [vmem:[%s0 + $0x5] sm:$0x1]
  %v20 = vld [vmem:[%s0 + $0x6] sm:$0x1]
  %v21 = vld [vmem:[%s0 + $0x7] sm:$0x1]
  %v22 = vld [vmem:[%s0 + $0x8] sm:$0x1]
  %v23 = vld [vmem:[%s0 + $0x9] sm:$0x1]
  %v24 = vld [vmem:[%s0 + $0xa] sm:$0x1]
  %v25 = vld [vmem:[%s0 + $0xb] sm:$0x1]
  %v26 = vld [vmem:[%s0 + $0xc] sm:$0x1]
  %v27 = vld [vmem:[%s0 + $0xd] sm:$0x1]
  %v28 = vld [vmem:[%s0 + $0xe] sm:$0x1]
  %v29 = vld [vmem:[%s0 + $0xf] sm:$0x1]
  %v30 = vld [vmem:[%s0 + $0x10] sm:$0x1]
  %v31 = vld [vmem:[%s0 + $0x11] sm:$0x1]
  %v32 = vld [vmem:[%s0 + $0x12] sm:$0x1]
  %v33 = vld [vmem:[%s0 + $0x13] sm:$0x1]
  %v34 = vld [vmem:[%s0 + $0x14] sm:$0x1]
  %v35 = vld [vmem:[%s0 + $0x15] sm:$0x1]
  %v36 = vld [vmem:[%s0 + $0x16] sm:$0x1]
  %v37 = vld [vmem:[%s0 + $0x17] sm:$0x1]
  %v38 = vld [vmem:[%s0 + $0x18] sm:$0x1]
  %v39 = vld [vmem:[%s0 + $0x19] sm:$0x1]
  %v40 = vld [vmem:[%s0 + $0x1a] sm:$0x1]
  %v41 = vld [vmem:[%s0 + $0x1b] sm:$0x1]
  %v42 = vld [vmem:[%s0 + $0x1c] sm:$0x1]
  %v43 = vld [vmem:[%s0 + $0x1d] sm:$0x1]
  %v44 = vld [vmem:[%s0 + $0x1e] sm:$0x1]
  %v45 = vld [vmem:[%s0 + $0x1f] sm:$0x1]
  %v46 = vld [vmem:[%s0 + $0x20] sm:$0x1]
  %v47 = vld [vmem:[%s0 + $0x21] sm:$0x1]
  %v48 = vld [vmem:[%s0 + $0x22] sm:$0x1]
  %v49 = vld [vmem:[%s0 + $0x23] sm:$0x1]
  %v50 = vld [vmem:[%s0 + $0x24] sm:$0x1]
  %v51 = vld [vmem:[%s0 + $0x25] sm:$0x1]
  %v52 = vld [vmem:[%s0 + $0x26] sm:$0x1]
  %v53 = vld [vmem:[%s0 + $0x27] sm:$0x1]
  %v54 = vld [vmem:[%s0 + $0x28] sm:$0x1]
  %v55 = vld [vmem:[%s0 + $0x29] sm:$0x1]
  %v56 = vld [vmem:[%s0 + $0x2a] sm:$0x1]
  %v57 = vld [vmem:[%s0 + $0x2b] sm:$0x1]
  %v58 = vld [vmem:[%s0 + $0x2c] sm:$0x1]
  %v59 = vld [vmem:[%s0 + $0x2d] sm:$0x1]
  %v60 = vld [vmem:[%s0 + $0x2e] sm:$0x1]
  %v61 = vld [vmem:[%s0 + $0x2f] sm:$0x1]
  %v62 = vld [vmem:[%s0 + $0x30] sm:$0x1]
  %v63 = vld [vmem:[%s0 + $0x31] sm:$0x1]
  %v64 = vld [vmem:[%s0 + $0x32] sm:$0x1]
  %v65 = vld [vmem:[%s0 + $0x33] sm:$0x1]
  %v66 = vld [vmem:[%s0 + $0x34] sm:$0x1]
  %v67 = vld [vmem:[%s0 + $0x35] sm:$0x1]
  %v68 = vld [vmem:[%s0 + $0x36] sm:$0x1]
  %v69 = vld [vmem:[%s0 + $0x37] sm:$0x1]
  %v70 = vld [vmem:[%s0 + $0x38] sm:$0x1]
  %v71 = vld [vmem:[%s0 + $0x39] sm:$0x1]
  %v72 = vld [vmem:[%s0 + $0x3a] sm:$0x1]
  %v73 = vld [vmem:[%s0 + $0x3b] sm:$0x1]
  %v74 = vld [vmem:[%s0 + $0x3c] sm:$0x1]
  %v75 = vld [vmem:[%s0 + $0x3d] sm:$0x1]
  %v76 = vld [vmem:[%s0 + $0x3e] sm:$0x1]
  %v77 = vld [vmem:[%s0 + $0x3f] sm:$0x1]
  %v78 = vunpack.c.l.bf16 %v14
  %v79 = vunpack.c.l.bf16 %v15
  %v80 = vunpack.c.l.bf16 %v16
  %v81 = vunpack.c.l.bf16 %v17
  %v82 = vunpack.c.l.bf16 %v18
  %v83 = vunpack.c.l.bf16 %v19
  %v84 = vunpack.c.l.bf16 %v20
  %v85 = vunpack.c.l.bf16 %v21
  %v86 = vunpack.c.l.bf16 %v22
  %v87 = vunpack.c.l.bf16 %v23
  %v88 = vunpack.c.l.bf16 %v24
  %v89 = vunpack.c.l.bf16 %v25
  %v90 = vunpack.c.l.bf16 %v26
  %v91 = vunpack.c.l.bf16 %v27
  %v92 = vunpack.c.l.bf16 %v28
  %v93 = vunpack.c.l.bf16 %v29
  %v94 = vunpack.c.l.bf16 %v30
  %v95 = vunpack.c.l.bf16 %v31
  %v96 = vunpack.c.l.bf16 %v32
  %v97 = vunpack.c.l.bf16 %v33
  %v98 = vunpack.c.l.bf16 %v34
  %v99 = vunpack.c.l.bf16 %v35
  %v100 = vunpack.c.l.bf16 %v36
  %v101 = vunpack.c.l.bf16 %v37
  %v102 = vunpack.c.l.bf16 %v38
  %v103 = vunpack.c.l.bf16 %v39
  %v104 = vunpack.c.l.bf16 %v40
  %v105 = vunpack.c.l.bf16 %v41
  %v106 = vunpack.c.l.bf16 %v42
  %v107 = vunpack.c.l.bf16 %v43
  %v108 = vunpack.c.l.bf16 %v44
  %v109 = vunpack.c.l.bf16 %v45
  %v110 = vunpack.c.l.bf16 %v46
  %v111 = vunpack.c.l.bf16 %v47
  %v112 = vunpack.c.l.bf16 %v48
  %v113 = vunpack.c.l.bf16 %v49
  %v114 = vunpack.c.l.bf16 %v50
  %v115 = vunpack.c.l.bf16 %v51
  %v116 = vunpack.c.l.bf16 %v52
  %v117 = vunpack.c.l.bf16 %v53
  %v118 = vunpack.c.l.bf16 %v54
  %v119 = vunpack.c.l.bf16 %v55
  %v120 = vunpack.c.l.bf16 %v56
  %v121 = vunpack.c.l.bf16 %v57
  %v122 = vunpack.c.l.bf16 %v58
  %v123 = vunpack.c.l.bf16 %v59
  %v124 = vunpack.c.l.bf16 %v60
  %v125 = vunpack.c.l.bf16 %v61
  %v126 = vunpack.c.l.bf16 %v62
  %v127 = vunpack.c.l.bf16 %v63
  %v128 = vunpack.c.l.bf16 %v64
  %v129 = vunpack.c.l.bf16 %v65
  %v130 = vunpack.c.l.bf16 %v66
  %v131 = vunpack.c.l.bf16 %v67
  %v132 = vunpack.c.l.bf16 %v68
  %v133 = vunpack.c.l.bf16 %v69
  %v134 = vunpack.c.l.bf16 %v70
  %v135 = vunpack.c.l.bf16 %v71
  %v136 = vunpack.c.l.bf16 %v72
  %v137 = vunpack.c.l.bf16 %v73
  %v138 = vunpack.c.l.bf16 %v74
  %v139 = vunpack.c.l.bf16 %v75
  %v140 = vunpack.c.l.bf16 %v76
  %v141 = vunpack.c.l.bf16 %v77
  %v142 = vld [vmem:[%s1] sm:$0x3]
  %v143 = vmul.f32 %v78, %v142
  %v144 = vmul.f32 %v79, %v142
  %v145 = vmul.f32 %v80, %v142
  %v146 = vmul.f32 %v81, %v142
  %v147 = vmul.f32 %v82, %v142
  %v148 = vmul.f32 %v83, %v142
  %v149 = vmul.f32 %v84, %v142
  %v150 = vmul.f32 %v85, %v142
  %v151 = vmul.f32 %v86, %v142
  %v152 = vmul.f32 %v87, %v142
  %v153 = vmul.f32 %v88, %v142
  %v154 = vmul.f32 %v89, %v142
  %v155 = vmul.f32 %v90, %v142
  %v156 = vmul.f32 %v91, %v142
  %v157 = vmul.f32 %v92, %v142
  %v158 = vmul.f32 %v93, %v142
  %v159 = vmul.f32 %v94, %v142
  %v160 = vmul.f32 %v95, %v142
  %v161 = vmul.f32 %v96, %v142
  %v162 = vmul.f32 %v97, %v142
  %v163 = vmul.f32 %v98, %v142
  %v164 = vmul.f32 %v99, %v142
  %v165 = vmul.f32 %v100, %v142
  %v166 = vmul.f32 %v101, %v142
  %v167 = vmul.f32 %v102, %v142
  %v168 = vmul.f32 %v103, %v142
  %v169 = vmul.f32 %v104, %v142
  %v170 = vmul.f32 %v105, %v142
  %v171 = vmul.f32 %v106, %v142
  %v172 = vmul.f32 %v107, %v142
  %v173 = vmul.f32 %v108, %v142
  %v174 = vmul.f32 %v109, %v142
  %v175 = vmul.f32 %v110, %v142
  %v176 = vmul.f32 %v111, %v142
  %v177 = vmul.f32 %v112, %v142
  %v178 = vmul.f32 %v113, %v142
  %v179 = vmul.f32 %v114, %v142
  %v180 = vmul.f32 %v115, %v142
  %v181 = vmul.f32 %v116, %v142
  %v182 = vmul.f32 %v117, %v142
  %v183 = vmul.f32 %v118, %v142
  %v184 = vmul.f32 %v119, %v142
  %v185 = vmul.f32 %v120, %v142
  %v186 = vmul.f32 %v121, %v142
  %v187 = vmul.f32 %v122, %v142
  %v188 = vmul.f32 %v123, %v142
  %v189 = vmul.f32 %v124, %v142
  %v190 = vmul.f32 %v125, %v142
  %v191 = vmul.f32 %v126, %v142
  %v192 = vmul.f32 %v127, %v142
  %v193 = vmul.f32 %v128, %v142
  %v194 = vmul.f32 %v129, %v142
  %v195 = vmul.f32 %v130, %v142
  %v196 = vmul.f32 %v131, %v142
  %v197 = vmul.f32 %v132, %v142
  %v198 = vmul.f32 %v133, %v142
  %v199 = vmul.f32 %v134, %v142
  %v200 = vmul.f32 %v135, %v142
  %v201 = vmul.f32 %v136, %v142
  %v202 = vmul.f32 %v137, %v142
  %v203 = vmul.f32 %v138, %v142
  %v204 = vmul.f32 %v139, %v142
  %v205 = vmul.f32 %v140, %v142
  %v206 = vmul.f32 %v141, %v142
  %v207 = vlaneseq
  %v208 = vshrl.u32 %v207, 7
  %v209 = vsub.s32 0, %v208
  %v210 = vrot.slane %v143, %v209
  %v211 = vlaneseq
  %v212 = vshrl.u32 %v211, 7
  %v213 = vsub.s32 0, %v212
  %v214 = vrot.slane %v144, %v213
  %v215 = vlaneseq
  %v216 = vshrl.u32 %v215, 7
  %v217 = vsub.s32 0, %v216
  %v218 = vrot.slane %v145, %v217
  %v219 = vlaneseq
  %v220 = vshrl.u32 %v219, 7
  %v221 = vsub.s32 0, %v220
  %v222 = vrot.slane %v146, %v221
  %v223 = vlaneseq
  %v224 = vshrl.u32 %v223, 7
  %v225 = vsub.s32 0, %v224
  %v226 = vrot.slane %v147, %v225
  %v227 = vlaneseq
  %v228 = vshrl.u32 %v227, 7
  %v229 = vsub.s32 0, %v228
  %v230 = vrot.slane %v148, %v229
  %v231 = vlaneseq
  %v232 = vshrl.u32 %v231, 7
  %v233 = vsub.s32 0, %v232
  %v234 = vrot.slane %v149, %v233
  %v235 = vlaneseq
  %v236 = vshrl.u32 %v235, 7
  %v237 = vsub.s32 0, %v236
  %v238 = vrot.slane %v150, %v237
  %v239 = vlaneseq
  %v240 = vshrl.u32 %v239, 7
  %v241 = vsub.s32 0, %v240
  %v242 = vrot.slane %v151, %v241
  %v243 = vlaneseq
  %v244 = vshrl.u32 %v243, 7
  %v245 = vsub.s32 0, %v244
  %v246 = vrot.slane %v152, %v245
  %v247 = vlaneseq
  %v248 = vshrl.u32 %v247, 7
  %v249 = vsub.s32 0, %v248
  %v250 = vrot.slane %v153, %v249
  %v251 = vlaneseq
  %v252 = vshrl.u32 %v251, 7
  %v253 = vsub.s32 0, %v252
  %v254 = vrot.slane %v154, %v253
  %v255 = vlaneseq
  %v256 = vshrl.u32 %v255, 7
  %v257 = vsub.s32 0, %v256
  %v258 = vrot.slane %v155, %v257
  %v259 = vlaneseq
  %v260 = vshrl.u32 %v259, 7
  %v261 = vsub.s32 0, %v260
  %v262 = vrot.slane %v156, %v261
  %v263 = vlaneseq
  %v264 = vshrl.u32 %v263, 7
  %v265 = vsub.s32 0, %v264
  %v266 = vrot.slane %v157, %v265
  %v267 = vlaneseq
  %v268 = vshrl.u32 %v267, 7
  %v269 = vsub.s32 0, %v268
  %v270 = vrot.slane %v158, %v269
  %v271 = vlaneseq
  %v272 = vshrl.u32 %v271, 7
  %v273 = vsub.s32 0, %v272
  %v274 = vrot.slane %v159, %v273
  %v275 = vlaneseq
  %v276 = vshrl.u32 %v275, 7
  %v277 = vsub.s32 0, %v276
  %v278 = vrot.slane %v160, %v277
  %v279 = vlaneseq
  %v280 = vshrl.u32 %v279, 7
  %v281 = vsub.s32 0, %v280
  %v282 = vrot.slane %v161, %v281
  %v283 = vlaneseq
  %v284 = vshrl.u32 %v283, 7
  %v285 = vsub.s32 0, %v284
  %v286 = vrot.slane %v162, %v285
  %v287 = vlaneseq
  %v288 = vshrl.u32 %v287, 7
  %v289 = vsub.s32 0, %v288
  %v290 = vrot.slane %v163, %v289
  %v291 = vlaneseq
  %v292 = vshrl.u32 %v291, 7
  %v293 = vsub.s32 0, %v292
  %v294 = vrot.slane %v164, %v293
  %v295 = vlaneseq
  %v296 = vshrl.u32 %v295, 7
  %v297 = vsub.s32 0, %v296
  %v298 = vrot.slane %v165, %v297
  %v299 = vlaneseq
  %v300 = vshrl.u32 %v299, 7
  %v301 = vsub.s32 0, %v300
  %v302 = vrot.slane %v166, %v301
  %v303 = vlaneseq
  %v304 = vshrl.u32 %v303, 7
  %v305 = vsub.s32 0, %v304
  %v306 = vrot.slane %v167, %v305
  %v307 = vlaneseq
  %v308 = vshrl.u32 %v307, 7
  %v309 = vsub.s32 0, %v308
  %v310 = vrot.slane %v168, %v309
  %v311 = vlaneseq
  %v312 = vshrl.u32 %v311, 7
  %v313 = vsub.s32 0, %v312
  %v314 = vrot.slane %v169, %v313
  %v315 = vlaneseq
  %v316 = vshrl.u32 %v315, 7
  %v317 = vsub.s32 0, %v316
  %v318 = vrot.slane %v170, %v317
  %v319 = vlaneseq
  %v320 = vshrl.u32 %v319, 7
  %v321 = vsub.s32 0, %v320
  %v322 = vrot.slane %v171, %v321
  %v323 = vlaneseq
  %v324 = vshrl.u32 %v323, 7
  %v325 = vsub.s32 0, %v324
  %v326 = vrot.slane %v172, %v325
  %v327 = vlaneseq
  %v328 = vshrl.u32 %v327, 7
  %v329 = vsub.s32 0, %v328
  %v330 = vrot.slane %v173, %v329
  %v331 = vlaneseq
  %v332 = vshrl.u32 %v331, 7
  %v333 = vsub.s32 0, %v332
  %v334 = vrot.slane %v174, %v333
  %v335 = vlaneseq
  %v336 = vshrl.u32 %v335, 7
  %v337 = vsub.s32 0, %v336
  %v338 = vrot.slane %v175, %v337
  %v339 = vlaneseq
  %v340 = vshrl.u32 %v339, 7
  %v341 = vsub.s32 0, %v340
  %v342 = vrot.slane %v176, %v341
  %v343 = vlaneseq
  %v344 = vshrl.u32 %v343, 7
  %v345 = vsub.s32 0, %v344
  %v346 = vrot.slane %v177, %v345
  %v347 = vlaneseq
  %v348 = vshrl.u32 %v347, 7
  %v349 = vsub.s32 0, %v348
  %v350 = vrot.slane %v178, %v349
  %v351 = vlaneseq
  %v352 = vshrl.u32 %v351, 7
  %v353 = vsub.s32 0, %v352
  %v354 = vrot.slane %v179, %v353
  %v355 = vlaneseq
  %v356 = vshrl.u32 %v355, 7
  %v357 = vsub.s32 0, %v356
  %v358 = vrot.slane %v180, %v357
  %v359 = vlaneseq
  %v360 = vshrl.u32 %v359, 7
  %v361 = vsub.s32 0, %v360
  %v362 = vrot.slane %v181, %v361
  %v363 = vlaneseq
  %v364 = vshrl.u32 %v363, 7
  %v365 = vsub.s32 0, %v364
  %v366 = vrot.slane %v182, %v365
  %v367 = vlaneseq
  %v368 = vshrl.u32 %v367, 7
  %v369 = vsub.s32 0, %v368
  %v370 = vrot.slane %v183, %v369
  %v371 = vlaneseq
  %v372 = vshrl.u32 %v371, 7
  %v373 = vsub.s32 0, %v372
  %v374 = vrot.slane %v184, %v373
  %v375 = vlaneseq
  %v376 = vshrl.u32 %v375, 7
  %v377 = vsub.s32 0, %v376
  %v378 = vrot.slane %v185, %v377
  %v379 = vlaneseq
  %v380 = vshrl.u32 %v379, 7
  %v381 = vsub.s32 0, %v380
  %v382 = vrot.slane %v186, %v381
  %v383 = vlaneseq
  %v384 = vshrl.u32 %v383, 7
  %v385 = vsub.s32 0, %v384
  %v386 = vrot.slane %v187, %v385
  %v387 = vlaneseq
  %v388 = vshrl.u32 %v387, 7
  %v389 = vsub.s32 0, %v388
  %v390 = vrot.slane %v188, %v389
  %v391 = vlaneseq
  %v392 = vshrl.u32 %v391, 7
  %v393 = vsub.s32 0, %v392
  %v394 = vrot.slane %v189, %v393
  %v395 = vlaneseq
  %v396 = vshrl.u32 %v395, 7
  %v397 = vsub.s32 0, %v396
  %v398 = vrot.slane %v190, %v397
  %v399 = vlaneseq
  %v400 = vshrl.u32 %v399, 7
  %v401 = vsub.s32 0, %v400
  %v402 = vrot.slane %v191, %v401
  %v403 = vlaneseq
  %v404 = vshrl.u32 %v403, 7
  %v405 = vsub.s32 0, %v404
  %v406 = vrot.slane %v192, %v405
  %v407 = vlaneseq
  %v408 = vshrl.u32 %v407, 7
  %v409 = vsub.s32 0, %v408
  %v410 = vrot.slane %v193, %v409
  %v411 = vlaneseq
  %v412 = vshrl.u32 %v411, 7
  %v413 = vsub.s32 0, %v412
  %v414 = vrot.slane %v194, %v413
  %v415 = vlaneseq
  %v416 = vshrl.u32 %v415, 7
  %v417 = vsub.s32 0, %v416
  %v418 = vrot.slane %v195, %v417
  %v419 = vlaneseq
  %v420 = vshrl.u32 %v419, 7
  %v421 = vsub.s32 0, %v420
  %v422 = vrot.slane %v196, %v421
  %v423 = vlaneseq
  %v424 = vshrl.u32 %v423, 7
  %v425 = vsub.s32 0, %v424
  %v426 = vrot.slane %v197, %v425
  %v427 = vlaneseq
  %v428 = vshrl.u32 %v427, 7
  %v429 = vsub.s32 0, %v428
  %v430 = vrot.slane %v198, %v429
  %v431 = vlaneseq
  %v432 = vshrl.u32 %v431, 7
  %v433 = vsub.s32 0, %v432
  %v434 = vrot.slane %v199, %v433
  %v435 = vlaneseq
  %v436 = vshrl.u32 %v435, 7
  %v437 = vsub.s32 0, %v436
  %v438 = vrot.slane %v200, %v437
  %v439 = vlaneseq
  %v440 = vshrl.u32 %v439, 7
  %v441 = vsub.s32 0, %v440
  %v442 = vrot.slane %v201, %v441
  %v443 = vlaneseq
  %v444 = vshrl.u32 %v443, 7
  %v445 = vsub.s32 0, %v444
  %v446 = vrot.slane %v202, %v445
  %v447 = vlaneseq
  %v448 = vshrl.u32 %v447, 7
  %v449 = vsub.s32 0, %v448
  %v450 = vrot.slane %v203, %v449
  %v451 = vlaneseq
  %v452 = vshrl.u32 %v451, 7
  %v453 = vsub.s32 0, %v452
  %v454 = vrot.slane %v204, %v453
  %v455 = vlaneseq
  %v456 = vshrl.u32 %v455, 7
  %v457 = vsub.s32 0, %v456
  %v458 = vrot.slane %v205, %v457
  %v459 = vlaneseq
  %v460 = vshrl.u32 %v459, 7
  %v461 = vsub.s32 0, %v460
  %v462 = vrot.slane %v206, %v461
  %v463 = vmul.f32 %v210, %v143
  %v464 = vmul.f32 %v214, %v144
  %v465 = vmul.f32 %v218, %v145
  %v466 = vmul.f32 %v222, %v146
  %v467 = vmul.f32 %v226, %v147
  %v468 = vmul.f32 %v230, %v148
  %v469 = vmul.f32 %v234, %v149
  %v470 = vmul.f32 %v238, %v150
  %v471 = vmul.f32 %v242, %v151
  %v472 = vmul.f32 %v246, %v152
  %v473 = vmul.f32 %v250, %v153
  %v474 = vmul.f32 %v254, %v154
  %v475 = vmul.f32 %v258, %v155
  %v476 = vmul.f32 %v262, %v156
  %v477 = vmul.f32 %v266, %v157
  %v478 = vmul.f32 %v270, %v158
  %v479 = vmul.f32 %v274, %v159
  %v480 = vmul.f32 %v278, %v160
  %v481 = vmul.f32 %v282, %v161
  %v482 = vmul.f32 %v286, %v162
  %v483 = vmul.f32 %v290, %v163
  %v484 = vmul.f32 %v294, %v164
  %v485 = vmul.f32 %v298, %v165
  %v486 = vmul.f32 %v302, %v166
  %v487 = vmul.f32 %v306, %v167
  %v488 = vmul.f32 %v310, %v168
  %v489 = vmul.f32 %v314, %v169
  %v490 = vmul.f32 %v318, %v170
  %v491 = vmul.f32 %v322, %v171
  %v492 = vmul.f32 %v326, %v172
  %v493 = vmul.f32 %v330, %v173
  %v494 = vmul.f32 %v334, %v174
  %v495 = vmul.f32 %v338, %v175
  %v496 = vmul.f32 %v342, %v176
  %v497 = vmul.f32 %v346, %v177
  %v498 = vmul.f32 %v350, %v178
  %v499 = vmul.f32 %v354, %v179
  %v500 = vmul.f32 %v358, %v180
  %v501 = vmul.f32 %v362, %v181
  %v502 = vmul.f32 %v366, %v182
  %v503 = vmul.f32 %v370, %v183
  %v504 = vmul.f32 %v374, %v184
  %v505 = vmul.f32 %v378, %v185
  %v506 = vmul.f32 %v382, %v186
  %v507 = vmul.f32 %v386, %v187
  %v508 = vmul.f32 %v390, %v188
  %v509 = vmul.f32 %v394, %v189
  %v510 = vmul.f32 %v398, %v190
  %v511 = vmul.f32 %v402, %v191
  %v512 = vmul.f32 %v406, %v192
  %v513 = vmul.f32 %v410, %v193
  %v514 = vmul.f32 %v414, %v194
  %v515 = vmul.f32 %v418, %v195
  %v516 = vmul.f32 %v422, %v196
  %v517 = vmul.f32 %v426, %v197
  %v518 = vmul.f32 %v430, %v198
  %v519 = vmul.f32 %v434, %v199
  %v520 = vmul.f32 %v438, %v200
  %v521 = vmul.f32 %v442, %v201
  %v522 = vmul.f32 %v446, %v202
  %v523 = vmul.f32 %v450, %v203
  %v524 = vmul.f32 %v454, %v204
  %v525 = vmul.f32 %v458, %v205
  %v526 = vmul.f32 %v462, %v206
  %vm527 = vcmask 1041408
  %v528 = vsel %vm527, %v463, 0.0
  %v529 = vsel %vm527, %v464, 0.0
  %v530 = vadd.f32 %v528, %v529
  %v531 = vsel %vm527, %v465, 0.0
  %v532 = vadd.f32 %v530, %v531
  %v533 = vsel %vm527, %v466, 0.0
  %v534 = vadd.f32 %v532, %v533
  %v535 = vsel %vm527, %v467, 0.0
  %v536 = vadd.f32 %v534, %v535
  %v537 = vsel %vm527, %v468, 0.0
  %v538 = vadd.f32 %v536, %v537
  %v539 = vsel %vm527, %v469, 0.0
  %v540 = vadd.f32 %v538, %v539
  %v541 = vsel %vm527, %v470, 0.0
  %v542 = vadd.f32 %v540, %v541
  %v543 = vsel %vm527, %v471, 0.0
  %v544 = vadd.f32 %v542, %v543
  %v545 = vsel %vm527, %v472, 0.0
  %v546 = vadd.f32 %v544, %v545
  %v547 = vsel %vm527, %v473, 0.0
  %v548 = vadd.f32 %v546, %v547
  %v549 = vsel %vm527, %v474, 0.0
  %v550 = vadd.f32 %v548, %v549
  %v551 = vsel %vm527, %v475, 0.0
  %v552 = vadd.f32 %v550, %v551
  %v553 = vsel %vm527, %v476, 0.0
  %v554 = vadd.f32 %v552, %v553
  %v555 = vsel %vm527, %v477, 0.0
  %v556 = vadd.f32 %v554, %v555
  %v557 = vsel %vm527, %v478, 0.0
  %v558 = vadd.f32 %v556, %v557
  %v559 = vsel %vm527, %v479, 0.0
  %v560 = vadd.f32 %v558, %v559
  %v561 = vsel %vm527, %v480, 0.0
  %v562 = vadd.f32 %v560, %v561
  %v563 = vsel %vm527, %v481, 0.0
  %v564 = vadd.f32 %v562, %v563
  %v565 = vsel %vm527, %v482, 0.0
  %v566 = vadd.f32 %v564, %v565
  %v567 = vsel %vm527, %v483, 0.0
  %v568 = vadd.f32 %v566, %v567
  %v569 = vsel %vm527, %v484, 0.0
  %v570 = vadd.f32 %v568, %v569
  %v571 = vsel %vm527, %v485, 0.0
  %v572 = vadd.f32 %v570, %v571
  %v573 = vsel %vm527, %v486, 0.0
  %v574 = vadd.f32 %v572, %v573
  %v575 = vsel %vm527, %v487, 0.0
  %v576 = vadd.f32 %v574, %v575
  %v577 = vsel %vm527, %v488, 0.0
  %v578 = vadd.f32 %v576, %v577
  %v579 = vsel %vm527, %v489, 0.0
  %v580 = vadd.f32 %v578, %v579
  %v581 = vsel %vm527, %v490, 0.0
  %v582 = vadd.f32 %v580, %v581
  %v583 = vsel %vm527, %v491, 0.0
  %v584 = vadd.f32 %v582, %v583
  %v585 = vsel %vm527, %v492, 0.0
  %v586 = vadd.f32 %v584, %v585
  %v587 = vsel %vm527, %v493, 0.0
  %v588 = vadd.f32 %v586, %v587
  %v589 = vsel %vm527, %v494, 0.0
  %v590 = vadd.f32 %v588, %v589
  %v591 = vsel %vm527, %v495, 0.0
  %v592 = vadd.f32 %v590, %v591
  %v593 = vsel %vm527, %v496, 0.0
  %v594 = vadd.f32 %v592, %v593
  %v595 = vsel %vm527, %v497, 0.0
  %v596 = vadd.f32 %v594, %v595
  %v597 = vsel %vm527, %v498, 0.0
  %v598 = vadd.f32 %v596, %v597
  %v599 = vsel %vm527, %v499, 0.0
  %v600 = vadd.f32 %v598, %v599
  %v601 = vsel %vm527, %v500, 0.0
  %v602 = vadd.f32 %v600, %v601
  %v603 = vsel %vm527, %v501, 0.0
  %v604 = vadd.f32 %v602, %v603
  %v605 = vsel %vm527, %v502, 0.0
  %v606 = vadd.f32 %v604, %v605
  %v607 = vsel %vm527, %v503, 0.0
  %v608 = vadd.f32 %v606, %v607
  %v609 = vsel %vm527, %v504, 0.0
  %v610 = vadd.f32 %v608, %v609
  %v611 = vsel %vm527, %v505, 0.0
  %v612 = vadd.f32 %v610, %v611
  %v613 = vsel %vm527, %v506, 0.0
  %v614 = vadd.f32 %v612, %v613
  %v615 = vsel %vm527, %v507, 0.0
  %v616 = vadd.f32 %v614, %v615
  %v617 = vsel %vm527, %v508, 0.0
  %v618 = vadd.f32 %v616, %v617
  %v619 = vsel %vm527, %v509, 0.0
  %v620 = vadd.f32 %v618, %v619
  %v621 = vsel %vm527, %v510, 0.0
  %v622 = vadd.f32 %v620, %v621
  %v623 = vsel %vm527, %v511, 0.0
  %v624 = vadd.f32 %v622, %v623
  %v625 = vsel %vm527, %v512, 0.0
  %v626 = vadd.f32 %v624, %v625
  %v627 = vsel %vm527, %v513, 0.0
  %v628 = vadd.f32 %v626, %v627
  %v629 = vsel %vm527, %v514, 0.0
  %v630 = vadd.f32 %v628, %v629
  %v631 = vsel %vm527, %v515, 0.0
  %v632 = vadd.f32 %v630, %v631
  %v633 = vsel %vm527, %v516, 0.0
  %v634 = vadd.f32 %v632, %v633
  %v635 = vsel %vm527, %v517, 0.0
  %v636 = vadd.f32 %v634, %v635
  %v637 = vsel %vm527, %v518, 0.0
  %v638 = vadd.f32 %v636, %v637
  %v639 = vsel %vm527, %v519, 0.0
  %v640 = vadd.f32 %v638, %v639
  %v641 = vsel %vm527, %v520, 0.0
  %v642 = vadd.f32 %v640, %v641
  %v643 = vsel %vm527, %v521, 0.0
  %v644 = vadd.f32 %v642, %v643
  %v645 = vsel %vm527, %v522, 0.0
  %v646 = vadd.f32 %v644, %v645
  %v647 = vsel %vm527, %v523, 0.0
  %v648 = vadd.f32 %v646, %v647
  %v649 = vsel %vm527, %v524, 0.0
  %v650 = vadd.f32 %v648, %v649
  %v651 = vsel %vm527, %v525, 0.0
  %v652 = vadd.f32 %v650, %v651
  %v653 = vsel %vm527, %v526, 0.0
  %v654 = vadd.f32 %v652, %v653
  %v655 = vmul.f32 %v654, 0.125
  %v656 = vld [vmem:[%s2] sm:$0x3]
  %vm657 = vcmp.gt.f32.partialorder %v656, 0.0
  %v658 = vsel %vm657, %v655, -1e+30
  %v659 = vsel %vm527, %v658, -inf
  %v660 = vrot.slane %v659, 4
  %v661 = vmax.f32 %v659, %v660
  %v662 = vrot.slane %v661, 2
  %v663 = vmax.f32 %v661, %v662
  %v664 = vrot.slane %v663, 1
  %v665 = vmax.f32 %v663, %v664
  %v666 = vsub.f32 %v658, %v665
  %v667 = vmul.f32 %v666, 1.442695
  %v668 = vpow.pop %v667
  %v669 = vsel %vm657, %v668, 0.0
  %v670 = vsel %vm527, %v669, 0.0
  %v671 = vrot.slane %v670, 4
  %v672 = vadd.f32 %v670, %v671
  %v673 = vrot.slane %v672, 2
  %v674 = vadd.f32 %v672, %v673
  %v675 = vrot.slane %v674, 1
  %v676 = vadd.f32 %v674, %v675
  %v677 = vrcp.pop %v676
  %v678 = vmul.f32 %v669, %v677
  %v679 = vmul.f32 %v678, %v143
  %v680 = vmul.f32 %v678, %v144
  %v681 = vmul.f32 %v678, %v145
  %v682 = vmul.f32 %v678, %v146
  %v683 = vmul.f32 %v678, %v147
  %v684 = vmul.f32 %v678, %v148
  %v685 = vmul.f32 %v678, %v149
  %v686 = vmul.f32 %v678, %v150
  %v687 = vmul.f32 %v678, %v151
  %v688 = vmul.f32 %v678, %v152
  %v689 = vmul.f32 %v678, %v153
  %v690 = vmul.f32 %v678, %v154
  %v691 = vmul.f32 %v678, %v155
  %v692 = vmul.f32 %v678, %v156
  %v693 = vmul.f32 %v678, %v157
  %v694 = vmul.f32 %v678, %v158
  %v695 = vmul.f32 %v678, %v159
  %v696 = vmul.f32 %v678, %v160
  %v697 = vmul.f32 %v678, %v161
  %v698 = vmul.f32 %v678, %v162
  %v699 = vmul.f32 %v678, %v163
  %v700 = vmul.f32 %v678, %v164
  %v701 = vmul.f32 %v678, %v165
  %v702 = vmul.f32 %v678, %v166
  %v703 = vmul.f32 %v678, %v167
  %v704 = vmul.f32 %v678, %v168
  %v705 = vmul.f32 %v678, %v169
  %v706 = vmul.f32 %v678, %v170
  %v707 = vmul.f32 %v678, %v171
  %v708 = vmul.f32 %v678, %v172
  %v709 = vmul.f32 %v678, %v173
  %v710 = vmul.f32 %v678, %v174
  %v711 = vmul.f32 %v678, %v175
  %v712 = vmul.f32 %v678, %v176
  %v713 = vmul.f32 %v678, %v177
  %v714 = vmul.f32 %v678, %v178
  %v715 = vmul.f32 %v678, %v179
  %v716 = vmul.f32 %v678, %v180
  %v717 = vmul.f32 %v678, %v181
  %v718 = vmul.f32 %v678, %v182
  %v719 = vmul.f32 %v678, %v183
  %v720 = vmul.f32 %v678, %v184
  %v721 = vmul.f32 %v678, %v185
  %v722 = vmul.f32 %v678, %v186
  %v723 = vmul.f32 %v678, %v187
  %v724 = vmul.f32 %v678, %v188
  %v725 = vmul.f32 %v678, %v189
  %v726 = vmul.f32 %v678, %v190
  %v727 = vmul.f32 %v678, %v191
  %v728 = vmul.f32 %v678, %v192
  %v729 = vmul.f32 %v678, %v193
  %v730 = vmul.f32 %v678, %v194
  %v731 = vmul.f32 %v678, %v195
  %v732 = vmul.f32 %v678, %v196
  %v733 = vmul.f32 %v678, %v197
  %v734 = vmul.f32 %v678, %v198
  %v735 = vmul.f32 %v678, %v199
  %v736 = vmul.f32 %v678, %v200
  %v737 = vmul.f32 %v678, %v201
  %v738 = vmul.f32 %v678, %v202
  %v739 = vmul.f32 %v678, %v203
  %v740 = vmul.f32 %v678, %v204
  %v741 = vmul.f32 %v678, %v205
  %v742 = vmul.f32 %v678, %v206
  %v743 = vsel %vm527, %v679, 0.0
  %v744 = vrot.slane %v743, 4
  %v745 = vadd.f32 %v743, %v744
  %v746 = vrot.slane %v745, 2
  %v747 = vadd.f32 %v745, %v746
  %v748 = vrot.slane %v747, 1
  %v749 = vadd.f32 %v747, %v748
  %v750 = vsel %vm527, %v680, 0.0
  %v751 = vrot.slane %v750, 4
  %v752 = vadd.f32 %v750, %v751
  %v753 = vrot.slane %v752, 2
  %v754 = vadd.f32 %v752, %v753
  %v755 = vrot.slane %v754, 1
  %v756 = vadd.f32 %v754, %v755
  %v757 = vsel %vm527, %v681, 0.0
  %v758 = vrot.slane %v757, 4
  %v759 = vadd.f32 %v757, %v758
  %v760 = vrot.slane %v759, 2
  %v761 = vadd.f32 %v759, %v760
  %v762 = vrot.slane %v761, 1
  %v763 = vadd.f32 %v761, %v762
  %v764 = vsel %vm527, %v682, 0.0
  %v765 = vrot.slane %v764, 4
  %v766 = vadd.f32 %v764, %v765
  %v767 = vrot.slane %v766, 2
  %v768 = vadd.f32 %v766, %v767
  %v769 = vrot.slane %v768, 1
  %v770 = vadd.f32 %v768, %v769
  %v771 = vsel %vm527, %v683, 0.0
  %v772 = vrot.slane %v771, 4
  %v773 = vadd.f32 %v771, %v772
  %v774 = vrot.slane %v773, 2
  %v775 = vadd.f32 %v773, %v774
  %v776 = vrot.slane %v775, 1
  %v777 = vadd.f32 %v775, %v776
  %v778 = vsel %vm527, %v684, 0.0
  %v779 = vrot.slane %v778, 4
  %v780 = vadd.f32 %v778, %v779
  %v781 = vrot.slane %v780, 2
  %v782 = vadd.f32 %v780, %v781
  %v783 = vrot.slane %v782, 1
  %v784 = vadd.f32 %v782, %v783
  %v785 = vsel %vm527, %v685, 0.0
  %v786 = vrot.slane %v785, 4
  %v787 = vadd.f32 %v785, %v786
  %v788 = vrot.slane %v787, 2
  %v789 = vadd.f32 %v787, %v788
  %v790 = vrot.slane %v789, 1
  %v791 = vadd.f32 %v789, %v790
  %v792 = vsel %vm527, %v686, 0.0
  %v793 = vrot.slane %v792, 4
  %v794 = vadd.f32 %v792, %v793
  %v795 = vrot.slane %v794, 2
  %v796 = vadd.f32 %v794, %v795
  %v797 = vrot.slane %v796, 1
  %v798 = vadd.f32 %v796, %v797
  %v799 = vsel %vm527, %v687, 0.0
  %v800 = vrot.slane %v799, 4
  %v801 = vadd.f32 %v799, %v800
  %v802 = vrot.slane %v801, 2
  %v803 = vadd.f32 %v801, %v802
  %v804 = vrot.slane %v803, 1
  %v805 = vadd.f32 %v803, %v804
  %v806 = vsel %vm527, %v688, 0.0
  %v807 = vrot.slane %v806, 4
  %v808 = vadd.f32 %v806, %v807
  %v809 = vrot.slane %v808, 2
  %v810 = vadd.f32 %v808, %v809
  %v811 = vrot.slane %v810, 1
  %v812 = vadd.f32 %v810, %v811
  %v813 = vsel %vm527, %v689, 0.0
  %v814 = vrot.slane %v813, 4
  %v815 = vadd.f32 %v813, %v814
  %v816 = vrot.slane %v815, 2
  %v817 = vadd.f32 %v815, %v816
  %v818 = vrot.slane %v817, 1
  %v819 = vadd.f32 %v817, %v818
  %v820 = vsel %vm527, %v690, 0.0
  %v821 = vrot.slane %v820, 4
  %v822 = vadd.f32 %v820, %v821
  %v823 = vrot.slane %v822, 2
  %v824 = vadd.f32 %v822, %v823
  %v825 = vrot.slane %v824, 1
  %v826 = vadd.f32 %v824, %v825
  %v827 = vsel %vm527, %v691, 0.0
  %v828 = vrot.slane %v827, 4
  %v829 = vadd.f32 %v827, %v828
  %v830 = vrot.slane %v829, 2
  %v831 = vadd.f32 %v829, %v830
  %v832 = vrot.slane %v831, 1
  %v833 = vadd.f32 %v831, %v832
  %v834 = vsel %vm527, %v692, 0.0
  %v835 = vrot.slane %v834, 4
  %v836 = vadd.f32 %v834, %v835
  %v837 = vrot.slane %v836, 2
  %v838 = vadd.f32 %v836, %v837
  %v839 = vrot.slane %v838, 1
  %v840 = vadd.f32 %v838, %v839
  %v841 = vsel %vm527, %v693, 0.0
  %v842 = vrot.slane %v841, 4
  %v843 = vadd.f32 %v841, %v842
  %v844 = vrot.slane %v843, 2
  %v845 = vadd.f32 %v843, %v844
  %v846 = vrot.slane %v845, 1
  %v847 = vadd.f32 %v845, %v846
  %v848 = vsel %vm527, %v694, 0.0
  %v849 = vrot.slane %v848, 4
  %v850 = vadd.f32 %v848, %v849
  %v851 = vrot.slane %v850, 2
  %v852 = vadd.f32 %v850, %v851
  %v853 = vrot.slane %v852, 1
  %v854 = vadd.f32 %v852, %v853
  %v855 = vsel %vm527, %v695, 0.0
  %v856 = vrot.slane %v855, 4
  %v857 = vadd.f32 %v855, %v856
  %v858 = vrot.slane %v857, 2
  %v859 = vadd.f32 %v857, %v858
  %v860 = vrot.slane %v859, 1
  %v861 = vadd.f32 %v859, %v860
  %v862 = vsel %vm527, %v696, 0.0
  %v863 = vrot.slane %v862, 4
  %v864 = vadd.f32 %v862, %v863
  %v865 = vrot.slane %v864, 2
  %v866 = vadd.f32 %v864, %v865
  %v867 = vrot.slane %v866, 1
  %v868 = vadd.f32 %v866, %v867
  %v869 = vsel %vm527, %v697, 0.0
  %v870 = vrot.slane %v869, 4
  %v871 = vadd.f32 %v869, %v870
  %v872 = vrot.slane %v871, 2
  %v873 = vadd.f32 %v871, %v872
  %v874 = vrot.slane %v873, 1
  %v875 = vadd.f32 %v873, %v874
  %v876 = vsel %vm527, %v698, 0.0
  %v877 = vrot.slane %v876, 4
  %v878 = vadd.f32 %v876, %v877
  %v879 = vrot.slane %v878, 2
  %v880 = vadd.f32 %v878, %v879
  %v881 = vrot.slane %v880, 1
  %v882 = vadd.f32 %v880, %v881
  %v883 = vsel %vm527, %v699, 0.0
  %v884 = vrot.slane %v883, 4
  %v885 = vadd.f32 %v883, %v884
  %v886 = vrot.slane %v885, 2
  %v887 = vadd.f32 %v885, %v886
  %v888 = vrot.slane %v887, 1
  %v889 = vadd.f32 %v887, %v888
  %v890 = vsel %vm527, %v700, 0.0
  %v891 = vrot.slane %v890, 4
  %v892 = vadd.f32 %v890, %v891
  %v893 = vrot.slane %v892, 2
  %v894 = vadd.f32 %v892, %v893
  %v895 = vrot.slane %v894, 1
  %v896 = vadd.f32 %v894, %v895
  %v897 = vsel %vm527, %v701, 0.0
  %v898 = vrot.slane %v897, 4
  %v899 = vadd.f32 %v897, %v898
  %v900 = vrot.slane %v899, 2
  %v901 = vadd.f32 %v899, %v900
  %v902 = vrot.slane %v901, 1
  %v903 = vadd.f32 %v901, %v902
  %v904 = vsel %vm527, %v702, 0.0
  %v905 = vrot.slane %v904, 4
  %v906 = vadd.f32 %v904, %v905
  %v907 = vrot.slane %v906, 2
  %v908 = vadd.f32 %v906, %v907
  %v909 = vrot.slane %v908, 1
  %v910 = vadd.f32 %v908, %v909
  %v911 = vsel %vm527, %v703, 0.0
  %v912 = vrot.slane %v911, 4
  %v913 = vadd.f32 %v911, %v912
  %v914 = vrot.slane %v913, 2
  %v915 = vadd.f32 %v913, %v914
  %v916 = vrot.slane %v915, 1
  %v917 = vadd.f32 %v915, %v916
  %v918 = vsel %vm527, %v704, 0.0
  %v919 = vrot.slane %v918, 4
  %v920 = vadd.f32 %v918, %v919
  %v921 = vrot.slane %v920, 2
  %v922 = vadd.f32 %v920, %v921
  %v923 = vrot.slane %v922, 1
  %v924 = vadd.f32 %v922, %v923
  %v925 = vsel %vm527, %v705, 0.0
  %v926 = vrot.slane %v925, 4
  %v927 = vadd.f32 %v925, %v926
  %v928 = vrot.slane %v927, 2
  %v929 = vadd.f32 %v927, %v928
  %v930 = vrot.slane %v929, 1
  %v931 = vadd.f32 %v929, %v930
  %v932 = vsel %vm527, %v706, 0.0
  %v933 = vrot.slane %v932, 4
  %v934 = vadd.f32 %v932, %v933
  %v935 = vrot.slane %v934, 2
  %v936 = vadd.f32 %v934, %v935
  %v937 = vrot.slane %v936, 1
  %v938 = vadd.f32 %v936, %v937
  %v939 = vsel %vm527, %v707, 0.0
  %v940 = vrot.slane %v939, 4
  %v941 = vadd.f32 %v939, %v940
  %v942 = vrot.slane %v941, 2
  %v943 = vadd.f32 %v941, %v942
  %v944 = vrot.slane %v943, 1
  %v945 = vadd.f32 %v943, %v944
  %v946 = vsel %vm527, %v708, 0.0
  %v947 = vrot.slane %v946, 4
  %v948 = vadd.f32 %v946, %v947
  %v949 = vrot.slane %v948, 2
  %v950 = vadd.f32 %v948, %v949
  %v951 = vrot.slane %v950, 1
  %v952 = vadd.f32 %v950, %v951
  %v953 = vsel %vm527, %v709, 0.0
  %v954 = vrot.slane %v953, 4
  %v955 = vadd.f32 %v953, %v954
  %v956 = vrot.slane %v955, 2
  %v957 = vadd.f32 %v955, %v956
  %v958 = vrot.slane %v957, 1
  %v959 = vadd.f32 %v957, %v958
  %v960 = vsel %vm527, %v710, 0.0
  %v961 = vrot.slane %v960, 4
  %v962 = vadd.f32 %v960, %v961
  %v963 = vrot.slane %v962, 2
  %v964 = vadd.f32 %v962, %v963
  %v965 = vrot.slane %v964, 1
  %v966 = vadd.f32 %v964, %v965
  %v967 = vsel %vm527, %v711, 0.0
  %v968 = vrot.slane %v967, 4
  %v969 = vadd.f32 %v967, %v968
  %v970 = vrot.slane %v969, 2
  %v971 = vadd.f32 %v969, %v970
  %v972 = vrot.slane %v971, 1
  %v973 = vadd.f32 %v971, %v972
  %v974 = vsel %vm527, %v712, 0.0
  %v975 = vrot.slane %v974, 4
  %v976 = vadd.f32 %v974, %v975
  %v977 = vrot.slane %v976, 2
  %v978 = vadd.f32 %v976, %v977
  %v979 = vrot.slane %v978, 1
  %v980 = vadd.f32 %v978, %v979
  %v981 = vsel %vm527, %v713, 0.0
  %v982 = vrot.slane %v981, 4
  %v983 = vadd.f32 %v981, %v982
  %v984 = vrot.slane %v983, 2
  %v985 = vadd.f32 %v983, %v984
  %v986 = vrot.slane %v985, 1
  %v987 = vadd.f32 %v985, %v986
  %v988 = vsel %vm527, %v714, 0.0
  %v989 = vrot.slane %v988, 4
  %v990 = vadd.f32 %v988, %v989
  %v991 = vrot.slane %v990, 2
  %v992 = vadd.f32 %v990, %v991
  %v993 = vrot.slane %v992, 1
  %v994 = vadd.f32 %v992, %v993
  %v995 = vsel %vm527, %v715, 0.0
  %v996 = vrot.slane %v995, 4
  %v997 = vadd.f32 %v995, %v996
  %v998 = vrot.slane %v997, 2
  %v999 = vadd.f32 %v997, %v998
  %v1000 = vrot.slane %v999, 1
  %v1001 = vadd.f32 %v999, %v1000
  %v1002 = vsel %vm527, %v716, 0.0
  %v1003 = vrot.slane %v1002, 4
  %v1004 = vadd.f32 %v1002, %v1003
  %v1005 = vrot.slane %v1004, 2
  %v1006 = vadd.f32 %v1004, %v1005
  %v1007 = vrot.slane %v1006, 1
  %v1008 = vadd.f32 %v1006, %v1007
  %v1009 = vsel %vm527, %v717, 0.0
  %v1010 = vrot.slane %v1009, 4
  %v1011 = vadd.f32 %v1009, %v1010
  %v1012 = vrot.slane %v1011, 2
  %v1013 = vadd.f32 %v1011, %v1012
  %v1014 = vrot.slane %v1013, 1
  %v1015 = vadd.f32 %v1013, %v1014
  %v1016 = vsel %vm527, %v718, 0.0
  %v1017 = vrot.slane %v1016, 4
  %v1018 = vadd.f32 %v1016, %v1017
  %v1019 = vrot.slane %v1018, 2
  %v1020 = vadd.f32 %v1018, %v1019
  %v1021 = vrot.slane %v1020, 1
  %v1022 = vadd.f32 %v1020, %v1021
  %v1023 = vsel %vm527, %v719, 0.0
  %v1024 = vrot.slane %v1023, 4
  %v1025 = vadd.f32 %v1023, %v1024
  %v1026 = vrot.slane %v1025, 2
  %v1027 = vadd.f32 %v1025, %v1026
  %v1028 = vrot.slane %v1027, 1
  %v1029 = vadd.f32 %v1027, %v1028
  %v1030 = vsel %vm527, %v720, 0.0
  %v1031 = vrot.slane %v1030, 4
  %v1032 = vadd.f32 %v1030, %v1031
  %v1033 = vrot.slane %v1032, 2
  %v1034 = vadd.f32 %v1032, %v1033
  %v1035 = vrot.slane %v1034, 1
  %v1036 = vadd.f32 %v1034, %v1035
  %v1037 = vsel %vm527, %v721, 0.0
  %v1038 = vrot.slane %v1037, 4
  %v1039 = vadd.f32 %v1037, %v1038
  %v1040 = vrot.slane %v1039, 2
  %v1041 = vadd.f32 %v1039, %v1040
  %v1042 = vrot.slane %v1041, 1
  %v1043 = vadd.f32 %v1041, %v1042
  %v1044 = vsel %vm527, %v722, 0.0
  %v1045 = vrot.slane %v1044, 4
  %v1046 = vadd.f32 %v1044, %v1045
  %v1047 = vrot.slane %v1046, 2
  %v1048 = vadd.f32 %v1046, %v1047
  %v1049 = vrot.slane %v1048, 1
  %v1050 = vadd.f32 %v1048, %v1049
  %v1051 = vsel %vm527, %v723, 0.0
  %v1052 = vrot.slane %v1051, 4
  %v1053 = vadd.f32 %v1051, %v1052
  %v1054 = vrot.slane %v1053, 2
  %v1055 = vadd.f32 %v1053, %v1054
  %v1056 = vrot.slane %v1055, 1
  %v1057 = vadd.f32 %v1055, %v1056
  %v1058 = vsel %vm527, %v724, 0.0
  %v1059 = vrot.slane %v1058, 4
  %v1060 = vadd.f32 %v1058, %v1059
  %v1061 = vrot.slane %v1060, 2
  %v1062 = vadd.f32 %v1060, %v1061
  %v1063 = vrot.slane %v1062, 1
  %v1064 = vadd.f32 %v1062, %v1063
  %v1065 = vsel %vm527, %v725, 0.0
  %v1066 = vrot.slane %v1065, 4
  %v1067 = vadd.f32 %v1065, %v1066
  %v1068 = vrot.slane %v1067, 2
  %v1069 = vadd.f32 %v1067, %v1068
  %v1070 = vrot.slane %v1069, 1
  %v1071 = vadd.f32 %v1069, %v1070
  %v1072 = vsel %vm527, %v726, 0.0
  %v1073 = vrot.slane %v1072, 4
  %v1074 = vadd.f32 %v1072, %v1073
  %v1075 = vrot.slane %v1074, 2
  %v1076 = vadd.f32 %v1074, %v1075
  %v1077 = vrot.slane %v1076, 1
  %v1078 = vadd.f32 %v1076, %v1077
  %v1079 = vsel %vm527, %v727, 0.0
  %v1080 = vrot.slane %v1079, 4
  %v1081 = vadd.f32 %v1079, %v1080
  %v1082 = vrot.slane %v1081, 2
  %v1083 = vadd.f32 %v1081, %v1082
  %v1084 = vrot.slane %v1083, 1
  %v1085 = vadd.f32 %v1083, %v1084
  %v1086 = vsel %vm527, %v728, 0.0
  %v1087 = vrot.slane %v1086, 4
  %v1088 = vadd.f32 %v1086, %v1087
  %v1089 = vrot.slane %v1088, 2
  %v1090 = vadd.f32 %v1088, %v1089
  %v1091 = vrot.slane %v1090, 1
  %v1092 = vadd.f32 %v1090, %v1091
  %v1093 = vsel %vm527, %v729, 0.0
  %v1094 = vrot.slane %v1093, 4
  %v1095 = vadd.f32 %v1093, %v1094
  %v1096 = vrot.slane %v1095, 2
  %v1097 = vadd.f32 %v1095, %v1096
  %v1098 = vrot.slane %v1097, 1
  %v1099 = vadd.f32 %v1097, %v1098
  %v1100 = vsel %vm527, %v730, 0.0
  %v1101 = vrot.slane %v1100, 4
  %v1102 = vadd.f32 %v1100, %v1101
  %v1103 = vrot.slane %v1102, 2
  %v1104 = vadd.f32 %v1102, %v1103
  %v1105 = vrot.slane %v1104, 1
  %v1106 = vadd.f32 %v1104, %v1105
  %v1107 = vsel %vm527, %v731, 0.0
  %v1108 = vrot.slane %v1107, 4
  %v1109 = vadd.f32 %v1107, %v1108
  %v1110 = vrot.slane %v1109, 2
  %v1111 = vadd.f32 %v1109, %v1110
  %v1112 = vrot.slane %v1111, 1
  %v1113 = vadd.f32 %v1111, %v1112
  %v1114 = vsel %vm527, %v732, 0.0
  %v1115 = vrot.slane %v1114, 4
  %v1116 = vadd.f32 %v1114, %v1115
  %v1117 = vrot.slane %v1116, 2
  %v1118 = vadd.f32 %v1116, %v1117
  %v1119 = vrot.slane %v1118, 1
  %v1120 = vadd.f32 %v1118, %v1119
  %v1121 = vsel %vm527, %v733, 0.0
  %v1122 = vrot.slane %v1121, 4
  %v1123 = vadd.f32 %v1121, %v1122
  %v1124 = vrot.slane %v1123, 2
  %v1125 = vadd.f32 %v1123, %v1124
  %v1126 = vrot.slane %v1125, 1
  %v1127 = vadd.f32 %v1125, %v1126
  %v1128 = vsel %vm527, %v734, 0.0
  %v1129 = vrot.slane %v1128, 4
  %v1130 = vadd.f32 %v1128, %v1129
  %v1131 = vrot.slane %v1130, 2
  %v1132 = vadd.f32 %v1130, %v1131
  %v1133 = vrot.slane %v1132, 1
  %v1134 = vadd.f32 %v1132, %v1133
  %v1135 = vsel %vm527, %v735, 0.0
  %v1136 = vrot.slane %v1135, 4
  %v1137 = vadd.f32 %v1135, %v1136
  %v1138 = vrot.slane %v1137, 2
  %v1139 = vadd.f32 %v1137, %v1138
  %v1140 = vrot.slane %v1139, 1
  %v1141 = vadd.f32 %v1139, %v1140
  %v1142 = vsel %vm527, %v736, 0.0
  %v1143 = vrot.slane %v1142, 4
  %v1144 = vadd.f32 %v1142, %v1143
  %v1145 = vrot.slane %v1144, 2
  %v1146 = vadd.f32 %v1144, %v1145
  %v1147 = vrot.slane %v1146, 1
  %v1148 = vadd.f32 %v1146, %v1147
  %v1149 = vsel %vm527, %v737, 0.0
  %v1150 = vrot.slane %v1149, 4
  %v1151 = vadd.f32 %v1149, %v1150
  %v1152 = vrot.slane %v1151, 2
  %v1153 = vadd.f32 %v1151, %v1152
  %v1154 = vrot.slane %v1153, 1
  %v1155 = vadd.f32 %v1153, %v1154
  %v1156 = vsel %vm527, %v738, 0.0
  %v1157 = vrot.slane %v1156, 4
  %v1158 = vadd.f32 %v1156, %v1157
  %v1159 = vrot.slane %v1158, 2
  %v1160 = vadd.f32 %v1158, %v1159
  %v1161 = vrot.slane %v1160, 1
  %v1162 = vadd.f32 %v1160, %v1161
  %v1163 = vsel %vm527, %v739, 0.0
  %v1164 = vrot.slane %v1163, 4
  %v1165 = vadd.f32 %v1163, %v1164
  %v1166 = vrot.slane %v1165, 2
  %v1167 = vadd.f32 %v1165, %v1166
  %v1168 = vrot.slane %v1167, 1
  %v1169 = vadd.f32 %v1167, %v1168
  %v1170 = vsel %vm527, %v740, 0.0
  %v1171 = vrot.slane %v1170, 4
  %v1172 = vadd.f32 %v1170, %v1171
  %v1173 = vrot.slane %v1172, 2
  %v1174 = vadd.f32 %v1172, %v1173
  %v1175 = vrot.slane %v1174, 1
  %v1176 = vadd.f32 %v1174, %v1175
  %v1177 = vsel %vm527, %v741, 0.0
  %v1178 = vrot.slane %v1177, 4
  %v1179 = vadd.f32 %v1177, %v1178
  %v1180 = vrot.slane %v1179, 2
  %v1181 = vadd.f32 %v1179, %v1180
  %v1182 = vrot.slane %v1181, 1
  %v1183 = vadd.f32 %v1181, %v1182
  %v1184 = vsel %vm527, %v742, 0.0
  %v1185 = vrot.slane %v1184, 4
  %v1186 = vadd.f32 %v1184, %v1185
  %v1187 = vrot.slane %v1186, 2
  %v1188 = vadd.f32 %v1186, %v1187
  %v1189 = vrot.slane %v1188, 1
  %v1190 = vadd.f32 %v1188, %v1189
  %v1191 = vpack.c.bf16 %v749, %v749
  %v1192 = vpack.c.bf16 %v756, %v756
  %v1193 = vpack.c.bf16 %v763, %v763
  %v1194 = vpack.c.bf16 %v770, %v770
  %v1195 = vpack.c.bf16 %v777, %v777
  %v1196 = vpack.c.bf16 %v784, %v784
  %v1197 = vpack.c.bf16 %v791, %v791
  %v1198 = vpack.c.bf16 %v798, %v798
  %v1199 = vpack.c.bf16 %v805, %v805
  %v1200 = vpack.c.bf16 %v812, %v812
  %v1201 = vpack.c.bf16 %v819, %v819
  %v1202 = vpack.c.bf16 %v826, %v826
  %v1203 = vpack.c.bf16 %v833, %v833
  %v1204 = vpack.c.bf16 %v840, %v840
  %v1205 = vpack.c.bf16 %v847, %v847
  %v1206 = vpack.c.bf16 %v854, %v854
  %v1207 = vpack.c.bf16 %v861, %v861
  %v1208 = vpack.c.bf16 %v868, %v868
  %v1209 = vpack.c.bf16 %v875, %v875
  %v1210 = vpack.c.bf16 %v882, %v882
  %v1211 = vpack.c.bf16 %v889, %v889
  %v1212 = vpack.c.bf16 %v896, %v896
  %v1213 = vpack.c.bf16 %v903, %v903
  %v1214 = vpack.c.bf16 %v910, %v910
  %v1215 = vpack.c.bf16 %v917, %v917
  %v1216 = vpack.c.bf16 %v924, %v924
  %v1217 = vpack.c.bf16 %v931, %v931
  %v1218 = vpack.c.bf16 %v938, %v938
  %v1219 = vpack.c.bf16 %v945, %v945
  %v1220 = vpack.c.bf16 %v952, %v952
  %v1221 = vpack.c.bf16 %v959, %v959
  %v1222 = vpack.c.bf16 %v966, %v966
  %v1223 = vpack.c.bf16 %v973, %v973
  %v1224 = vpack.c.bf16 %v980, %v980
  %v1225 = vpack.c.bf16 %v987, %v987
  %v1226 = vpack.c.bf16 %v994, %v994
  %v1227 = vpack.c.bf16 %v1001, %v1001
  %v1228 = vpack.c.bf16 %v1008, %v1008
  %v1229 = vpack.c.bf16 %v1015, %v1015
  %v1230 = vpack.c.bf16 %v1022, %v1022
  %v1231 = vpack.c.bf16 %v1029, %v1029
  %v1232 = vpack.c.bf16 %v1036, %v1036
  %v1233 = vpack.c.bf16 %v1043, %v1043
  %v1234 = vpack.c.bf16 %v1050, %v1050
  %v1235 = vpack.c.bf16 %v1057, %v1057
  %v1236 = vpack.c.bf16 %v1064, %v1064
  %v1237 = vpack.c.bf16 %v1071, %v1071
  %v1238 = vpack.c.bf16 %v1078, %v1078
  %v1239 = vpack.c.bf16 %v1085, %v1085
  %v1240 = vpack.c.bf16 %v1092, %v1092
  %v1241 = vpack.c.bf16 %v1099, %v1099
  %v1242 = vpack.c.bf16 %v1106, %v1106
  %v1243 = vpack.c.bf16 %v1113, %v1113
  %v1244 = vpack.c.bf16 %v1120, %v1120
  %v1245 = vpack.c.bf16 %v1127, %v1127
  %v1246 = vpack.c.bf16 %v1134, %v1134
  %v1247 = vpack.c.bf16 %v1141, %v1141
  %v1248 = vpack.c.bf16 %v1148, %v1148
  %v1249 = vpack.c.bf16 %v1155, %v1155
  %v1250 = vpack.c.bf16 %v1162, %v1162
  %v1251 = vpack.c.bf16 %v1169, %v1169
  %v1252 = vpack.c.bf16 %v1176, %v1176
  %v1253 = vpack.c.bf16 %v1183, %v1183
  %v1254 = vpack.c.bf16 %v1190, %v1190
  %v1319 = vunpack.c.l.b16 %v1191
  %v1320 = vunpack.c.l.b16 %v1192
  %v1321 = vunpack.c.l.b16 %v1193
  %v1322 = vunpack.c.l.b16 %v1194
  %v1323 = vunpack.c.l.b16 %v1195
  %v1324 = vunpack.c.l.b16 %v1196
  %v1325 = vunpack.c.l.b16 %v1197
  %v1326 = vunpack.c.l.b16 %v1198
  %v1327 = vunpack.c.l.b16 %v1199
  %v1328 = vunpack.c.l.b16 %v1200
  %v1329 = vunpack.c.l.b16 %v1201
  %v1330 = vunpack.c.l.b16 %v1202
  %v1331 = vunpack.c.l.b16 %v1203
  %v1332 = vunpack.c.l.b16 %v1204
  %v1333 = vunpack.c.l.b16 %v1205
  %v1334 = vunpack.c.l.b16 %v1206
  %v1335 = vunpack.c.l.b16 %v1207
  %v1336 = vunpack.c.l.b16 %v1208
  %v1337 = vunpack.c.l.b16 %v1209
  %v1338 = vunpack.c.l.b16 %v1210
  %v1339 = vunpack.c.l.b16 %v1211
  %v1340 = vunpack.c.l.b16 %v1212
  %v1341 = vunpack.c.l.b16 %v1213
  %v1342 = vunpack.c.l.b16 %v1214
  %v1343 = vunpack.c.l.b16 %v1215
  %v1344 = vunpack.c.l.b16 %v1216
  %v1345 = vunpack.c.l.b16 %v1217
  %v1346 = vunpack.c.l.b16 %v1218
  %v1347 = vunpack.c.l.b16 %v1219
  %v1348 = vunpack.c.l.b16 %v1220
  %v1349 = vunpack.c.l.b16 %v1221
  %v1350 = vunpack.c.l.b16 %v1222
  %v1351 = vunpack.c.l.b16 %v1223
  %v1352 = vunpack.c.l.b16 %v1224
  %v1353 = vunpack.c.l.b16 %v1225
  %v1354 = vunpack.c.l.b16 %v1226
  %v1355 = vunpack.c.l.b16 %v1227
  %v1356 = vunpack.c.l.b16 %v1228
  %v1357 = vunpack.c.l.b16 %v1229
  %v1358 = vunpack.c.l.b16 %v1230
  %v1359 = vunpack.c.l.b16 %v1231
  %v1360 = vunpack.c.l.b16 %v1232
  %v1361 = vunpack.c.l.b16 %v1233
  %v1362 = vunpack.c.l.b16 %v1234
  %v1363 = vunpack.c.l.b16 %v1235
  %v1364 = vunpack.c.l.b16 %v1236
  %v1365 = vunpack.c.l.b16 %v1237
  %v1366 = vunpack.c.l.b16 %v1238
  %v1367 = vunpack.c.l.b16 %v1239
  %v1368 = vunpack.c.l.b16 %v1240
  %v1369 = vunpack.c.l.b16 %v1241
  %v1370 = vunpack.c.l.b16 %v1242
  %v1371 = vunpack.c.l.b16 %v1243
  %v1372 = vunpack.c.l.b16 %v1244
  %v1373 = vunpack.c.l.b16 %v1245
  %v1374 = vunpack.c.l.b16 %v1246
  %v1375 = vunpack.c.l.b16 %v1247
  %v1376 = vunpack.c.l.b16 %v1248
  %v1377 = vunpack.c.l.b16 %v1249
  %v1378 = vunpack.c.l.b16 %v1250
  %v1379 = vunpack.c.l.b16 %v1251
  %v1380 = vunpack.c.l.b16 %v1252
  %v1381 = vunpack.c.l.b16 %v1253
  %v1382 = vunpack.c.l.b16 %v1254
  %v1383 = vpack.c.b16 %v1319, %v1319
  %v1384 = vpack.c.b16 %v1320, %v1320
  %v1385 = vpack.c.b16 %v1321, %v1321
  %v1386 = vpack.c.b16 %v1322, %v1322
  %v1387 = vpack.c.b16 %v1323, %v1323
  %v1388 = vpack.c.b16 %v1324, %v1324
  %v1389 = vpack.c.b16 %v1325, %v1325
  %v1390 = vpack.c.b16 %v1326, %v1326
  %v1391 = vpack.c.b16 %v1327, %v1327
  %v1392 = vpack.c.b16 %v1328, %v1328
  %v1393 = vpack.c.b16 %v1329, %v1329
  %v1394 = vpack.c.b16 %v1330, %v1330
  %v1395 = vpack.c.b16 %v1331, %v1331
  %v1396 = vpack.c.b16 %v1332, %v1332
  %v1397 = vpack.c.b16 %v1333, %v1333
  %v1398 = vpack.c.b16 %v1334, %v1334
  %v1399 = vpack.c.b16 %v1335, %v1335
  %v1400 = vpack.c.b16 %v1336, %v1336
  %v1401 = vpack.c.b16 %v1337, %v1337
  %v1402 = vpack.c.b16 %v1338, %v1338
  %v1403 = vpack.c.b16 %v1339, %v1339
  %v1404 = vpack.c.b16 %v1340, %v1340
  %v1405 = vpack.c.b16 %v1341, %v1341
  %v1406 = vpack.c.b16 %v1342, %v1342
  %v1407 = vpack.c.b16 %v1343, %v1343
  %v1408 = vpack.c.b16 %v1344, %v1344
  %v1409 = vpack.c.b16 %v1345, %v1345
  %v1410 = vpack.c.b16 %v1346, %v1346
  %v1411 = vpack.c.b16 %v1347, %v1347
  %v1412 = vpack.c.b16 %v1348, %v1348
  %v1413 = vpack.c.b16 %v1349, %v1349
  %v1414 = vpack.c.b16 %v1350, %v1350
  %v1415 = vpack.c.b16 %v1351, %v1351
  %v1416 = vpack.c.b16 %v1352, %v1352
  %v1417 = vpack.c.b16 %v1353, %v1353
  %v1418 = vpack.c.b16 %v1354, %v1354
  %v1419 = vpack.c.b16 %v1355, %v1355
  %v1420 = vpack.c.b16 %v1356, %v1356
  %v1421 = vpack.c.b16 %v1357, %v1357
  %v1422 = vpack.c.b16 %v1358, %v1358
  %v1423 = vpack.c.b16 %v1359, %v1359
  %v1424 = vpack.c.b16 %v1360, %v1360
  %v1425 = vpack.c.b16 %v1361, %v1361
  %v1426 = vpack.c.b16 %v1362, %v1362
  %v1427 = vpack.c.b16 %v1363, %v1363
  %v1428 = vpack.c.b16 %v1364, %v1364
  %v1429 = vpack.c.b16 %v1365, %v1365
  %v1430 = vpack.c.b16 %v1366, %v1366
  %v1431 = vpack.c.b16 %v1367, %v1367
  %v1432 = vpack.c.b16 %v1368, %v1368
  %v1433 = vpack.c.b16 %v1369, %v1369
  %v1434 = vpack.c.b16 %v1370, %v1370
  %v1435 = vpack.c.b16 %v1371, %v1371
  %v1436 = vpack.c.b16 %v1372, %v1372
  %v1437 = vpack.c.b16 %v1373, %v1373
  %v1438 = vpack.c.b16 %v1374, %v1374
  %v1439 = vpack.c.b16 %v1375, %v1375
  %v1440 = vpack.c.b16 %v1376, %v1376
  %v1441 = vpack.c.b16 %v1377, %v1377
  %v1442 = vpack.c.b16 %v1378, %v1378
  %v1443 = vpack.c.b16 %v1379, %v1379
  %v1444 = vpack.c.b16 %v1380, %v1380
  %v1445 = vpack.c.b16 %v1381, %v1381
  %v1446 = vpack.c.b16 %v1382, %v1382
  %v1447 = vunpack.c.l.b16 %v1383
  %v1448 = vunpack.c.l.b16 %v1384
  %v1449 = vunpack.c.l.b16 %v1385
  %v1450 = vunpack.c.l.b16 %v1386
  %v1451 = vunpack.c.l.b16 %v1387
  %v1452 = vunpack.c.l.b16 %v1388
  %v1453 = vunpack.c.l.b16 %v1389
  %v1454 = vunpack.c.l.b16 %v1390
  %v1455 = vunpack.c.l.b16 %v1391
  %v1456 = vunpack.c.l.b16 %v1392
  %v1457 = vunpack.c.l.b16 %v1393
  %v1458 = vunpack.c.l.b16 %v1394
  %v1459 = vunpack.c.l.b16 %v1395
  %v1460 = vunpack.c.l.b16 %v1396
  %v1461 = vunpack.c.l.b16 %v1397
  %v1462 = vunpack.c.l.b16 %v1398
  %v1463 = vunpack.c.l.b16 %v1399
  %v1464 = vunpack.c.l.b16 %v1400
  %v1465 = vunpack.c.l.b16 %v1401
  %v1466 = vunpack.c.l.b16 %v1402
  %v1467 = vunpack.c.l.b16 %v1403
  %v1468 = vunpack.c.l.b16 %v1404
  %v1469 = vunpack.c.l.b16 %v1405
  %v1470 = vunpack.c.l.b16 %v1406
  %v1471 = vunpack.c.l.b16 %v1407
  %v1472 = vunpack.c.l.b16 %v1408
  %v1473 = vunpack.c.l.b16 %v1409
  %v1474 = vunpack.c.l.b16 %v1410
  %v1475 = vunpack.c.l.b16 %v1411
  %v1476 = vunpack.c.l.b16 %v1412
  %v1477 = vunpack.c.l.b16 %v1413
  %v1478 = vunpack.c.l.b16 %v1414
  %v1479 = vunpack.c.l.b16 %v1415
  %v1480 = vunpack.c.l.b16 %v1416
  %v1481 = vunpack.c.l.b16 %v1417
  %v1482 = vunpack.c.l.b16 %v1418
  %v1483 = vunpack.c.l.b16 %v1419
  %v1484 = vunpack.c.l.b16 %v1420
  %v1485 = vunpack.c.l.b16 %v1421
  %v1486 = vunpack.c.l.b16 %v1422
  %v1487 = vunpack.c.l.b16 %v1423
  %v1488 = vunpack.c.l.b16 %v1424
  %v1489 = vunpack.c.l.b16 %v1425
  %v1490 = vunpack.c.l.b16 %v1426
  %v1491 = vunpack.c.l.b16 %v1427
  %v1492 = vunpack.c.l.b16 %v1428
  %v1493 = vunpack.c.l.b16 %v1429
  %v1494 = vunpack.c.l.b16 %v1430
  %v1495 = vunpack.c.l.b16 %v1431
  %v1496 = vunpack.c.l.b16 %v1432
  %v1497 = vunpack.c.l.b16 %v1433
  %v1498 = vunpack.c.l.b16 %v1434
  %v1499 = vunpack.c.l.b16 %v1435
  %v1500 = vunpack.c.l.b16 %v1436
  %v1501 = vunpack.c.l.b16 %v1437
  %v1502 = vunpack.c.l.b16 %v1438
  %v1503 = vunpack.c.l.b16 %v1439
  %v1504 = vunpack.c.l.b16 %v1440
  %v1505 = vunpack.c.l.b16 %v1441
  %v1506 = vunpack.c.l.b16 %v1442
  %v1507 = vunpack.c.l.b16 %v1443
  %v1508 = vunpack.c.l.b16 %v1444
  %v1509 = vunpack.c.l.b16 %v1445
  %v1510 = vunpack.c.l.b16 %v1446
  %vm1511 = vcmask 1041409
  %v1512 = vsel %vm1511, %v1448, %v1447
  %vm1513 = vcmask 1042434
  %v1514 = vsel %vm1513, %v1449, %v1512
  %vm1515 = vcmask 1043459
  %v1516 = vsel %vm1515, %v1450, %v1514
  %vm1517 = vcmask 1044484
  %v1518 = vsel %vm1517, %v1451, %v1516
  %vm1519 = vcmask 1045509
  %v1520 = vsel %vm1519, %v1452, %v1518
  %vm1521 = vcmask 1046534
  %v1522 = vsel %vm1521, %v1453, %v1520
  %vm1523 = vcmask 1047559
  %v1524 = vsel %vm1523, %v1454, %v1522
  %v1525 = vsel %vm1511, %v1456, %v1455
  %v1526 = vsel %vm1513, %v1457, %v1525
  %v1527 = vsel %vm1515, %v1458, %v1526
  %v1528 = vsel %vm1517, %v1459, %v1527
  %v1529 = vsel %vm1519, %v1460, %v1528
  %v1530 = vsel %vm1521, %v1461, %v1529
  %v1531 = vsel %vm1523, %v1462, %v1530
  %v1532 = vsel %vm1511, %v1464, %v1463
  %v1533 = vsel %vm1513, %v1465, %v1532
  %v1534 = vsel %vm1515, %v1466, %v1533
  %v1535 = vsel %vm1517, %v1467, %v1534
  %v1536 = vsel %vm1519, %v1468, %v1535
  %v1537 = vsel %vm1521, %v1469, %v1536
  %v1538 = vsel %vm1523, %v1470, %v1537
  %v1539 = vsel %vm1511, %v1472, %v1471
  %v1540 = vsel %vm1513, %v1473, %v1539
  %v1541 = vsel %vm1515, %v1474, %v1540
  %v1542 = vsel %vm1517, %v1475, %v1541
  %v1543 = vsel %vm1519, %v1476, %v1542
  %v1544 = vsel %vm1521, %v1477, %v1543
  %v1545 = vsel %vm1523, %v1478, %v1544
  %v1546 = vsel %vm1511, %v1480, %v1479
  %v1547 = vsel %vm1513, %v1481, %v1546
  %v1548 = vsel %vm1515, %v1482, %v1547
  %v1549 = vsel %vm1517, %v1483, %v1548
  %v1550 = vsel %vm1519, %v1484, %v1549
  %v1551 = vsel %vm1521, %v1485, %v1550
  %v1552 = vsel %vm1523, %v1486, %v1551
  %v1553 = vsel %vm1511, %v1488, %v1487
  %v1554 = vsel %vm1513, %v1489, %v1553
  %v1555 = vsel %vm1515, %v1490, %v1554
  %v1556 = vsel %vm1517, %v1491, %v1555
  %v1557 = vsel %vm1519, %v1492, %v1556
  %v1558 = vsel %vm1521, %v1493, %v1557
  %v1559 = vsel %vm1523, %v1494, %v1558
  %v1560 = vsel %vm1511, %v1496, %v1495
  %v1561 = vsel %vm1513, %v1497, %v1560
  %v1562 = vsel %vm1515, %v1498, %v1561
  %v1563 = vsel %vm1517, %v1499, %v1562
  %v1564 = vsel %vm1519, %v1500, %v1563
  %v1565 = vsel %vm1521, %v1501, %v1564
  %v1566 = vsel %vm1523, %v1502, %v1565
  %v1567 = vsel %vm1511, %v1504, %v1503
  %v1568 = vsel %vm1513, %v1505, %v1567
  %v1569 = vsel %vm1515, %v1506, %v1568
  %v1570 = vsel %vm1517, %v1507, %v1569
  %v1571 = vsel %vm1519, %v1508, %v1570
  %v1572 = vsel %vm1521, %v1509, %v1571
  %v1573 = vsel %vm1523, %v1510, %v1572
  %v1574 = vpack.c.b16 %v1524, %v1524
  %v1575 = vpack.c.b16 %v1531, %v1531
  %v1576 = vpack.c.b16 %v1538, %v1538
  %v1577 = vpack.c.b16 %v1545, %v1545
  %v1578 = vpack.c.b16 %v1552, %v1552
  %v1579 = vpack.c.b16 %v1559, %v1559
  %v1580 = vpack.c.b16 %v1566, %v1566
  %v1581 = vpack.c.b16 %v1573, %v1573
  %1590 = vst [vmem:[%s3] sm:$0xf] %v1574
  %1591 = vst [vmem:[%s3 + $0x4] sm:$0xf] %v1575
  %1592 = vst [vmem:[%s3 + $0x8] sm:$0xf] %v1576
  %1593 = vst [vmem:[%s3 + $0xc] sm:$0xf] %v1577
  %1594 = vst [vmem:[%s3 + $0x10] sm:$0xf] %v1578
  %1595 = vst [vmem:[%s3 + $0x14] sm:$0xf] %v1579
  %1596 = vst [vmem:[%s3 + $0x18] sm:$0xf] %v1580
  %1597 = vst [vmem:[%s3 + $0x1c] sm:$0xf] %v1581
  // Predicated region
  $region14: #{fwd.18} parent=0 // pred_check
    _
  $region15: #{fwd.18} parent=0 // pred_check_branch
    %1599 = sbr.rel (0) target = $region17
  $region16: #{fwd.18} parent=0 // pred_region
    _
  $region17: #{fwd.18} parent=0 // pred_fallthru
    _
  // Predicated region
  $region18: #{fwd.18} parent=0 // pred_check
    _
  $region19: #{fwd.18} parent=0 // pred_check_branch
    %1601 = sbr.rel (0) target = $region21
  $region20: #{fwd.18} parent=0 // pred_region
    _
  $region21: #{fwd.18} parent=0 // pred_fallthru
    _

</llo_original>
